<compile_context>
chip_gen: v7x
topology: tpu7x:2x2x1
jax: 0.10.0
libtpu: 0.0.40
codegen_flags: <defaults>
</compile_context>

<pallas_src>
import numpy as np

import jax
import jax.numpy as jnp
from jax import lax
from jax.experimental import pallas as pl
from jax.experimental.pallas import tpu as pltpu


# ------------------------------ fused kernel ------------------------------- #

def _net_kernel(x_ref, t1_ref, b1_ref, t2_ref, b2_ref, w1h_ref, bf1_ref,
                w2_ref, bf2_ref, o_ref):
    """Whole Net forward for one image.

    x_ref : (2, 16, 96)   input rows split by parity: x_ref[p, a, w*3+c] = img[2a+p, w, c]
    t1_ref: (2, 5, 96, 224)  banded conv1 weights [pool_x, kh, wi*3+ci, wo*16+co]
    b1_ref: (1, 224) f32     conv1 bias tiled over wo
    t2_ref: (2, 3, 224, 216) banded conv2 weights [pool_x, kh, w*16+ci, wo*36+co]
    b2_ref: (1, 216) f32
    w1h_ref:(6, 216, 128)    fc1 weights, one (216,128) block per pooled row h2
    bf1_ref:(1, 128) f32
    w2_ref: (128, 10)
    bf2_ref:(1, 10) f32
    o_ref : (1, 10) f32
    """
    f32 = jnp.float32
    cdt = t1_ref.dtype                      # matmul-operand dtype (f32 or bf16)

    # ---- conv1 (5x5, 3->16) + bias + ReLU + 2x2 max-pool: 4 banded-matmul phases.
    # xs[s][hp, :] = image row (2*hp + s),  s = pool_y + kh  (contiguous slices only).
    xs = [x_ref[s % 2, (s // 2):(s // 2) + 14, :] for s in range(6)]
    p1 = None
    for ph in range(2):                      # pool position along H
        for pw in range(2):                  # pool position along W (baked into T1[pw])
            acc = jnp.dot(xs[ph], t1_ref[pw, 0, :, :], preferred_element_type=f32)
            for kh in range(1, 5):
                acc = acc + jnp.dot(xs[ph + kh], t1_ref[pw, kh, :, :],
                                    preferred_element_type=f32)
            p1 = acc if p1 is None else jnp.maximum(p1, acc)
    # bias is constant over the pool window and ReLU is monotone -> apply once.
    pooled1 = jnp.maximum(p1 + b1_ref[...], 0.0)            # (14, 224) f32

    # ---- conv2 (3x3, 16->36) + 2x2 max-pool (bias/ReLU finished per row below).
    z = [pooled1[kh:kh + 12, :].astype(cdt) for kh in range(3)]   # (12, 224)
    y2 = []
    for pw in range(2):
        acc = jnp.dot(z[0], t2_ref[pw, 0, :, :], preferred_element_type=f32)
        for kh in range(1, 3):
            acc = acc + jnp.dot(z[kh], t2_ref[pw, kh, :, :],
                                preferred_element_type=f32)
        y2.append(acc)                                        # (12, 216)
    y2w = jnp.maximum(y2[0], y2[1])                           # max over W pool positions

    # ---- fc1 (1296 -> 128): one (1,216)@(216,128) matmul per pooled row,
    # finishing conv2's H pooling / bias / ReLU on the fly.
    h = bf1_ref[...]                                          # (1, 128) f32
    for r in range(6):
        row = jnp.maximum(y2w[2 * r:2 * r + 1, :], y2w[2 * r + 1:2 * r + 2, :])
        row = jnp.maximum(row + b2_ref[...], 0.0)             # pooled2 row r, (1, 216)
        h = h + jnp.dot(row.astype(cdt), w1h_ref[r, :, :],
                        preferred_element_type=f32)
    h = jnp.maximum(h, 0.0)                                   # (1, 128)

    # ---- fc2 (128 -> 10) + ReLU
    out = jnp.dot(h.astype(cdt), w2_ref[...], preferred_element_type=f32) + bf2_ref[...]
    o_ref[...] = jnp.maximum(out, 0.0).astype(o_ref.dtype)


# ------------------------------- wrapper ----------------------------------- #

def net_forward(pp, x_nchw):
    """x_nchw: (N, 3, 32, 32) float32 -> (N, 10) float32."""
    n = x_nchw.shape[0]
    cdt = pp["t1"].dtype
    itemsize = jnp.dtype(cdt).itemsize

    # NCHW -> per-row (H, W*C) layout, rows split by parity so the kernel's
    # pooled (stride-2) row accesses are plain contiguous slices.
    x = jnp.transpose(x_nchw, (0, 2, 3, 1)).reshape(n, 32, 96)
    x_split = x.reshape(n, 16, 2, 96).transpose(0, 2, 1, 3).astype(cdt)

    weight_bytes = sum(int(pp[k].size) * int(pp[k].dtype.itemsize)
                       for k in ("t1", "b1", "t2", "b2", "w1h", "bf1", "w2", "bf2"))
    flops_per_img = (20 * 2 * 14 * 96 * 224      # conv1 banded matmuls
                     + 6 * 2 * 12 * 224 * 216    # conv2 banded matmuls
                     + 6 * 2 * 216 * 128         # fc1
                     + 2 * 128 * 10)             # fc2
    cost = pl.CostEstimate(
        flops=int(n * flops_per_img),
        transcendentals=0,
        bytes_accessed=int(n * 2 * 16 * 96 * itemsize + weight_bytes + n * 10 * 4),
    )

    out = pl.pallas_call(
        _net_kernel,
        out_shape=jax.ShapeDtypeStruct((n, 1, 10), jnp.float32),
        grid=(n,),
        in_specs=[
            pl.BlockSpec((None, 2, 16, 96), lambda i: (i, 0, 0, 0)),   # per-image input
            pl.BlockSpec((2, 5, 96, 224), lambda i: (0, 0, 0, 0)),     # T1 (resident)
            pl.BlockSpec((1, 224), lambda i: (0, 0)),                  # conv1 bias
            pl.BlockSpec((2, 3, 224, 216), lambda i: (0, 0, 0, 0)),    # T2 (resident)
            pl.BlockSpec((1, 216), lambda i: (0, 0)),                  # conv2 bias
            pl.BlockSpec((6, 216, 128), lambda i: (0, 0, 0)),          # fc1 row blocks
            pl.BlockSpec((1, 128), lambda i: (0, 0)),                  # fc1 bias
            pl.BlockSpec((128, 10), lambda i: (0, 0)),                 # fc2
            pl.BlockSpec((1, 10), lambda i: (0, 0)),                   # fc2 bias
        ],
        out_specs=pl.BlockSpec((None, 1, 10), lambda i: (i, 0, 0)),
        compiler_params=pltpu.CompilerParams(
            dimension_semantics=("parallel",),
            vmem_limit_bytes=32 * 1024 * 1024),
        cost_estimate=cost,
    )(x_split, pp["t1"], pp["b1"], pp["t2"], pp["b2"],
      pp["w1h"], pp["bf1"], pp["w2"], pp["bf2"])
    return out.reshape(n, 10)


# ------------------------ one-time parameter prep --------------------------- #

def prepare_params(params, dtype=jnp.bfloat16):
    """Re-layout torch-convention parameters into banded matmul weights (hoisted,
    done once on host with numpy).  `dtype` is the MXU-operand dtype."""
    w1 = np.asarray(params["conv1_w"], np.float32)   # (16, 3, 5, 5)  OIHW
    b1 = np.asarray(params["conv1_b"], np.float32)
    w2 = np.asarray(params["conv2_w"], np.float32)   # (36, 16, 3, 3)
    b2 = np.asarray(params["conv2_b"], np.float32)
    wf1 = np.asarray(params["fc1_w"], np.float32)    # (128, 1296)  (out, in)
    bf1 = np.asarray(params["fc1_b"], np.float32)
    wf2 = np.asarray(params["fc2_w"], np.float32)    # (10, 128)
    bf2 = np.asarray(params["fc2_b"], np.float32)

    # conv1 -> banded (Toeplitz-over-width) matrices, one per (pool-x, kh) tap.
    # T1[pw, kh, wi*3+ci, wp*16+co] = w1[co, ci, kh, wi - (2*wp + pw)]  (else 0)
    T1 = np.zeros((2, 5, 32 * 3, 14 * 16), np.float32)
    for pw in range(2):
        for kh in range(5):
            for kw in range(5):
                for wp in range(14):
                    wi = 2 * wp + pw + kw
                    T1[pw, kh, wi * 3:wi * 3 + 3, wp * 16:(wp + 1) * 16] = w1[:, :, kh, kw].T
    # conv2 -> same trick on the (14,14,16) pooled activation.
    T2 = np.zeros((2, 3, 14 * 16, 6 * 36), np.float32)
    for pw in range(2):
        for kh in range(3):
            for kw in range(3):
                for wp in range(6):
                    wi = 2 * wp + pw + kw
                    T2[pw, kh, wi * 16:(wi + 1) * 16, wp * 36:(wp + 1) * 36] = w2[:, :, kh, kw].T
    # fc1: torch flattens (c, h, w); fold that permutation into per-row (h2)
    # weight blocks whose 216-dim input index matches our (w2, c2) lane layout.
    W1h = wf1.reshape(128, 36, 6, 6).transpose(2, 3, 1, 0).reshape(6, 216, 128)

    return dict(
        t1=jnp.asarray(T1, dtype),
        b1=jnp.asarray(np.tile(b1, 14)[None, :], jnp.float32),
        t2=jnp.asarray(T2, dtype),
        b2=jnp.asarray(np.tile(b2, 6)[None, :], jnp.float32),
        w1h=jnp.asarray(W1h, dtype),
        bf1=jnp.asarray(bf1[None, :], jnp.float32),
        w2=jnp.asarray(wf2.T, dtype),
        bf2=jnp.asarray(bf2[None, :], jnp.float32),
    )


# ------------------------- params & reference check ------------------------- #

def init_params(key):
    ks = jax.random.split(key, 8)

    def u(k, shape, fan_in):
        bound = 1.0 / (fan_in ** 0.5)
        return jax.random.uniform(k, shape, jnp.float32, -bound, bound)

    return dict(
        conv1_w=u(ks[0], (16, 3, 5, 5), 3 * 25),    # torch OIHW
        conv1_b=u(ks[1], (16,), 3 * 25),
        conv2_w=u(ks[2], (36, 16, 3, 3), 16 * 9),
        conv2_b=u(ks[3], (36,), 16 * 9),
        fc1_w=u(ks[4], (128, 1296), 1296),          # torch (out, in)
        fc1_b=u(ks[5], (128,), 1296),
        fc2_w=u(ks[6], (10, 128), 128),
        fc2_b=u(ks[7], (10,), 128),
    )


def reference(params, x):
    dn = ("NCHW", "OIHW", "NCHW")
    y = lax.conv_general_dilated(x, params["conv1_w"], (1, 1), "VALID",
                                 dimension_numbers=dn)
    y = jnp.maximum(y + params["conv1_b"][None, :, None, None], 0.0)
    y = lax.reduce_window(y, -jnp.inf, lax.max, (1, 1, 2, 2), (1, 1, 2, 2), "VALID")
    y = lax.conv_general_dilated(y, params["conv2_w"], (1, 1), "VALID",
                                 dimension_numbers=dn)
    y = jnp.maximum(y + params["conv2_b"][None, :, None, None], 0.0)
    y = lax.reduce_window(y, -jnp.inf, lax.max, (1, 1, 2, 2), (1, 1, 2, 2), "VALID")
    y = y.reshape(y.shape[0], -1)
    y = jnp.maximum(y @ params["fc1_w"].T + params["fc1_b"], 0.0)
    y = jnp.maximum(y @ params["fc2_w"].T + params["fc2_b"], 0.0)
    return y


if __name__ == "__main__":
    key = jax.random.PRNGKey(0)
    k_params, k_x = jax.random.split(key)
    params = init_params(k_params)
    # fc1 size (1296 = 36*6*6) implies a 3x32x32 input (CIFAR-like).
    x = jax.random.normal(k_x, (2, 3, 32, 32), dtype=jnp.float32)

    ref = jax.block_until_ready(reference(params, x))
    net = jax.jit(net_forward)

    # 1) f32 MXU operands: exactness check of the fused / banded restructuring.
    pp_f32 = prepare_params(params, dtype=jnp.float32)
    out_f32 = jax.block_until_ready(net(pp_f32, x))
    assert out_f32.shape == (2, 10), out_f32.shape
    assert jnp.allclose(out_f32, ref, atol=1e-3, rtol=1e-3), \
        float(jnp.max(jnp.abs(out_f32 - ref)))

    # 2) bf16 MXU operands (f32 accumulate / epilogue): the perf path.
    pp_bf16 = prepare_params(params, dtype=jnp.bfloat16)
    out_bf16 = jax.block_until_ready(net(pp_bf16, x))
    assert out_bf16.shape == (2, 10), out_bf16.shape
    assert jnp.allclose(out_bf16, ref, atol=2e-2, rtol=2e-2), \
        float(jnp.max(jnp.abs(out_bf16 - ref)))

    print("KERNEL_OK")
</pallas_src>

<mosaic_0001>
module attributes {stable_mosaic.version = 11 : i64} {
  func.func @_net_kernel(%arg0: i32, %arg1: memref<1x2x16x96xf32, #tpu.memory_space<vmem>>, %arg2: memref<2x5x96x224xf32, #tpu.memory_space<vmem>>, %arg3: memref<1x224xf32, #tpu.memory_space<vmem>>, %arg4: memref<2x3x224x216xf32, #tpu.memory_space<vmem>>, %arg5: memref<1x216xf32, #tpu.memory_space<vmem>>, %arg6: memref<6x216x128xf32, #tpu.memory_space<vmem>>, %arg7: memref<1x128xf32, #tpu.memory_space<vmem>>, %arg8: memref<128x10xf32, #tpu.memory_space<vmem>>, %arg9: memref<1x10xf32, #tpu.memory_space<vmem>>, %arg10: memref<1x1x10xf32, #tpu.memory_space<vmem>>) attributes {dimension_semantics = [#tpu.dimension_semantics<parallel>], iteration_bounds = array<i64: 2>, scalar_prefetch = 0 : i64, scratch_operands = 0 : i64, tpu.core_type = #tpu.core_type<tc>, window_params = [{transform_indices = @transform_0, window_bounds = array<i64: 1, 2, 16, 96>}, {pipeline_mode = #tpu.pipeline_mode<synchronous>, transform_indices = @transform_1, window_bounds = array<i64: 2, 5, 96, 224>}, {pipeline_mode = #tpu.pipeline_mode<synchronous>, transform_indices = @transform_2, window_bounds = array<i64: 1, 224>}, {pipeline_mode = #tpu.pipeline_mode<synchronous>, transform_indices = @transform_3, window_bounds = array<i64: 2, 3, 224, 216>}, {pipeline_mode = #tpu.pipeline_mode<synchronous>, transform_indices = @transform_4, window_bounds = array<i64: 1, 216>}, {pipeline_mode = #tpu.pipeline_mode<synchronous>, transform_indices = @transform_5, window_bounds = array<i64: 6, 216, 128>}, {pipeline_mode = #tpu.pipeline_mode<synchronous>, transform_indices = @transform_6, window_bounds = array<i64: 1, 128>}, {pipeline_mode = #tpu.pipeline_mode<synchronous>, transform_indices = @transform_7, window_bounds = array<i64: 128, 10>}, {pipeline_mode = #tpu.pipeline_mode<synchronous>, transform_indices = @transform_8, window_bounds = array<i64: 1, 10>}, {transform_indices = @transform_9, window_bounds = array<i64: 1, 1, 10>}]} {
    %c0 = arith.constant 0 : index
    %c0_0 = arith.constant 0 : index
    %c0_1 = arith.constant 0 : index
    %c0_2 = arith.constant 0 : index
    %0 = vector.load %arg1[%c0, %c0_0, %c0_1, %c0_2] : memref<1x2x16x96xf32, #tpu.memory_space<vmem>>, vector<1x1x14x96xf32>
    %1 = vector.shape_cast %0 : vector<1x1x14x96xf32> to vector<14x96xf32>
    %c0_3 = arith.constant 0 : index
    %c1 = arith.constant 1 : index
    %c0_4 = arith.constant 0 : index
    %c0_5 = arith.constant 0 : index
    %2 = vector.load %arg1[%c0_3, %c1, %c0_4, %c0_5] : memref<1x2x16x96xf32, #tpu.memory_space<vmem>>, vector<1x1x14x96xf32>
    %3 = vector.shape_cast %2 : vector<1x1x14x96xf32> to vector<14x96xf32>
    %c0_6 = arith.constant 0 : index
    %c0_7 = arith.constant 0 : index
    %c1_8 = arith.constant 1 : index
    %c0_9 = arith.constant 0 : index
    %4 = vector.load %arg1[%c0_6, %c0_7, %c1_8, %c0_9] : memref<1x2x16x96xf32, #tpu.memory_space<vmem>>, vector<1x1x14x96xf32>
    %5 = vector.shape_cast %4 : vector<1x1x14x96xf32> to vector<14x96xf32>
    %c0_10 = arith.constant 0 : index
    %c1_11 = arith.constant 1 : index
    %c1_12 = arith.constant 1 : index
    %c0_13 = arith.constant 0 : index
    %6 = vector.load %arg1[%c0_10, %c1_11, %c1_12, %c0_13] : memref<1x2x16x96xf32, #tpu.memory_space<vmem>>, vector<1x1x14x96xf32>
    %7 = vector.shape_cast %6 : vector<1x1x14x96xf32> to vector<14x96xf32>
    %c0_14 = arith.constant 0 : index
    %c0_15 = arith.constant 0 : index
    %c2 = arith.constant 2 : index
    %c0_16 = arith.constant 0 : index
    %8 = vector.load %arg1[%c0_14, %c0_15, %c2, %c0_16] : memref<1x2x16x96xf32, #tpu.memory_space<vmem>>, vector<1x1x14x96xf32>
    %9 = vector.shape_cast %8 : vector<1x1x14x96xf32> to vector<14x96xf32>
    %c0_17 = arith.constant 0 : index
    %c1_18 = arith.constant 1 : index
    %c2_19 = arith.constant 2 : index
    %c0_20 = arith.constant 0 : index
    %10 = vector.load %arg1[%c0_17, %c1_18, %c2_19, %c0_20] : memref<1x2x16x96xf32, #tpu.memory_space<vmem>>, vector<1x1x14x96xf32>
    %11 = vector.shape_cast %10 : vector<1x1x14x96xf32> to vector<14x96xf32>
    %c0_21 = arith.constant 0 : index
    %c0_22 = arith.constant 0 : index
    %c0_23 = arith.constant 0 : index
    %c0_24 = arith.constant 0 : index
    %12 = vector.load %arg2[%c0_21, %c0_22, %c0_23, %c0_24] : memref<2x5x96x224xf32, #tpu.memory_space<vmem>>, vector<1x1x96x224xf32>
    %13 = vector.shape_cast %12 : vector<1x1x96x224xf32> to vector<96x224xf32>
    %cst = arith.constant dense<0.000000e+00> : vector<14x224xf32>
    %14 = tpu.matmul %1, %13, %cst {dimension_numbers = #tpu.dot_dimension_numbers<[1], [0], [0], [1], [0, 0, 1, 1], [], []>} : vector<14x96xf32>, vector<96x224xf32>, vector<14x224xf32> -> vector<14x224xf32>
    %c0_25 = arith.constant 0 : index
    %c1_26 = arith.constant 1 : index
    %c0_27 = arith.constant 0 : index
    %c0_28 = arith.constant 0 : index
    %15 = vector.load %arg2[%c0_25, %c1_26, %c0_27, %c0_28] : memref<2x5x96x224xf32, #tpu.memory_space<vmem>>, vector<1x1x96x224xf32>
    %16 = vector.shape_cast %15 : vector<1x1x96x224xf32> to vector<96x224xf32>
    %cst_29 = arith.constant dense<0.000000e+00> : vector<14x224xf32>
    %17 = tpu.matmul %3, %16, %cst_29 {dimension_numbers = #tpu.dot_dimension_numbers<[1], [0], [0], [1], [0, 0, 1, 1], [], []>} : vector<14x96xf32>, vector<96x224xf32>, vector<14x224xf32> -> vector<14x224xf32>
    %18 = arith.addf %14, %17 : vector<14x224xf32>
    %c0_30 = arith.constant 0 : index
    %c2_31 = arith.constant 2 : index
    %c0_32 = arith.constant 0 : index
    %c0_33 = arith.constant 0 : index
    %19 = vector.load %arg2[%c0_30, %c2_31, %c0_32, %c0_33] : memref<2x5x96x224xf32, #tpu.memory_space<vmem>>, vector<1x1x96x224xf32>
    %20 = vector.shape_cast %19 : vector<1x1x96x224xf32> to vector<96x224xf32>
    %cst_34 = arith.constant dense<0.000000e+00> : vector<14x224xf32>
    %21 = tpu.matmul %5, %20, %cst_34 {dimension_numbers = #tpu.dot_dimension_numbers<[1], [0], [0], [1], [0, 0, 1, 1], [], []>} : vector<14x96xf32>, vector<96x224xf32>, vector<14x224xf32> -> vector<14x224xf32>
    %22 = arith.addf %18, %21 : vector<14x224xf32>
    %c0_35 = arith.constant 0 : index
    %c3 = arith.constant 3 : index
    %c0_36 = arith.constant 0 : index
    %c0_37 = arith.constant 0 : index
    %23 = vector.load %arg2[%c0_35, %c3, %c0_36, %c0_37] : memref<2x5x96x224xf32, #tpu.memory_space<vmem>>, vector<1x1x96x224xf32>
    %24 = vector.shape_cast %23 : vector<1x1x96x224xf32> to vector<96x224xf32>
    %cst_38 = arith.constant dense<0.000000e+00> : vector<14x224xf32>
    %25 = tpu.matmul %7, %24, %cst_38 {dimension_numbers = #tpu.dot_dimension_numbers<[1], [0], [0], [1], [0, 0, 1, 1], [], []>} : vector<14x96xf32>, vector<96x224xf32>, vector<14x224xf32> -> vector<14x224xf32>
    %26 = arith.addf %22, %25 : vector<14x224xf32>
    %c0_39 = arith.constant 0 : index
    %c4 = arith.constant 4 : index
    %c0_40 = arith.constant 0 : index
    %c0_41 = arith.constant 0 : index
    %27 = vector.load %arg2[%c0_39, %c4, %c0_40, %c0_41] : memref<2x5x96x224xf32, #tpu.memory_space<vmem>>, vector<1x1x96x224xf32>
    %28 = vector.shape_cast %27 : vector<1x1x96x224xf32> to vector<96x224xf32>
    %cst_42 = arith.constant dense<0.000000e+00> : vector<14x224xf32>
    %29 = tpu.matmul %9, %28, %cst_42 {dimension_numbers = #tpu.dot_dimension_numbers<[1], [0], [0], [1], [0, 0, 1, 1], [], []>} : vector<14x96xf32>, vector<96x224xf32>, vector<14x224xf32> -> vector<14x224xf32>
    %30 = arith.addf %26, %29 : vector<14x224xf32>
    %c1_43 = arith.constant 1 : index
    %c0_44 = arith.constant 0 : index
    %c0_45 = arith.constant 0 : index
    %c0_46 = arith.constant 0 : index
    %31 = vector.load %arg2[%c1_43, %c0_44, %c0_45, %c0_46] : memref<2x5x96x224xf32, #tpu.memory_space<vmem>>, vector<1x1x96x224xf32>
    %32 = vector.shape_cast %31 : vector<1x1x96x224xf32> to vector<96x224xf32>
    %cst_47 = arith.constant dense<0.000000e+00> : vector<14x224xf32>
    %33 = tpu.matmul %1, %32, %cst_47 {dimension_numbers = #tpu.dot_dimension_numbers<[1], [0], [0], [1], [0, 0, 1, 1], [], []>} : vector<14x96xf32>, vector<96x224xf32>, vector<14x224xf32> -> vector<14x224xf32>
    %c1_48 = arith.constant 1 : index
    %c1_49 = arith.constant 1 : index
    %c0_50 = arith.constant 0 : index
    %c0_51 = arith.constant 0 : index
    %34 = vector.load %arg2[%c1_48, %c1_49, %c0_50, %c0_51] : memref<2x5x96x224xf32, #tpu.memory_space<vmem>>, vector<1x1x96x224xf32>
    %35 = vector.shape_cast %34 : vector<1x1x96x224xf32> to vector<96x224xf32>
    %cst_52 = arith.constant dense<0.000000e+00> : vector<14x224xf32>
    %36 = tpu.matmul %3, %35, %cst_52 {dimension_numbers = #tpu.dot_dimension_numbers<[1], [0], [0], [1], [0, 0, 1, 1], [], []>} : vector<14x96xf32>, vector<96x224xf32>, vector<14x224xf32> -> vector<14x224xf32>
    %37 = arith.addf %33, %36 : vector<14x224xf32>
    %c1_53 = arith.constant 1 : index
    %c2_54 = arith.constant 2 : index
    %c0_55 = arith.constant 0 : index
    %c0_56 = arith.constant 0 : index
    %38 = vector.load %arg2[%c1_53, %c2_54, %c0_55, %c0_56] : memref<2x5x96x224xf32, #tpu.memory_space<vmem>>, vector<1x1x96x224xf32>
    %39 = vector.shape_cast %38 : vector<1x1x96x224xf32> to vector<96x224xf32>
    %cst_57 = arith.constant dense<0.000000e+00> : vector<14x224xf32>
    %40 = tpu.matmul %5, %39, %cst_57 {dimension_numbers = #tpu.dot_dimension_numbers<[1], [0], [0], [1], [0, 0, 1, 1], [], []>} : vector<14x96xf32>, vector<96x224xf32>, vector<14x224xf32> -> vector<14x224xf32>
    %41 = arith.addf %37, %40 : vector<14x224xf32>
    %c1_58 = arith.constant 1 : index
    %c3_59 = arith.constant 3 : index
    %c0_60 = arith.constant 0 : index
    %c0_61 = arith.constant 0 : index
    %42 = vector.load %arg2[%c1_58, %c3_59, %c0_60, %c0_61] : memref<2x5x96x224xf32, #tpu.memory_space<vmem>>, vector<1x1x96x224xf32>
    %43 = vector.shape_cast %42 : vector<1x1x96x224xf32> to vector<96x224xf32>
    %cst_62 = arith.constant dense<0.000000e+00> : vector<14x224xf32>
    %44 = tpu.matmul %7, %43, %cst_62 {dimension_numbers = #tpu.dot_dimension_numbers<[1], [0], [0], [1], [0, 0, 1, 1], [], []>} : vector<14x96xf32>, vector<96x224xf32>, vector<14x224xf32> -> vector<14x224xf32>
    %45 = arith.addf %41, %44 : vector<14x224xf32>
    %c1_63 = arith.constant 1 : index
    %c4_64 = arith.constant 4 : index
    %c0_65 = arith.constant 0 : index
    %c0_66 = arith.constant 0 : index
    %46 = vector.load %arg2[%c1_63, %c4_64, %c0_65, %c0_66] : memref<2x5x96x224xf32, #tpu.memory_space<vmem>>, vector<1x1x96x224xf32>
    %47 = vector.shape_cast %46 : vector<1x1x96x224xf32> to vector<96x224xf32>
    %cst_67 = arith.constant dense<0.000000e+00> : vector<14x224xf32>
    %48 = tpu.matmul %9, %47, %cst_67 {dimension_numbers = #tpu.dot_dimension_numbers<[1], [0], [0], [1], [0, 0, 1, 1], [], []>} : vector<14x96xf32>, vector<96x224xf32>, vector<14x224xf32> -> vector<14x224xf32>
    %49 = arith.addf %45, %48 : vector<14x224xf32>
    %50 = arith.maximumf %30, %49 : vector<14x224xf32>
    %c0_68 = arith.constant 0 : index
    %c0_69 = arith.constant 0 : index
    %c0_70 = arith.constant 0 : index
    %c0_71 = arith.constant 0 : index
    %51 = vector.load %arg2[%c0_68, %c0_69, %c0_70, %c0_71] : memref<2x5x96x224xf32, #tpu.memory_space<vmem>>, vector<1x1x96x224xf32>
    %52 = vector.shape_cast %51 : vector<1x1x96x224xf32> to vector<96x224xf32>
    %cst_72 = arith.constant dense<0.000000e+00> : vector<14x224xf32>
    %53 = tpu.matmul %3, %52, %cst_72 {dimension_numbers = #tpu.dot_dimension_numbers<[1], [0], [0], [1], [0, 0, 1, 1], [], []>} : vector<14x96xf32>, vector<96x224xf32>, vector<14x224xf32> -> vector<14x224xf32>
    %c0_73 = arith.constant 0 : index
    %c1_74 = arith.constant 1 : index
    %c0_75 = arith.constant 0 : index
    %c0_76 = arith.constant 0 : index
    %54 = vector.load %arg2[%c0_73, %c1_74, %c0_75, %c0_76] : memref<2x5x96x224xf32, #tpu.memory_space<vmem>>, vector<1x1x96x224xf32>
    %55 = vector.shape_cast %54 : vector<1x1x96x224xf32> to vector<96x224xf32>
    %cst_77 = arith.constant dense<0.000000e+00> : vector<14x224xf32>
    %56 = tpu.matmul %5, %55, %cst_77 {dimension_numbers = #tpu.dot_dimension_numbers<[1], [0], [0], [1], [0, 0, 1, 1], [], []>} : vector<14x96xf32>, vector<96x224xf32>, vector<14x224xf32> -> vector<14x224xf32>
    %57 = arith.addf %53, %56 : vector<14x224xf32>
    %c0_78 = arith.constant 0 : index
    %c2_79 = arith.constant 2 : index
    %c0_80 = arith.constant 0 : index
    %c0_81 = arith.constant 0 : index
    %58 = vector.load %arg2[%c0_78, %c2_79, %c0_80, %c0_81] : memref<2x5x96x224xf32, #tpu.memory_space<vmem>>, vector<1x1x96x224xf32>
    %59 = vector.shape_cast %58 : vector<1x1x96x224xf32> to vector<96x224xf32>
    %cst_82 = arith.constant dense<0.000000e+00> : vector<14x224xf32>
    %60 = tpu.matmul %7, %59, %cst_82 {dimension_numbers = #tpu.dot_dimension_numbers<[1], [0], [0], [1], [0, 0, 1, 1], [], []>} : vector<14x96xf32>, vector<96x224xf32>, vector<14x224xf32> -> vector<14x224xf32>
    %61 = arith.addf %57, %60 : vector<14x224xf32>
    %c0_83 = arith.constant 0 : index
    %c3_84 = arith.constant 3 : index
    %c0_85 = arith.constant 0 : index
    %c0_86 = arith.constant 0 : index
    %62 = vector.load %arg2[%c0_83, %c3_84, %c0_85, %c0_86] : memref<2x5x96x224xf32, #tpu.memory_space<vmem>>, vector<1x1x96x224xf32>
    %63 = vector.shape_cast %62 : vector<1x1x96x224xf32> to vector<96x224xf32>
    %cst_87 = arith.constant dense<0.000000e+00> : vector<14x224xf32>
    %64 = tpu.matmul %9, %63, %cst_87 {dimension_numbers = #tpu.dot_dimension_numbers<[1], [0], [0], [1], [0, 0, 1, 1], [], []>} : vector<14x96xf32>, vector<96x224xf32>, vector<14x224xf32> -> vector<14x224xf32>
    %65 = arith.addf %61, %64 : vector<14x224xf32>
    %c0_88 = arith.constant 0 : index
    %c4_89 = arith.constant 4 : index
    %c0_90 = arith.constant 0 : index
    %c0_91 = arith.constant 0 : index
    %66 = vector.load %arg2[%c0_88, %c4_89, %c0_90, %c0_91] : memref<2x5x96x224xf32, #tpu.memory_space<vmem>>, vector<1x1x96x224xf32>
    %67 = vector.shape_cast %66 : vector<1x1x96x224xf32> to vector<96x224xf32>
    %cst_92 = arith.constant dense<0.000000e+00> : vector<14x224xf32>
    %68 = tpu.matmul %11, %67, %cst_92 {dimension_numbers = #tpu.dot_dimension_numbers<[1], [0], [0], [1], [0, 0, 1, 1], [], []>} : vector<14x96xf32>, vector<96x224xf32>, vector<14x224xf32> -> vector<14x224xf32>
    %69 = arith.addf %65, %68 : vector<14x224xf32>
    %70 = arith.maximumf %50, %69 : vector<14x224xf32>
    %c1_93 = arith.constant 1 : index
    %c0_94 = arith.constant 0 : index
    %c0_95 = arith.constant 0 : index
    %c0_96 = arith.constant 0 : index
    %71 = vector.load %arg2[%c1_93, %c0_94, %c0_95, %c0_96] : memref<2x5x96x224xf32, #tpu.memory_space<vmem>>, vector<1x1x96x224xf32>
    %72 = vector.shape_cast %71 : vector<1x1x96x224xf32> to vector<96x224xf32>
    %cst_97 = arith.constant dense<0.000000e+00> : vector<14x224xf32>
    %73 = tpu.matmul %3, %72, %cst_97 {dimension_numbers = #tpu.dot_dimension_numbers<[1], [0], [0], [1], [0, 0, 1, 1], [], []>} : vector<14x96xf32>, vector<96x224xf32>, vector<14x224xf32> -> vector<14x224xf32>
    %c1_98 = arith.constant 1 : index
    %c1_99 = arith.constant 1 : index
    %c0_100 = arith.constant 0 : index
    %c0_101 = arith.constant 0 : index
    %74 = vector.load %arg2[%c1_98, %c1_99, %c0_100, %c0_101] : memref<2x5x96x224xf32, #tpu.memory_space<vmem>>, vector<1x1x96x224xf32>
    %75 = vector.shape_cast %74 : vector<1x1x96x224xf32> to vector<96x224xf32>
    %cst_102 = arith.constant dense<0.000000e+00> : vector<14x224xf32>
    %76 = tpu.matmul %5, %75, %cst_102 {dimension_numbers = #tpu.dot_dimension_numbers<[1], [0], [0], [1], [0, 0, 1, 1], [], []>} : vector<14x96xf32>, vector<96x224xf32>, vector<14x224xf32> -> vector<14x224xf32>
    %77 = arith.addf %73, %76 : vector<14x224xf32>
    %c1_103 = arith.constant 1 : index
    %c2_104 = arith.constant 2 : index
    %c0_105 = arith.constant 0 : index
    %c0_106 = arith.constant 0 : index
    %78 = vector.load %arg2[%c1_103, %c2_104, %c0_105, %c0_106] : memref<2x5x96x224xf32, #tpu.memory_space<vmem>>, vector<1x1x96x224xf32>
    %79 = vector.shape_cast %78 : vector<1x1x96x224xf32> to vector<96x224xf32>
    %cst_107 = arith.constant dense<0.000000e+00> : vector<14x224xf32>
    %80 = tpu.matmul %7, %79, %cst_107 {dimension_numbers = #tpu.dot_dimension_numbers<[1], [0], [0], [1], [0, 0, 1, 1], [], []>} : vector<14x96xf32>, vector<96x224xf32>, vector<14x224xf32> -> vector<14x224xf32>
    %81 = arith.addf %77, %80 : vector<14x224xf32>
    %c1_108 = arith.constant 1 : index
    %c3_109 = arith.constant 3 : index
    %c0_110 = arith.constant 0 : index
    %c0_111 = arith.constant 0 : index
    %82 = vector.load %arg2[%c1_108, %c3_109, %c0_110, %c0_111] : memref<2x5x96x224xf32, #tpu.memory_space<vmem>>, vector<1x1x96x224xf32>
    %83 = vector.shape_cast %82 : vector<1x1x96x224xf32> to vector<96x224xf32>
    %cst_112 = arith.constant dense<0.000000e+00> : vector<14x224xf32>
    %84 = tpu.matmul %9, %83, %cst_112 {dimension_numbers = #tpu.dot_dimension_numbers<[1], [0], [0], [1], [0, 0, 1, 1], [], []>} : vector<14x96xf32>, vector<96x224xf32>, vector<14x224xf32> -> vector<14x224xf32>
    %85 = arith.addf %81, %84 : vector<14x224xf32>
    %c1_113 = arith.constant 1 : index
    %c4_114 = arith.constant 4 : index
    %c0_115 = arith.constant 0 : index
    %c0_116 = arith.constant 0 : index
    %86 = vector.load %arg2[%c1_113, %c4_114, %c0_115, %c0_116] : memref<2x5x96x224xf32, #tpu.memory_space<vmem>>, vector<1x1x96x224xf32>
    %87 = vector.shape_cast %86 : vector<1x1x96x224xf32> to vector<96x224xf32>
    %cst_117 = arith.constant dense<0.000000e+00> : vector<14x224xf32>
    %88 = tpu.matmul %11, %87, %cst_117 {dimension_numbers = #tpu.dot_dimension_numbers<[1], [0], [0], [1], [0, 0, 1, 1], [], []>} : vector<14x96xf32>, vector<96x224xf32>, vector<14x224xf32> -> vector<14x224xf32>
    %89 = arith.addf %85, %88 : vector<14x224xf32>
    %90 = arith.maximumf %70, %89 : vector<14x224xf32>
    %c0_118 = arith.constant 0 : index
    %c0_119 = arith.constant 0 : index
    %91 = vector.load %arg3[%c0_118, %c0_119] : memref<1x224xf32, #tpu.memory_space<vmem>>, vector<1x224xf32>
    %92 = vector.broadcast %91 : vector<1x224xf32> to vector<14x224xf32>
    %93 = arith.addf %90, %92 : vector<14x224xf32>
    %cst_120 = arith.constant 0.000000e+00 : f32
    %94 = vector.broadcast %cst_120 : f32 to vector<14x224xf32>
    %95 = arith.maximumf %93, %94 : vector<14x224xf32>
    %96 = vector.extract_strided_slice %95 {offsets = [0, 0], sizes = [12, 224], strides = [1, 1]} : vector<14x224xf32> to vector<12x224xf32>
    %97 = vector.extract_strided_slice %95 {offsets = [1, 0], sizes = [12, 224], strides = [1, 1]} : vector<14x224xf32> to vector<12x224xf32>
    %98 = vector.extract_strided_slice %95 {offsets = [2, 0], sizes = [12, 224], strides = [1, 1]} : vector<14x224xf32> to vector<12x224xf32>
    %c0_121 = arith.constant 0 : index
    %c0_122 = arith.constant 0 : index
    %c0_123 = arith.constant 0 : index
    %c0_124 = arith.constant 0 : index
    %99 = vector.load %arg4[%c0_121, %c0_122, %c0_123, %c0_124] : memref<2x3x224x216xf32, #tpu.memory_space<vmem>>, vector<1x1x224x216xf32>
    %100 = vector.shape_cast %99 : vector<1x1x224x216xf32> to vector<224x216xf32>
    %cst_125 = arith.constant dense<0.000000e+00> : vector<12x216xf32>
    %101 = tpu.matmul %96, %100, %cst_125 {dimension_numbers = #tpu.dot_dimension_numbers<[1], [0], [0], [1], [0, 0, 1, 1], [], []>} : vector<12x224xf32>, vector<224x216xf32>, vector<12x216xf32> -> vector<12x216xf32>
    %c0_126 = arith.constant 0 : index
    %c1_127 = arith.constant 1 : index
    %c0_128 = arith.constant 0 : index
    %c0_129 = arith.constant 0 : index
    %102 = vector.load %arg4[%c0_126, %c1_127, %c0_128, %c0_129] : memref<2x3x224x216xf32, #tpu.memory_space<vmem>>, vector<1x1x224x216xf32>
    %103 = vector.shape_cast %102 : vector<1x1x224x216xf32> to vector<224x216xf32>
    %cst_130 = arith.constant dense<0.000000e+00> : vector<12x216xf32>
    %104 = tpu.matmul %97, %103, %cst_130 {dimension_numbers = #tpu.dot_dimension_numbers<[1], [0], [0], [1], [0, 0, 1, 1], [], []>} : vector<12x224xf32>, vector<224x216xf32>, vector<12x216xf32> -> vector<12x216xf32>
    %105 = arith.addf %101, %104 : vector<12x216xf32>
    %c0_131 = arith.constant 0 : index
    %c2_132 = arith.constant 2 : index
    %c0_133 = arith.constant 0 : index
    %c0_134 = arith.constant 0 : index
    %106 = vector.load %arg4[%c0_131, %c2_132, %c0_133, %c0_134] : memref<2x3x224x216xf32, #tpu.memory_space<vmem>>, vector<1x1x224x216xf32>
    %107 = vector.shape_cast %106 : vector<1x1x224x216xf32> to vector<224x216xf32>
    %cst_135 = arith.constant dense<0.000000e+00> : vector<12x216xf32>
    %108 = tpu.matmul %98, %107, %cst_135 {dimension_numbers = #tpu.dot_dimension_numbers<[1], [0], [0], [1], [0, 0, 1, 1], [], []>} : vector<12x224xf32>, vector<224x216xf32>, vector<12x216xf32> -> vector<12x216xf32>
    %109 = arith.addf %105, %108 : vector<12x216xf32>
    %c1_136 = arith.constant 1 : index
    %c0_137 = arith.constant 0 : index
    %c0_138 = arith.constant 0 : index
    %c0_139 = arith.constant 0 : index
    %110 = vector.load %arg4[%c1_136, %c0_137, %c0_138, %c0_139] : memref<2x3x224x216xf32, #tpu.memory_space<vmem>>, vector<1x1x224x216xf32>
    %111 = vector.shape_cast %110 : vector<1x1x224x216xf32> to vector<224x216xf32>
    %cst_140 = arith.constant dense<0.000000e+00> : vector<12x216xf32>
    %112 = tpu.matmul %96, %111, %cst_140 {dimension_numbers = #tpu.dot_dimension_numbers<[1], [0], [0], [1], [0, 0, 1, 1], [], []>} : vector<12x224xf32>, vector<224x216xf32>, vector<12x216xf32> -> vector<12x216xf32>
    %c1_141 = arith.constant 1 : index
    %c1_142 = arith.constant 1 : index
    %c0_143 = arith.constant 0 : index
    %c0_144 = arith.constant 0 : index
    %113 = vector.load %arg4[%c1_141, %c1_142, %c0_143, %c0_144] : memref<2x3x224x216xf32, #tpu.memory_space<vmem>>, vector<1x1x224x216xf32>
    %114 = vector.shape_cast %113 : vector<1x1x224x216xf32> to vector<224x216xf32>
    %cst_145 = arith.constant dense<0.000000e+00> : vector<12x216xf32>
    %115 = tpu.matmul %97, %114, %cst_145 {dimension_numbers = #tpu.dot_dimension_numbers<[1], [0], [0], [1], [0, 0, 1, 1], [], []>} : vector<12x224xf32>, vector<224x216xf32>, vector<12x216xf32> -> vector<12x216xf32>
    %116 = arith.addf %112, %115 : vector<12x216xf32>
    %c1_146 = arith.constant 1 : index
    %c2_147 = arith.constant 2 : index
    %c0_148 = arith.constant 0 : index
    %c0_149 = arith.constant 0 : index
    %117 = vector.load %arg4[%c1_146, %c2_147, %c0_148, %c0_149] : memref<2x3x224x216xf32, #tpu.memory_space<vmem>>, vector<1x1x224x216xf32>
    %118 = vector.shape_cast %117 : vector<1x1x224x216xf32> to vector<224x216xf32>
    %cst_150 = arith.constant dense<0.000000e+00> : vector<12x216xf32>
    %119 = tpu.matmul %98, %118, %cst_150 {dimension_numbers = #tpu.dot_dimension_numbers<[1], [0], [0], [1], [0, 0, 1, 1], [], []>} : vector<12x224xf32>, vector<224x216xf32>, vector<12x216xf32> -> vector<12x216xf32>
    %120 = arith.addf %116, %119 : vector<12x216xf32>
    %121 = arith.maximumf %109, %120 : vector<12x216xf32>
    %c0_151 = arith.constant 0 : index
    %c0_152 = arith.constant 0 : index
    %122 = vector.load %arg7[%c0_151, %c0_152] : memref<1x128xf32, #tpu.memory_space<vmem>>, vector<1x128xf32>
    %123 = vector.extract_strided_slice %121 {offsets = [0, 0], sizes = [1, 216], strides = [1, 1]} : vector<12x216xf32> to vector<1x216xf32>
    %124 = vector.extract_strided_slice %121 {offsets = [1, 0], sizes = [1, 216], strides = [1, 1]} : vector<12x216xf32> to vector<1x216xf32>
    %125 = arith.maximumf %123, %124 : vector<1x216xf32>
    %c0_153 = arith.constant 0 : index
    %c0_154 = arith.constant 0 : index
    %126 = vector.load %arg5[%c0_153, %c0_154] : memref<1x216xf32, #tpu.memory_space<vmem>>, vector<1x216xf32>
    %127 = arith.addf %125, %126 : vector<1x216xf32>
    %cst_155 = arith.constant 0.000000e+00 : f32
    %128 = vector.broadcast %cst_155 : f32 to vector<1x216xf32>
    %129 = arith.maximumf %127, %128 : vector<1x216xf32>
    %c0_156 = arith.constant 0 : index
    %c0_157 = arith.constant 0 : index
    %c0_158 = arith.constant 0 : index
    %130 = vector.load %arg6[%c0_156, %c0_157, %c0_158] : memref<6x216x128xf32, #tpu.memory_space<vmem>>, vector<1x216x128xf32>
    %131 = vector.shape_cast %130 : vector<1x216x128xf32> to vector<216x128xf32>
    %cst_159 = arith.constant dense<0.000000e+00> : vector<1x128xf32>
    %132 = tpu.matmul %129, %131, %cst_159 {dimension_numbers = #tpu.dot_dimension_numbers<[1], [0], [0], [1], [0, 0, 1, 1], [], []>} : vector<1x216xf32>, vector<216x128xf32>, vector<1x128xf32> -> vector<1x128xf32>
    %133 = arith.addf %122, %132 : vector<1x128xf32>
    %134 = vector.extract_strided_slice %121 {offsets = [2, 0], sizes = [1, 216], strides = [1, 1]} : vector<12x216xf32> to vector<1x216xf32>
    %135 = vector.extract_strided_slice %121 {offsets = [3, 0], sizes = [1, 216], strides = [1, 1]} : vector<12x216xf32> to vector<1x216xf32>
    %136 = arith.maximumf %134, %135 : vector<1x216xf32>
    %c0_160 = arith.constant 0 : index
    %c0_161 = arith.constant 0 : index
    %137 = vector.load %arg5[%c0_160, %c0_161] : memref<1x216xf32, #tpu.memory_space<vmem>>, vector<1x216xf32>
    %138 = arith.addf %136, %137 : vector<1x216xf32>
    %cst_162 = arith.constant 0.000000e+00 : f32
    %139 = vector.broadcast %cst_162 : f32 to vector<1x216xf32>
    %140 = arith.maximumf %138, %139 : vector<1x216xf32>
    %c1_163 = arith.constant 1 : index
    %c0_164 = arith.constant 0 : index
    %c0_165 = arith.constant 0 : index
    %141 = vector.load %arg6[%c1_163, %c0_164, %c0_165] : memref<6x216x128xf32, #tpu.memory_space<vmem>>, vector<1x216x128xf32>
    %142 = vector.shape_cast %141 : vector<1x216x128xf32> to vector<216x128xf32>
    %cst_166 = arith.constant dense<0.000000e+00> : vector<1x128xf32>
    %143 = tpu.matmul %140, %142, %cst_166 {dimension_numbers = #tpu.dot_dimension_numbers<[1], [0], [0], [1], [0, 0, 1, 1], [], []>} : vector<1x216xf32>, vector<216x128xf32>, vector<1x128xf32> -> vector<1x128xf32>
    %144 = arith.addf %133, %143 : vector<1x128xf32>
    %145 = vector.extract_strided_slice %121 {offsets = [4, 0], sizes = [1, 216], strides = [1, 1]} : vector<12x216xf32> to vector<1x216xf32>
    %146 = vector.extract_strided_slice %121 {offsets = [5, 0], sizes = [1, 216], strides = [1, 1]} : vector<12x216xf32> to vector<1x216xf32>
    %147 = arith.maximumf %145, %146 : vector<1x216xf32>
    %c0_167 = arith.constant 0 : index
    %c0_168 = arith.constant 0 : index
    %148 = vector.load %arg5[%c0_167, %c0_168] : memref<1x216xf32, #tpu.memory_space<vmem>>, vector<1x216xf32>
    %149 = arith.addf %147, %148 : vector<1x216xf32>
    %cst_169 = arith.constant 0.000000e+00 : f32
    %150 = vector.broadcast %cst_169 : f32 to vector<1x216xf32>
    %151 = arith.maximumf %149, %150 : vector<1x216xf32>
    %c2_170 = arith.constant 2 : index
    %c0_171 = arith.constant 0 : index
    %c0_172 = arith.constant 0 : index
    %152 = vector.load %arg6[%c2_170, %c0_171, %c0_172] : memref<6x216x128xf32, #tpu.memory_space<vmem>>, vector<1x216x128xf32>
    %153 = vector.shape_cast %152 : vector<1x216x128xf32> to vector<216x128xf32>
    %cst_173 = arith.constant dense<0.000000e+00> : vector<1x128xf32>
    %154 = tpu.matmul %151, %153, %cst_173 {dimension_numbers = #tpu.dot_dimension_numbers<[1], [0], [0], [1], [0, 0, 1, 1], [], []>} : vector<1x216xf32>, vector<216x128xf32>, vector<1x128xf32> -> vector<1x128xf32>
    %155 = arith.addf %144, %154 : vector<1x128xf32>
    %156 = vector.extract_strided_slice %121 {offsets = [6, 0], sizes = [1, 216], strides = [1, 1]} : vector<12x216xf32> to vector<1x216xf32>
    %157 = vector.extract_strided_slice %121 {offsets = [7, 0], sizes = [1, 216], strides = [1, 1]} : vector<12x216xf32> to vector<1x216xf32>
    %158 = arith.maximumf %156, %157 : vector<1x216xf32>
    %c0_174 = arith.constant 0 : index
    %c0_175 = arith.constant 0 : index
    %159 = vector.load %arg5[%c0_174, %c0_175] : memref<1x216xf32, #tpu.memory_space<vmem>>, vector<1x216xf32>
    %160 = arith.addf %158, %159 : vector<1x216xf32>
    %cst_176 = arith.constant 0.000000e+00 : f32
    %161 = vector.broadcast %cst_176 : f32 to vector<1x216xf32>
    %162 = arith.maximumf %160, %161 : vector<1x216xf32>
    %c3_177 = arith.constant 3 : index
    %c0_178 = arith.constant 0 : index
    %c0_179 = arith.constant 0 : index
    %163 = vector.load %arg6[%c3_177, %c0_178, %c0_179] : memref<6x216x128xf32, #tpu.memory_space<vmem>>, vector<1x216x128xf32>
    %164 = vector.shape_cast %163 : vector<1x216x128xf32> to vector<216x128xf32>
    %cst_180 = arith.constant dense<0.000000e+00> : vector<1x128xf32>
    %165 = tpu.matmul %162, %164, %cst_180 {dimension_numbers = #tpu.dot_dimension_numbers<[1], [0], [0], [1], [0, 0, 1, 1], [], []>} : vector<1x216xf32>, vector<216x128xf32>, vector<1x128xf32> -> vector<1x128xf32>
    %166 = arith.addf %155, %165 : vector<1x128xf32>
    %167 = vector.extract_strided_slice %121 {offsets = [8, 0], sizes = [1, 216], strides = [1, 1]} : vector<12x216xf32> to vector<1x216xf32>
    %168 = vector.extract_strided_slice %121 {offsets = [9, 0], sizes = [1, 216], strides = [1, 1]} : vector<12x216xf32> to vector<1x216xf32>
    %169 = arith.maximumf %167, %168 : vector<1x216xf32>
    %c0_181 = arith.constant 0 : index
    %c0_182 = arith.constant 0 : index
    %170 = vector.load %arg5[%c0_181, %c0_182] : memref<1x216xf32, #tpu.memory_space<vmem>>, vector<1x216xf32>
    %171 = arith.addf %169, %170 : vector<1x216xf32>
    %cst_183 = arith.constant 0.000000e+00 : f32
    %172 = vector.broadcast %cst_183 : f32 to vector<1x216xf32>
    %173 = arith.maximumf %171, %172 : vector<1x216xf32>
    %c4_184 = arith.constant 4 : index
    %c0_185 = arith.constant 0 : index
    %c0_186 = arith.constant 0 : index
    %174 = vector.load %arg6[%c4_184, %c0_185, %c0_186] : memref<6x216x128xf32, #tpu.memory_space<vmem>>, vector<1x216x128xf32>
    %175 = vector.shape_cast %174 : vector<1x216x128xf32> to vector<216x128xf32>
    %cst_187 = arith.constant dense<0.000000e+00> : vector<1x128xf32>
    %176 = tpu.matmul %173, %175, %cst_187 {dimension_numbers = #tpu.dot_dimension_numbers<[1], [0], [0], [1], [0, 0, 1, 1], [], []>} : vector<1x216xf32>, vector<216x128xf32>, vector<1x128xf32> -> vector<1x128xf32>
    %177 = arith.addf %166, %176 : vector<1x128xf32>
    %178 = vector.extract_strided_slice %121 {offsets = [10, 0], sizes = [1, 216], strides = [1, 1]} : vector<12x216xf32> to vector<1x216xf32>
    %179 = vector.extract_strided_slice %121 {offsets = [11, 0], sizes = [1, 216], strides = [1, 1]} : vector<12x216xf32> to vector<1x216xf32>
    %180 = arith.maximumf %178, %179 : vector<1x216xf32>
    %c0_188 = arith.constant 0 : index
    %c0_189 = arith.constant 0 : index
    %181 = vector.load %arg5[%c0_188, %c0_189] : memref<1x216xf32, #tpu.memory_space<vmem>>, vector<1x216xf32>
    %182 = arith.addf %180, %181 : vector<1x216xf32>
    %cst_190 = arith.constant 0.000000e+00 : f32
    %183 = vector.broadcast %cst_190 : f32 to vector<1x216xf32>
    %184 = arith.maximumf %182, %183 : vector<1x216xf32>
    %c5 = arith.constant 5 : index
    %c0_191 = arith.constant 0 : index
    %c0_192 = arith.constant 0 : index
    %185 = vector.load %arg6[%c5, %c0_191, %c0_192] : memref<6x216x128xf32, #tpu.memory_space<vmem>>, vector<1x216x128xf32>
    %186 = vector.shape_cast %185 : vector<1x216x128xf32> to vector<216x128xf32>
    %cst_193 = arith.constant dense<0.000000e+00> : vector<1x128xf32>
    %187 = tpu.matmul %184, %186, %cst_193 {dimension_numbers = #tpu.dot_dimension_numbers<[1], [0], [0], [1], [0, 0, 1, 1], [], []>} : vector<1x216xf32>, vector<216x128xf32>, vector<1x128xf32> -> vector<1x128xf32>
    %188 = arith.addf %177, %187 : vector<1x128xf32>
    %cst_194 = arith.constant 0.000000e+00 : f32
    %189 = vector.broadcast %cst_194 : f32 to vector<1x128xf32>
    %190 = arith.maximumf %188, %189 : vector<1x128xf32>
    %c0_195 = arith.constant 0 : index
    %c0_196 = arith.constant 0 : index
    %191 = vector.load %arg8[%c0_195, %c0_196] : memref<128x10xf32, #tpu.memory_space<vmem>>, vector<128x10xf32>
    %cst_197 = arith.constant dense<0.000000e+00> : vector<1x10xf32>
    %192 = tpu.matmul %190, %191, %cst_197 {dimension_numbers = #tpu.dot_dimension_numbers<[1], [0], [0], [1], [0, 0, 1, 1], [], []>} : vector<1x128xf32>, vector<128x10xf32>, vector<1x10xf32> -> vector<1x10xf32>
    %c0_198 = arith.constant 0 : index
    %c0_199 = arith.constant 0 : index
    %193 = vector.load %arg9[%c0_198, %c0_199] : memref<1x10xf32, #tpu.memory_space<vmem>>, vector<1x10xf32>
    %194 = arith.addf %192, %193 : vector<1x10xf32>
    %cst_200 = arith.constant 0.000000e+00 : f32
    %195 = vector.broadcast %cst_200 : f32 to vector<1x10xf32>
    %196 = arith.maximumf %194, %195 : vector<1x10xf32>
    %c0_201 = arith.constant 0 : index
    %c0_202 = arith.constant 0 : index
    %c0_203 = arith.constant 0 : index
    %197 = vector.load %arg10[%c0_201, %c0_202, %c0_203] : memref<1x1x10xf32, #tpu.memory_space<vmem>>, vector<1x1x10xf32>
    %198 = vector.shape_cast %197 : vector<1x1x10xf32> to vector<1x10xf32>
    %199 = vector.shape_cast %196 : vector<1x10xf32> to vector<1x1x10xf32>
    tpu.vector_store %arg10[%c0_201, %c0_202, %c0_203], %199 {strides = array<i32>} : memref<1x1x10xf32, #tpu.memory_space<vmem>>, vector<1x1x10xf32>,
    return
  }
  func.func @transform_0(%arg0: i32) -> (i32, i32, i32, i32) {
    %c0_i32 = arith.constant 0 : i32
    %c0_i32_0 = arith.constant 0 : i32
    %c0_i32_1 = arith.constant 0 : i32
    %c0_i32_2 = arith.constant 0 : i32
    return %arg0, %c0_i32, %c0_i32_0, %c0_i32_1 : i32, i32, i32, i32
  }
  func.func @transform_1(%arg0: i32) -> (i32, i32, i32, i32) {
    %c0_i32 = arith.constant 0 : i32
    %c0_i32_0 = arith.constant 0 : i32
    %c0_i32_1 = arith.constant 0 : i32
    %c0_i32_2 = arith.constant 0 : i32
    %c0_i32_3 = arith.constant 0 : i32
    return %c0_i32, %c0_i32_0, %c0_i32_1, %c0_i32_2 : i32, i32, i32, i32
  }
  func.func @transform_2(%arg0: i32) -> (i32, i32) {
    %c0_i32 = arith.constant 0 : i32
    %c0_i32_0 = arith.constant 0 : i32
    %c0_i32_1 = arith.constant 0 : i32
    return %c0_i32, %c0_i32_0 : i32, i32
  }
  func.func @transform_3(%arg0: i32) -> (i32, i32, i32, i32) {
    %c0_i32 = arith.constant 0 : i32
    %c0_i32_0 = arith.constant 0 : i32
    %c0_i32_1 = arith.constant 0 : i32
    %c0_i32_2 = arith.constant 0 : i32
    %c0_i32_3 = arith.constant 0 : i32
    return %c0_i32, %c0_i32_0, %c0_i32_1, %c0_i32_2 : i32, i32, i32, i32
  }
  func.func @transform_4(%arg0: i32) -> (i32, i32) {
    %c0_i32 = arith.constant 0 : i32
    %c0_i32_0 = arith.constant 0 : i32
    %c0_i32_1 = arith.constant 0 : i32
    return %c0_i32, %c0_i32_0 : i32, i32
  }
  func.func @transform_5(%arg0: i32) -> (i32, i32, i32) {
    %c0_i32 = arith.constant 0 : i32
    %c0_i32_0 = arith.constant 0 : i32
    %c0_i32_1 = arith.constant 0 : i32
    %c0_i32_2 = arith.constant 0 : i32
    return %c0_i32, %c0_i32_0, %c0_i32_1 : i32, i32, i32
  }
  func.func @transform_6(%arg0: i32) -> (i32, i32) {
    %c0_i32 = arith.constant 0 : i32
    %c0_i32_0 = arith.constant 0 : i32
    %c0_i32_1 = arith.constant 0 : i32
    return %c0_i32, %c0_i32_0 : i32, i32
  }
  func.func @transform_7(%arg0: i32) -> (i32, i32) {
    %c0_i32 = arith.constant 0 : i32
    %c0_i32_0 = arith.constant 0 : i32
    %c0_i32_1 = arith.constant 0 : i32
    return %c0_i32, %c0_i32_0 : i32, i32
  }
  func.func @transform_8(%arg0: i32) -> (i32, i32) {
    %c0_i32 = arith.constant 0 : i32
    %c0_i32_0 = arith.constant 0 : i32
    %c0_i32_1 = arith.constant 0 : i32
    return %c0_i32, %c0_i32_0 : i32, i32
  }
  func.func @transform_9(%arg0: i32) -> (i32, i32, i32) {
    %c0_i32 = arith.constant 0 : i32
    %c0_i32_0 = arith.constant 0 : i32
    %c0_i32_1 = arith.constant 0 : i32
    return %arg0, %c0_i32, %c0_i32_0 : i32, i32, i32
  }
}

</mosaic_0001>

<llo_original>
// kernel: net_forward.1
$region0: #{net_forward.1}
  #allocation0 [shape = 'u32[]', space=smem, size = 0x4, offset = 0x4, fixed_abs, tag = 'smem constant byte address 0x4 - core index']
  #allocation1 [shape = 'u32[144,128]{1,0:T(1,128)}', space=vmem, size = 0x12000, scoped, tag = 'internal scratch']
  %s0 = inlined_call_operand.vmem [shape: f32[2,2,16,96], index: 0, kind: input, shape index: {}]
  %s1 = inlined_call_operand.vmem [shape: f32[2,5,96,224], index: 1, kind: input, shape index: {}]
  %s2 = inlined_call_operand.vmem [shape: f32[1,224], index: 2, kind: input, shape index: {}]
  %s3 = inlined_call_operand.vmem [shape: f32[2,3,224,216], index: 3, kind: input, shape index: {}]
  %s4 = inlined_call_operand.vmem [shape: f32[1,216], index: 4, kind: input, shape index: {}]
  %s5 = inlined_call_operand.vmem [shape: f32[6,216,128], index: 5, kind: input, shape index: {}]
  %s6 = inlined_call_operand.vmem [shape: f32[1,128], index: 6, kind: input, shape index: {}]
  %s7 = inlined_call_operand.vmem [shape: f32[128,10], index: 7, kind: input, shape index: {}]
  %s8 = inlined_call_operand.vmem [shape: f32[1,10], index: 8, kind: input, shape index: {}]
  %s9 = inlined_call_operand.hbm [shape: f32[2,1,10], index: 9, kind: output, shape index: {}]
  %s10 = sld [smem:[#allocation0]]
  $region69: #{net_forward.1} parent=0
    _
  %s12 = ssub.s32 1, %s10
  %s13 = scalar_select 0, %s12, %s10
  $region1: #{net_forward.1} parent=0
    #allocation2 [shape = 'u8[1024]{0}', space=vmem, size = 0x400, scoped, tag = 'output window, operand 0']
    #allocation3 [shape = 's32[2]{0}', space=sflag, size = 0x8, scoped, tag = 'scoped memory for net_forward.1']
    %14 = vsyncpa [#allocation3], 0
    %s15 = scalar_lea.sflag [#allocation3], 1
    %16 = vsyncpa %s15, 0
    loop: start=0, step=1, limit=4
    $region2: #{net_forward.1} parent=1 // loop_pre_header
      _
    $region3: #{net_forward.1} parent=1 // loop_header
      %s18 = sphi 0, %s22
      %p19 = scmp.ge.s32.totalorder %s18, 4
      %s28 = sphi 0, %s30
      %s31 = sphi 0, %s28
      %s32 = sphi 0, %s31
      %s48 = sphi 0, %s32
      %s52 = sphi 0, %s52
      %s54 = sphi 0, %s52
      %s55 = sphi 0, %s54
      %s69 = sphi 0, %s55
      %s73 = sphi 0, %s73
      %s75 = sphi 0, %s73
      %s76 = sphi 0, %s75
      %s90 = sphi 0, %s76
      %s94 = sphi 0, %s94
      %s96 = sphi 0, %s94
      %s97 = sphi 0, %s96
      %s111 = sphi 0, %s97
      %s115 = sphi 0, %s115
      %s117 = sphi 0, %s115
      %s118 = sphi 0, %s117
      %s132 = sphi 0, %s118
      %s136 = sphi 0, %s136
      %s138 = sphi 0, %s136
      %s139 = sphi 0, %s138
      %s153 = sphi 0, %s139
      %s157 = sphi 0, %s157
      %s159 = sphi 0, %s157
      %s160 = sphi 0, %s159
      %s174 = sphi 0, %s160
      %s178 = sphi 0, %s178
      %s180 = sphi 0, %s178
      %s181 = sphi 0, %s180
      %s195 = sphi 0, %s181
      %s199 = sphi 0, %s199
      %s201 = sphi 0, %s199
      %s202 = sphi 0, %s201
      %s216 = sphi 0, %s202
      %s222 = sphi 0, %s224
      %s225 = sphi 0, %s222
      %s226 = sphi 0, %s225
      %s242 = sphi 0, %s226
    $region4: #{net_forward.1} parent=1 // loop_header_branch
      %21 = sbr.rel (%p19) target = $region8
    $region5: #{net_forward.1} parent=1 // loop_body
      %s23 = ssub.s32 %s18, 1
      %s24 = ssub.s32 %s18, 2
      %s25 = sadd.s32 %s18, 1
      %s26 = ssub.s32 %s18, %s25
      %p27 = scmp.eq.s32.totalorder %s26, 0
      %s29 = sadd.s32 %s28, 1
      %s30 = scalar_select %p27, %s28, %s29
      %p33 = pneg %p27
      %p34 = scmp.eq.s32.totalorder %s18, 1
      %p35 = por %p33, %p34
      %p36 = scmp.ne.s32.totalorder %s28, %s31
      %p37 = scmp.eq.s32.totalorder %s18, 0
      %p38 = por %p36, %p37
      %p39 = scmp.ne.s32.totalorder %s28, %s31
      %p40 = scmp.eq.s32.totalorder %s23, 1
      %p41 = por %p39, %p40
      %p42 = scmp.ne.s32.totalorder %s31, %s32
      %p43 = scmp.eq.s32.totalorder %s23, 0
      %p44 = por %p42, %p43
      %p45 = scmp.ne.s32.totalorder %s31, %s32
      %p46 = scmp.eq.s32.totalorder %s24, 1
      %p47 = por %p45, %p46
      %p49 = scmp.ne.s32.totalorder %s32, %s48
      %p50 = scmp.eq.s32.totalorder %s24, 0
      %p51 = por %p49, %p50
      %s53 = sadd.s32 %s52, 1
      %p56 = scmp.eq.s32.totalorder %s18, 1
      %p57 = scmp.ne.s32.totalorder %s52, %s54
      %p58 = scmp.eq.s32.totalorder %s18, 0
      %p59 = por %p57, %p58
      %p60 = scmp.ne.s32.totalorder %s52, %s54
      %p61 = scmp.eq.s32.totalorder %s23, 1
      %p62 = por %p60, %p61
      %p63 = scmp.ne.s32.totalorder %s54, %s55
      %p64 = scmp.eq.s32.totalorder %s23, 0
      %p65 = por %p63, %p64
      %p66 = scmp.ne.s32.totalorder %s54, %s55
      %p67 = scmp.eq.s32.totalorder %s24, 1
      %p68 = por %p66, %p67
      %p70 = scmp.ne.s32.totalorder %s55, %s69
      %p71 = scmp.eq.s32.totalorder %s24, 0
      %p72 = por %p70, %p71
      %s74 = sadd.s32 %s73, 1
      %p77 = scmp.eq.s32.totalorder %s18, 1
      %p78 = scmp.ne.s32.totalorder %s73, %s75
      %p79 = scmp.eq.s32.totalorder %s18, 0
      %p80 = por %p78, %p79
      %p81 = scmp.ne.s32.totalorder %s73, %s75
      %p82 = scmp.eq.s32.totalorder %s23, 1
      %p83 = por %p81, %p82
      %p84 = scmp.ne.s32.totalorder %s75, %s76
      %p85 = scmp.eq.s32.totalorder %s23, 0
      %p86 = por %p84, %p85
      %p87 = scmp.ne.s32.totalorder %s75, %s76
      %p88 = scmp.eq.s32.totalorder %s24, 1
      %p89 = por %p87, %p88
      %p91 = scmp.ne.s32.totalorder %s76, %s90
      %p92 = scmp.eq.s32.totalorder %s24, 0
      %p93 = por %p91, %p92
      %s95 = sadd.s32 %s94, 1
      %p98 = scmp.eq.s32.totalorder %s18, 1
      %p99 = scmp.ne.s32.totalorder %s94, %s96
      %p100 = scmp.eq.s32.totalorder %s18, 0
      %p101 = por %p99, %p100
      %p102 = scmp.ne.s32.totalorder %s94, %s96
      %p103 = scmp.eq.s32.totalorder %s23, 1
      %p104 = por %p102, %p103
      %p105 = scmp.ne.s32.totalorder %s96, %s97
      %p106 = scmp.eq.s32.totalorder %s23, 0
      %p107 = por %p105, %p106
      %p108 = scmp.ne.s32.totalorder %s96, %s97
      %p109 = scmp.eq.s32.totalorder %s24, 1
      %p110 = por %p108, %p109
      %p112 = scmp.ne.s32.totalorder %s97, %s111
      %p113 = scmp.eq.s32.totalorder %s24, 0
      %p114 = por %p112, %p113
      %s116 = sadd.s32 %s115, 1
      %p119 = scmp.eq.s32.totalorder %s18, 1
      %p120 = scmp.ne.s32.totalorder %s115, %s117
      %p121 = scmp.eq.s32.totalorder %s18, 0
      %p122 = por %p120, %p121
      %p123 = scmp.ne.s32.totalorder %s115, %s117
      %p124 = scmp.eq.s32.totalorder %s23, 1
      %p125 = por %p123, %p124
      %p126 = scmp.ne.s32.totalorder %s117, %s118
      %p127 = scmp.eq.s32.totalorder %s23, 0
      %p128 = por %p126, %p127
      %p129 = scmp.ne.s32.totalorder %s117, %s118
      %p130 = scmp.eq.s32.totalorder %s24, 1
      %p131 = por %p129, %p130
      %p133 = scmp.ne.s32.totalorder %s118, %s132
      %p134 = scmp.eq.s32.totalorder %s24, 0
      %p135 = por %p133, %p134
      %s137 = sadd.s32 %s136, 1
      %p140 = scmp.eq.s32.totalorder %s18, 1
      %p141 = scmp.ne.s32.totalorder %s136, %s138
      %p142 = scmp.eq.s32.totalorder %s18, 0
      %p143 = por %p141, %p142
      %p144 = scmp.ne.s32.totalorder %s136, %s138
      %p145 = scmp.eq.s32.totalorder %s23, 1
      %p146 = por %p144, %p145
      %p147 = scmp.ne.s32.totalorder %s138, %s139
      %p148 = scmp.eq.s32.totalorder %s23, 0
      %p149 = por %p147, %p148
      %p150 = scmp.ne.s32.totalorder %s138, %s139
      %p151 = scmp.eq.s32.totalorder %s24, 1
      %p152 = por %p150, %p151
      %p154 = scmp.ne.s32.totalorder %s139, %s153
      %p155 = scmp.eq.s32.totalorder %s24, 0
      %p156 = por %p154, %p155
      %s158 = sadd.s32 %s157, 1
      %p161 = scmp.eq.s32.totalorder %s18, 1
      %p162 = scmp.ne.s32.totalorder %s157, %s159
      %p163 = scmp.eq.s32.totalorder %s18, 0
      %p164 = por %p162, %p163
      %p165 = scmp.ne.s32.totalorder %s157, %s159
      %p166 = scmp.eq.s32.totalorder %s23, 1
      %p167 = por %p165, %p166
      %p168 = scmp.ne.s32.totalorder %s159, %s160
      %p169 = scmp.eq.s32.totalorder %s23, 0
      %p170 = por %p168, %p169
      %p171 = scmp.ne.s32.totalorder %s159, %s160
      %p172 = scmp.eq.s32.totalorder %s24, 1
      %p173 = por %p171, %p172
      %p175 = scmp.ne.s32.totalorder %s160, %s174
      %p176 = scmp.eq.s32.totalorder %s24, 0
      %p177 = por %p175, %p176
      %s179 = sadd.s32 %s178, 1
      %p182 = scmp.eq.s32.totalorder %s18, 1
      %p183 = scmp.ne.s32.totalorder %s178, %s180
      %p184 = scmp.eq.s32.totalorder %s18, 0
      %p185 = por %p183, %p184
      %p186 = scmp.ne.s32.totalorder %s178, %s180
      %p187 = scmp.eq.s32.totalorder %s23, 1
      %p188 = por %p186, %p187
      %p189 = scmp.ne.s32.totalorder %s180, %s181
      %p190 = scmp.eq.s32.totalorder %s23, 0
      %p191 = por %p189, %p190
      %p192 = scmp.ne.s32.totalorder %s180, %s181
      %p193 = scmp.eq.s32.totalorder %s24, 1
      %p194 = por %p192, %p193
      %p196 = scmp.ne.s32.totalorder %s181, %s195
      %p197 = scmp.eq.s32.totalorder %s24, 0
      %p198 = por %p196, %p197
      %s200 = sadd.s32 %s199, 1
      %p203 = scmp.eq.s32.totalorder %s18, 1
      %p204 = scmp.ne.s32.totalorder %s199, %s201
      %p205 = scmp.eq.s32.totalorder %s18, 0
      %p206 = por %p204, %p205
      %p207 = scmp.ne.s32.totalorder %s199, %s201
      %p208 = scmp.eq.s32.totalorder %s23, 1
      %p209 = por %p207, %p208
      %p210 = scmp.ne.s32.totalorder %s201, %s202
      %p211 = scmp.eq.s32.totalorder %s23, 0
      %p212 = por %p210, %p211
      %p213 = scmp.ne.s32.totalorder %s201, %s202
      %p214 = scmp.eq.s32.totalorder %s24, 1
      %p215 = por %p213, %p214
      %p217 = scmp.ne.s32.totalorder %s202, %s216
      %p218 = scmp.eq.s32.totalorder %s24, 0
      %p219 = por %p217, %p218
      %s220 = ssub.s32 %s18, %s25
      %p221 = scmp.eq.s32.totalorder %s220, 0
      %s223 = sadd.s32 %s222, 1
      %s224 = scalar_select %p221, %s222, %s223
      %p227 = pneg %p221
      %p228 = scmp.eq.s32.totalorder %s18, 1
      %p229 = por %p227, %p228
      %p230 = scmp.ne.s32.totalorder %s222, %s225
      %p231 = scmp.eq.s32.totalorder %s18, 0
      %p232 = por %p230, %p231
      %p233 = scmp.ne.s32.totalorder %s222, %s225
      %p234 = scmp.eq.s32.totalorder %s23, 1
      %p235 = por %p233, %p234
      %p236 = scmp.ne.s32.totalorder %s225, %s226
      %p237 = scmp.eq.s32.totalorder %s23, 0
      %p238 = por %p236, %p237
      %p239 = scmp.ne.s32.totalorder %s225, %s226
      %p240 = scmp.eq.s32.totalorder %s24, 1
      %p241 = por %p239, %p240
      %p243 = scmp.ne.s32.totalorder %s226, %s242
      %p244 = scmp.eq.s32.totalorder %s24, 0
      %p245 = por %p243, %p244
      %p246 = scmp.le.s32.totalorder 1, %s18
      %p247 = scmp.lt.s32.totalorder %s18, 3
      %p248 = pnand %p246, %p247
      %p249 = pneg %p248
      // Predicated region
      $region9: #{net_forward.1} parent=5 // pred_check
        _
      $region10: #{net_forward.1} parent=5 // pred_check_branch
        %251 = sbr.rel (%p248) target = $region12
      $region11: #{net_forward.1} parent=5 // pred_region
        %s252 = ssub.s32 %s18, 1
        // Predicated region
        $region13: #{net_forward.1} parent=11 // pred_check
          %p253 = pneg %p65
        $region14: #{net_forward.1} parent=11 // pred_check_branch
          %255 = sbr.rel (%p253) target = $region16
        $region15: #{net_forward.1} parent=11 // pred_region
          _
        $region16: #{net_forward.1} parent=11 // pred_fallthru
          _
        // Predicated region
        $region17: #{net_forward.1} parent=11 // pred_check
          %p256 = pneg %p86
        $region18: #{net_forward.1} parent=11 // pred_check_branch
          %258 = sbr.rel (%p256) target = $region20
        $region19: #{net_forward.1} parent=11 // pred_region
          _
        $region20: #{net_forward.1} parent=11 // pred_fallthru
          _
        // Predicated region
        $region21: #{net_forward.1} parent=11 // pred_check
          %p259 = pneg %p107
        $region22: #{net_forward.1} parent=11 // pred_check_branch
          %261 = sbr.rel (%p259) target = $region24
        $region23: #{net_forward.1} parent=11 // pred_region
          _
        $region24: #{net_forward.1} parent=11 // pred_fallthru
          _
        // Predicated region
        $region25: #{net_forward.1} parent=11 // pred_check
          %p262 = pneg %p128
        $region26: #{net_forward.1} parent=11 // pred_check_branch
          %264 = sbr.rel (%p262) target = $region28
        $region27: #{net_forward.1} parent=11 // pred_region
          _
        $region28: #{net_forward.1} parent=11 // pred_fallthru
          _
        // Predicated region
        $region29: #{net_forward.1} parent=11 // pred_check
          %p265 = pneg %p149
        $region30: #{net_forward.1} parent=11 // pred_check_branch
          %267 = sbr.rel (%p265) target = $region32
        $region31: #{net_forward.1} parent=11 // pred_region
          _
        $region32: #{net_forward.1} parent=11 // pred_fallthru
          _
        // Predicated region
        $region33: #{net_forward.1} parent=11 // pred_check
          %p268 = pneg %p170
        $region34: #{net_forward.1} parent=11 // pred_check_branch
          %270 = sbr.rel (%p268) target = $region36
        $region35: #{net_forward.1} parent=11 // pred_region
          _
        $region36: #{net_forward.1} parent=11 // pred_fallthru
          _
        // Predicated region
        $region37: #{net_forward.1} parent=11 // pred_check
          %p271 = pneg %p191
        $region38: #{net_forward.1} parent=11 // pred_check_branch
          %273 = sbr.rel (%p271) target = $region40
        $region39: #{net_forward.1} parent=11 // pred_region
          _
        $region40: #{net_forward.1} parent=11 // pred_fallthru
          _
        // Predicated region
        $region41: #{net_forward.1} parent=11 // pred_check
          %p274 = pneg %p212
        $region42: #{net_forward.1} parent=11 // pred_check_branch
          %276 = sbr.rel (%p274) target = $region44
        $region43: #{net_forward.1} parent=11 // pred_region
          _
        $region44: #{net_forward.1} parent=11 // pred_fallthru
          _
      $region12: #{net_forward.1} parent=5 // pred_fallthru
        _
      %p277 = scmp.lt.s32.totalorder %s18, 2
      // Predicated region
      $region45: #{net_forward.1} parent=5 // pred_check
        %p278 = pneg %p277
      $region46: #{net_forward.1} parent=5 // pred_check_branch
        %280 = sbr.rel (%p278) target = $region48
      $region47: #{net_forward.1} parent=5 // pred_region
        // Predicated region
        $region49: #{net_forward.1} parent=47 // pred_check
          %p281 = pneg %p38
        $region50: #{net_forward.1} parent=47 // pred_check_branch
          %283 = sbr.rel (%p281) target = $region52
        $region51: #{net_forward.1} parent=47 // pred_region
          %p284 = scmp.lt.s32.totalorder %s18, 1
          %s285 = scalar_select %p284, %s18, 1
          %s286 = smul.addr %s285, 4
          %s287 = smul.addr %s286, 8
          %s288 = scalar_lea.vmem %s0, %s287
        $region52: #{net_forward.1} parent=47 // pred_fallthru
          _
      $region48: #{net_forward.1} parent=5 // pred_fallthru
        _
      %p289 = scmp.le.s32.totalorder 1, %s18
      %p290 = scmp.lt.s32.totalorder %s18, 3
      %p291 = pnand %p289, %p290
      %p292 = pneg %p291
      // Predicated region
      $region53: #{net_forward.1} parent=5 // pred_check
        _
      $region54: #{net_forward.1} parent=5 // pred_check_branch
        %294 = sbr.rel (%p291) target = $region56
      $region55: #{net_forward.1} parent=5 // pred_region
        %s295 = ssub.s32 %s18, 1
        %p296 = scmp.lt.s32.totalorder %s23, 1
        %s297 = scalar_select %p296, %s23, 1
        %s298 = smul.addr %s297, 4
        %s299 = smul.addr %s298, 8
        %s300 = scalar_lea.vmem %s0, %s299
        %p301 = pneg %p44
        %p302 = pneg %p41
        %p303 = pneg %p65
        %p304 = pneg %p62
        %p305 = pneg %p86
        %p306 = pneg %p83
        %p307 = pneg %p107
        %p308 = pneg %p104
        %p309 = pneg %p128
        %p310 = pneg %p125
        %p311 = pneg %p149
        %p312 = pneg %p146
        %p313 = pneg %p170
        %p314 = pneg %p167
        %p315 = pneg %p191
        %p316 = pneg %p188
        %p317 = pneg %p212
        %p318 = pneg %p209
        %p319 = pneg %p238
        %p320 = pneg %p235
        %s321 = sand.u32 %s225, 1
        %s322 = scalar_lea.sflag [#allocation3], %s321
        %s323 = sand.u32 %s225, 1
        %s324 = scalar_lea.vmem [#allocation2], %s323
        %p325 = scmp.lt.s32.totalorder %s23, 1
        %s326 = scalar_select %p325, %s23, 1
        %s327 = smul.addr %s326, 4
        %s328 = smul.addr %s327, 8
        %s329 = scalar_lea.vmem %s0, %s328
        %v330 = vld [vmem:[%s329] sm:$0xff]
        %v331 = vld [vmem:[%s329 + $0x8] sm:$0x3f]
        %s332 = scalar_lea.vmem %s329, 16
        %v333 = vld [vmem:[%s332] sm:$0xff]
        %v334 = vld [vmem:[%s332 + $0x8] sm:$0x3f]
        %v335 = vld [vmem:[%s329 + $0x1] sm:$0xff]
        %v336 = vld [vmem:[%s329 + $0x9] sm:$0x3f]
        %v337 = vld [vmem:[%s332 + $0x1] sm:$0xff]
        %v338 = vld [vmem:[%s332 + $0x9] sm:$0x3f]
        %v339 = vld [vmem:[%s329 + $0x2] sm:$0xff]
        %v340 = vld [vmem:[%s329 + $0xa] sm:$0x3f]
        %v341 = vld [vmem:[%s332 + $0x2] sm:$0xff]
        %v342 = vld [vmem:[%s332 + $0xa] sm:$0x3f]
        %v343 = vld [vmem:[%s1] sm:$0xff]
        %v344 = vld [vmem:[%s1 + $0x8] sm:$0xff]
        %v345 = vld [vmem:[%s1 + $0x10] sm:$0xff]
        %v346 = vld [vmem:[%s1 + $0x18] sm:$0xff]
        %v347 = vld [vmem:[%s1 + $0x20] sm:$0xff]
        %v348 = vld [vmem:[%s1 + $0x28] sm:$0xff]
        %v349 = vld [vmem:[%s1 + $0x30] sm:$0xff]
        %v350 = vld [vmem:[%s1 + $0x38] sm:$0xff]
        %v351 = vld [vmem:[%s1 + $0x40] sm:$0xff]
        %v352 = vld [vmem:[%s1 + $0x48] sm:$0xff]
        %v353 = vld [vmem:[%s1 + $0x50] sm:$0xff]
        %v354 = vld [vmem:[%s1 + $0x58] sm:$0xff]
        %v355 = vld [vmem:[%s1 + $0x60] sm:$0xff]
        %v356 = vld [vmem:[%s1 + $0x68] sm:$0xff]
        %v357 = vld [vmem:[%s1 + $0x70] sm:$0xff]
        %v358 = vld [vmem:[%s1 + $0x78] sm:$0xff]
        %v359 = vld [vmem:[%s1 + $0x80] sm:$0xff]
        %v360 = vld [vmem:[%s1 + $0x88] sm:$0xff]
        %v361 = vld [vmem:[%s1 + $0x90] sm:$0xff]
        %v362 = vld [vmem:[%s1 + $0x98] sm:$0xff]
        %v363 = vld [vmem:[%s1 + $0xa0] sm:$0xff]
        %v364 = vld [vmem:[%s1 + $0xa8] sm:$0xff]
        %v365 = vld [vmem:[%s1 + $0xb0] sm:$0xff]
        %v366 = vld [vmem:[%s1 + $0xb8] sm:$0xff]
        %s367 = scalar_lea.vmem %s1, 192
        %v368 = vld [vmem:[%s367] sm:$0xff]
        %v369 = vld [vmem:[%s367 + $0x8] sm:$0xff]
        %v370 = vld [vmem:[%s367 + $0x10] sm:$0xff]
        %v371 = vld [vmem:[%s367 + $0x18] sm:$0xff]
        %v372 = vld [vmem:[%s367 + $0x20] sm:$0xff]
        %v373 = vld [vmem:[%s367 + $0x28] sm:$0xff]
        %v374 = vld [vmem:[%s367 + $0x30] sm:$0xff]
        %v375 = vld [vmem:[%s367 + $0x38] sm:$0xff]
        %v376 = vld [vmem:[%s367 + $0x40] sm:$0xff]
        %v377 = vld [vmem:[%s367 + $0x48] sm:$0xff]
        %v378 = vld [vmem:[%s367 + $0x50] sm:$0xff]
        %v379 = vld [vmem:[%s367 + $0x58] sm:$0xff]
        %v380 = vld [vmem:[%s367 + $0x60] sm:$0xff]
        %v381 = vld [vmem:[%s367 + $0x68] sm:$0xff]
        %v382 = vld [vmem:[%s367 + $0x70] sm:$0xff]
        %v383 = vld [vmem:[%s367 + $0x78] sm:$0xff]
        %v384 = vld [vmem:[%s367 + $0x80] sm:$0xff]
        %v385 = vld [vmem:[%s367 + $0x88] sm:$0xff]
        %v386 = vld [vmem:[%s367 + $0x90] sm:$0xff]
        %v387 = vld [vmem:[%s367 + $0x98] sm:$0xff]
        %v388 = vld [vmem:[%s367 + $0xa0] sm:$0xff]
        %v389 = vld [vmem:[%s367 + $0xa8] sm:$0xff]
        %v390 = vld [vmem:[%s367 + $0xb0] sm:$0xff]
        %v391 = vld [vmem:[%s367 + $0xb8] sm:$0xff]
        %vm392 = vcmask 785408
        %v394 = vsel %vm392, %v333, 0
        %v397 = vsel %vm392, %v334, 0
        %399 = vmatprep.subr.mxu0 %v369
        %400 = vmatpush1.msra.mxu0 %v368
        %401 = vmatprep.subr.mxu0 %v371
        %402 = vmatpush1.msra.mxu0 %v370
        %403 = vmatprep.subr.mxu0 %v373
        %404 = vmatpush1.msra.mxu0 %v372
        %405 = vmatprep.subr.mxu0 %v375
        %406 = vmatpush1.msra.mxu0 %v374
        %407 = vmatprep.subr.mxu0 %v377
        %408 = vmatpush1.msra.mxu0 %v376
        %409 = vmatprep.subr.mxu0 %v379
        %410 = vmatpush1.msra.mxu0 %v378
        %411 = vmatprep.subr.mxu0 %v381
        %412 = vmatpush1.msra.mxu0 %v380
        %413 = vmatprep.subr.mxu0 %v383
        %414 = vmatpush1.msra.mxu0 %v382
        %415 = vmatprep.subr.mxu0 %v385
        %416 = vmatpush1.msra.mxu0 %v384
        %417 = vmatprep.subr.mxu0 %v387
        %418 = vmatpush1.msra.mxu0 %v386
        %419 = vmatprep.subr.mxu0 %v389
        %420 = vmatpush1.msra.mxu0 %v388
        %421 = vmatprep.subr.mxu0 %v391
        %422 = vmatpush1.msra.mxu0 %v390
        %423 = vmatprep.subr.mxu0 0.0
        %424 = vmatpush1.msra.mxu0 0.0
        %425 = vmatprep.subr.mxu0 0.0
        %426 = vmatpush1.msra.mxu0 0.0
        %427 = vmatprep.subr.mxu0 0.0
        %428 = vmatpush1.msra.mxu0 0.0
        %429 = vmatprep.subr.mxu0 0.0
        %430 = vmatpush1.msra.mxu0 0.0
        %431 = vmatprep.subr.mxu0 0.0
        %432 = vmatpush1.msra.mxu0 0.0
        %433 = vmatprep.subr.mxu0 0.0
        %434 = vmatpush1.msra.mxu0 0.0
        %435 = vmatprep.subr.mxu0 0.0
        %436 = vmatpush1.msra.mxu0 0.0
        %437 = vmatprep.subr.mxu0 0.0
        %438 = vmatpush1.msra.mxu0 0.0
        %439 = vmatprep.subr.mxu0 0.0
        %440 = vmatpush1.msra.mxu0 0.0
        %441 = vmatprep.subr.mxu0 0.0
        %442 = vmatpush1.msra.mxu0 0.0
        %443 = vmatprep.subr.mxu0 0.0
        %444 = vmatpush1.msra.mxu0 0.0
        %445 = vmatprep.subr.mxu0 0.0
        %446 = vmatpush1.msra.mxu0 0.0
        %447 = vmatprep.subr.mxu0 0.0
        %448 = vmatpush1.msra.mxu0 0.0
        %449 = vmatprep.subr.mxu0 0.0
        %450 = vmatpush1.msra.mxu0 0.0
        %451 = vmatprep.subr.mxu0 0.0
        %452 = vmatpush1.msra.mxu0 0.0
        %453 = vmatprep.subr.mxu0 0.0
        %454 = vmatpush1.msra.mxu0 0.0
        %455 = vmatprep.subr.mxu0 0.0
        %456 = vmatpush1.msra.mxu0 0.0
        %457 = vmatprep.subr.mxu0 0.0
        %458 = vmatpush1.msra.mxu0 0.0
        %459 = vmatprep.subr.mxu0 0.0
        %460 = vmatpush1.msra.mxu0 0.0
        %461 = vmatprep.subr.mxu0 0.0
        %462 = vmatpush1.msra.mxu0 0.0
        %463 = vmatprep.mubr.f32.mxu0 0.0
        %464 = vmatmul.mubr.f32.gmra.mrb[0].mxu0 %v394
        %v465 = vpop.f32.mrb[0].mxu0
        %v466 = vadd.f32 0.0, %v465
        %v467 = vpop.f32.mrb[0].mxu0
        %v468 = vadd.f32 0.0, %v467
        %469 = vmatprep.mubr.f32.mxu0 0.0
        %470 = vmatmul.mubr.f32.gmra.mrb[0].mxu0 %v397
        %v471 = vpop.f32.mrb[0].mxu0
        %v472 = vadd.f32 0.0, %v471
        %v473 = vpop.f32.mrb[0].mxu0
        %v474 = vadd.f32 0.0, %v473
        %475 = vdwg.mxu0
        %v477 = vsel %vm392, %v330, 0
        %v480 = vsel %vm392, %v331, 0
        %482 = vmatprep.subr.mxu0 %v344
        %483 = vmatpush1.msra.mxu0 %v343
        %484 = vmatprep.subr.mxu0 %v346
        %485 = vmatpush1.msra.mxu0 %v345
        %486 = vmatprep.subr.mxu0 %v348
        %487 = vmatpush1.msra.mxu0 %v347
        %488 = vmatprep.subr.mxu0 %v350
        %489 = vmatpush1.msra.mxu0 %v349
        %490 = vmatprep.subr.mxu0 %v352
        %491 = vmatpush1.msra.mxu0 %v351
        %492 = vmatprep.subr.mxu0 %v354
        %493 = vmatpush1.msra.mxu0 %v353
        %494 = vmatprep.subr.mxu0 %v356
        %495 = vmatpush1.msra.mxu0 %v355
        %496 = vmatprep.subr.mxu0 %v358
        %497 = vmatpush1.msra.mxu0 %v357
        %498 = vmatprep.subr.mxu0 %v360
        %499 = vmatpush1.msra.mxu0 %v359
        %500 = vmatprep.subr.mxu0 %v362
        %501 = vmatpush1.msra.mxu0 %v361
        %502 = vmatprep.subr.mxu0 %v364
        %503 = vmatpush1.msra.mxu0 %v363
        %504 = vmatprep.subr.mxu0 %v366
        %505 = vmatpush1.msra.mxu0 %v365
        %506 = vmatprep.subr.mxu0 0.0
        %507 = vmatpush1.msra.mxu0 0.0
        %508 = vmatprep.subr.mxu0 0.0
        %509 = vmatpush1.msra.mxu0 0.0
        %510 = vmatprep.subr.mxu0 0.0
        %511 = vmatpush1.msra.mxu0 0.0
        %512 = vmatprep.subr.mxu0 0.0
        %513 = vmatpush1.msra.mxu0 0.0
        %514 = vmatprep.subr.mxu0 0.0
        %515 = vmatpush1.msra.mxu0 0.0
        %516 = vmatprep.subr.mxu0 0.0
        %517 = vmatpush1.msra.mxu0 0.0
        %518 = vmatprep.subr.mxu0 0.0
        %519 = vmatpush1.msra.mxu0 0.0
        %520 = vmatprep.subr.mxu0 0.0
        %521 = vmatpush1.msra.mxu0 0.0
        %522 = vmatprep.subr.mxu0 0.0
        %523 = vmatpush1.msra.mxu0 0.0
        %524 = vmatprep.subr.mxu0 0.0
        %525 = vmatpush1.msra.mxu0 0.0
        %526 = vmatprep.subr.mxu0 0.0
        %527 = vmatpush1.msra.mxu0 0.0
        %528 = vmatprep.subr.mxu0 0.0
        %529 = vmatpush1.msra.mxu0 0.0
        %530 = vmatprep.subr.mxu0 0.0
        %531 = vmatpush1.msra.mxu0 0.0
        %532 = vmatprep.subr.mxu0 0.0
        %533 = vmatpush1.msra.mxu0 0.0
        %534 = vmatprep.subr.mxu0 0.0
        %535 = vmatpush1.msra.mxu0 0.0
        %536 = vmatprep.subr.mxu0 0.0
        %537 = vmatpush1.msra.mxu0 0.0
        %538 = vmatprep.subr.mxu0 0.0
        %539 = vmatpush1.msra.mxu0 0.0
        %540 = vmatprep.subr.mxu0 0.0
        %541 = vmatpush1.msra.mxu0 0.0
        %542 = vmatprep.subr.mxu0 0.0
        %543 = vmatpush1.msra.mxu0 0.0
        %544 = vmatprep.subr.mxu0 0.0
        %545 = vmatpush1.msra.mxu0 0.0
        %546 = vmatprep.mubr.f32.mxu0 0.0
        %547 = vmatmul.mubr.f32.gmra.mrb[0].mxu0 %v477
        %v548 = vpop.f32.mrb[0].mxu0
        %v549 = vadd.f32 %v466, %v548
        %v550 = vpop.f32.mrb[0].mxu0
        %v551 = vadd.f32 %v468, %v550
        %552 = vmatprep.mubr.f32.mxu0 0.0
        %553 = vmatmul.mubr.f32.gmra.mrb[0].mxu0 %v480
        %v554 = vpop.f32.mrb[0].mxu0
        %v555 = vadd.f32 %v472, %v554
        %v556 = vpop.f32.mrb[0].mxu0
        %v557 = vadd.f32 %v474, %v556
        %558 = vdwg.mxu0
        %s559 = scalar_lea.vmem %s1, 384
        %v560 = vld [vmem:[%s559] sm:$0xff]
        %v561 = vld [vmem:[%s559 + $0x8] sm:$0xff]
        %v562 = vld [vmem:[%s559 + $0x10] sm:$0xff]
        %v563 = vld [vmem:[%s559 + $0x18] sm:$0xff]
        %v564 = vld [vmem:[%s559 + $0x20] sm:$0xff]
        %v565 = vld [vmem:[%s559 + $0x28] sm:$0xff]
        %v566 = vld [vmem:[%s559 + $0x30] sm:$0xff]
        %v567 = vld [vmem:[%s559 + $0x38] sm:$0xff]
        %v568 = vld [vmem:[%s559 + $0x40] sm:$0xff]
        %v569 = vld [vmem:[%s559 + $0x48] sm:$0xff]
        %v570 = vld [vmem:[%s559 + $0x50] sm:$0xff]
        %v571 = vld [vmem:[%s559 + $0x58] sm:$0xff]
        %v572 = vld [vmem:[%s559 + $0x60] sm:$0xff]
        %v573 = vld [vmem:[%s559 + $0x68] sm:$0xff]
        %v574 = vld [vmem:[%s559 + $0x70] sm:$0xff]
        %v575 = vld [vmem:[%s559 + $0x78] sm:$0xff]
        %v576 = vld [vmem:[%s559 + $0x80] sm:$0xff]
        %v577 = vld [vmem:[%s559 + $0x88] sm:$0xff]
        %v578 = vld [vmem:[%s559 + $0x90] sm:$0xff]
        %v579 = vld [vmem:[%s559 + $0x98] sm:$0xff]
        %v580 = vld [vmem:[%s559 + $0xa0] sm:$0xff]
        %v581 = vld [vmem:[%s559 + $0xa8] sm:$0xff]
        %v582 = vld [vmem:[%s559 + $0xb0] sm:$0xff]
        %v583 = vld [vmem:[%s559 + $0xb8] sm:$0xff]
        %v585 = vsel %vm392, %v335, 0
        %v588 = vsel %vm392, %v336, 0
        %590 = vmatprep.subr.mxu0 %v561
        %591 = vmatpush1.msra.mxu0 %v560
        %592 = vmatprep.subr.mxu0 %v563
        %593 = vmatpush1.msra.mxu0 %v562
        %594 = vmatprep.subr.mxu0 %v565
        %595 = vmatpush1.msra.mxu0 %v564
        %596 = vmatprep.subr.mxu0 %v567
        %597 = vmatpush1.msra.mxu0 %v566
        %598 = vmatprep.subr.mxu0 %v569
        %599 = vmatpush1.msra.mxu0 %v568
        %600 = vmatprep.subr.mxu0 %v571
        %601 = vmatpush1.msra.mxu0 %v570
        %602 = vmatprep.subr.mxu0 %v573
        %603 = vmatpush1.msra.mxu0 %v572
        %604 = vmatprep.subr.mxu0 %v575
        %605 = vmatpush1.msra.mxu0 %v574
        %606 = vmatprep.subr.mxu0 %v577
        %607 = vmatpush1.msra.mxu0 %v576
        %608 = vmatprep.subr.mxu0 %v579
        %609 = vmatpush1.msra.mxu0 %v578
        %610 = vmatprep.subr.mxu0 %v581
        %611 = vmatpush1.msra.mxu0 %v580
        %612 = vmatprep.subr.mxu0 %v583
        %613 = vmatpush1.msra.mxu0 %v582
        %614 = vmatprep.subr.mxu0 0.0
        %615 = vmatpush1.msra.mxu0 0.0
        %616 = vmatprep.subr.mxu0 0.0
        %617 = vmatpush1.msra.mxu0 0.0
        %618 = vmatprep.subr.mxu0 0.0
        %619 = vmatpush1.msra.mxu0 0.0
        %620 = vmatprep.subr.mxu0 0.0
        %621 = vmatpush1.msra.mxu0 0.0
        %622 = vmatprep.subr.mxu0 0.0
        %623 = vmatpush1.msra.mxu0 0.0
        %624 = vmatprep.subr.mxu0 0.0
        %625 = vmatpush1.msra.mxu0 0.0
        %626 = vmatprep.subr.mxu0 0.0
        %627 = vmatpush1.msra.mxu0 0.0
        %628 = vmatprep.subr.mxu0 0.0
        %629 = vmatpush1.msra.mxu0 0.0
        %630 = vmatprep.subr.mxu0 0.0
        %631 = vmatpush1.msra.mxu0 0.0
        %632 = vmatprep.subr.mxu0 0.0
        %633 = vmatpush1.msra.mxu0 0.0
        %634 = vmatprep.subr.mxu0 0.0
        %635 = vmatpush1.msra.mxu0 0.0
        %636 = vmatprep.subr.mxu0 0.0
        %637 = vmatpush1.msra.mxu0 0.0
        %638 = vmatprep.subr.mxu0 0.0
        %639 = vmatpush1.msra.mxu0 0.0
        %640 = vmatprep.subr.mxu0 0.0
        %641 = vmatpush1.msra.mxu0 0.0
        %642 = vmatprep.subr.mxu0 0.0
        %643 = vmatpush1.msra.mxu0 0.0
        %644 = vmatprep.subr.mxu0 0.0
        %645 = vmatpush1.msra.mxu0 0.0
        %646 = vmatprep.subr.mxu0 0.0
        %647 = vmatpush1.msra.mxu0 0.0
        %648 = vmatprep.subr.mxu0 0.0
        %649 = vmatpush1.msra.mxu0 0.0
        %650 = vmatprep.subr.mxu0 0.0
        %651 = vmatpush1.msra.mxu0 0.0
        %652 = vmatprep.subr.mxu0 0.0
        %653 = vmatpush1.msra.mxu0 0.0
        %654 = vmatprep.mubr.f32.mxu0 0.0
        %655 = vmatmul.mubr.f32.gmra.mrb[0].mxu0 %v585
        %v656 = vpop.f32.mrb[0].mxu0
        %v657 = vadd.f32 0.0, %v656
        %v658 = vpop.f32.mrb[0].mxu0
        %v659 = vadd.f32 0.0, %v658
        %660 = vmatprep.mubr.f32.mxu0 0.0
        %661 = vmatmul.mubr.f32.gmra.mrb[0].mxu0 %v588
        %v662 = vpop.f32.mrb[0].mxu0
        %v663 = vadd.f32 0.0, %v662
        %v664 = vpop.f32.mrb[0].mxu0
        %v665 = vadd.f32 0.0, %v664
        %666 = vdwg.mxu0
        %v667 = vadd.f32 %v549, %v657
        %v668 = vadd.f32 %v551, %v659
        %v669 = vadd.f32 %v555, %v663
        %v670 = vadd.f32 %v557, %v665
        %s671 = scalar_lea.vmem %s1, 576
        %v672 = vld [vmem:[%s671] sm:$0xff]
        %v673 = vld [vmem:[%s671 + $0x8] sm:$0xff]
        %v674 = vld [vmem:[%s671 + $0x10] sm:$0xff]
        %v675 = vld [vmem:[%s671 + $0x18] sm:$0xff]
        %v676 = vld [vmem:[%s671 + $0x20] sm:$0xff]
        %v677 = vld [vmem:[%s671 + $0x28] sm:$0xff]
        %v678 = vld [vmem:[%s671 + $0x30] sm:$0xff]
        %v679 = vld [vmem:[%s671 + $0x38] sm:$0xff]
        %v680 = vld [vmem:[%s671 + $0x40] sm:$0xff]
        %v681 = vld [vmem:[%s671 + $0x48] sm:$0xff]
        %v682 = vld [vmem:[%s671 + $0x50] sm:$0xff]
        %v683 = vld [vmem:[%s671 + $0x58] sm:$0xff]
        %v684 = vld [vmem:[%s671 + $0x60] sm:$0xff]
        %v685 = vld [vmem:[%s671 + $0x68] sm:$0xff]
        %v686 = vld [vmem:[%s671 + $0x70] sm:$0xff]
        %v687 = vld [vmem:[%s671 + $0x78] sm:$0xff]
        %v688 = vld [vmem:[%s671 + $0x80] sm:$0xff]
        %v689 = vld [vmem:[%s671 + $0x88] sm:$0xff]
        %v690 = vld [vmem:[%s671 + $0x90] sm:$0xff]
        %v691 = vld [vmem:[%s671 + $0x98] sm:$0xff]
        %v692 = vld [vmem:[%s671 + $0xa0] sm:$0xff]
        %v693 = vld [vmem:[%s671 + $0xa8] sm:$0xff]
        %v694 = vld [vmem:[%s671 + $0xb0] sm:$0xff]
        %v695 = vld [vmem:[%s671 + $0xb8] sm:$0xff]
        %v697 = vsel %vm392, %v337, 0
        %v700 = vsel %vm392, %v338, 0
        %702 = vmatprep.subr.mxu0 %v673
        %703 = vmatpush1.msra.mxu0 %v672
        %704 = vmatprep.subr.mxu0 %v675
        %705 = vmatpush1.msra.mxu0 %v674
        %706 = vmatprep.subr.mxu0 %v677
        %707 = vmatpush1.msra.mxu0 %v676
        %708 = vmatprep.subr.mxu0 %v679
        %709 = vmatpush1.msra.mxu0 %v678
        %710 = vmatprep.subr.mxu0 %v681
        %711 = vmatpush1.msra.mxu0 %v680
        %712 = vmatprep.subr.mxu0 %v683
        %713 = vmatpush1.msra.mxu0 %v682
        %714 = vmatprep.subr.mxu0 %v685
        %715 = vmatpush1.msra.mxu0 %v684
        %716 = vmatprep.subr.mxu0 %v687
        %717 = vmatpush1.msra.mxu0 %v686
        %718 = vmatprep.subr.mxu0 %v689
        %719 = vmatpush1.msra.mxu0 %v688
        %720 = vmatprep.subr.mxu0 %v691
        %721 = vmatpush1.msra.mxu0 %v690
        %722 = vmatprep.subr.mxu0 %v693
        %723 = vmatpush1.msra.mxu0 %v692
        %724 = vmatprep.subr.mxu0 %v695
        %725 = vmatpush1.msra.mxu0 %v694
        %726 = vmatprep.subr.mxu0 0.0
        %727 = vmatpush1.msra.mxu0 0.0
        %728 = vmatprep.subr.mxu0 0.0
        %729 = vmatpush1.msra.mxu0 0.0
        %730 = vmatprep.subr.mxu0 0.0
        %731 = vmatpush1.msra.mxu0 0.0
        %732 = vmatprep.subr.mxu0 0.0
        %733 = vmatpush1.msra.mxu0 0.0
        %734 = vmatprep.subr.mxu0 0.0
        %735 = vmatpush1.msra.mxu0 0.0
        %736 = vmatprep.subr.mxu0 0.0
        %737 = vmatpush1.msra.mxu0 0.0
        %738 = vmatprep.subr.mxu0 0.0
        %739 = vmatpush1.msra.mxu0 0.0
        %740 = vmatprep.subr.mxu0 0.0
        %741 = vmatpush1.msra.mxu0 0.0
        %742 = vmatprep.subr.mxu0 0.0
        %743 = vmatpush1.msra.mxu0 0.0
        %744 = vmatprep.subr.mxu0 0.0
        %745 = vmatpush1.msra.mxu0 0.0
        %746 = vmatprep.subr.mxu0 0.0
        %747 = vmatpush1.msra.mxu0 0.0
        %748 = vmatprep.subr.mxu0 0.0
        %749 = vmatpush1.msra.mxu0 0.0
        %750 = vmatprep.subr.mxu0 0.0
        %751 = vmatpush1.msra.mxu0 0.0
        %752 = vmatprep.subr.mxu0 0.0
        %753 = vmatpush1.msra.mxu0 0.0
        %754 = vmatprep.subr.mxu0 0.0
        %755 = vmatpush1.msra.mxu0 0.0
        %756 = vmatprep.subr.mxu0 0.0
        %757 = vmatpush1.msra.mxu0 0.0
        %758 = vmatprep.subr.mxu0 0.0
        %759 = vmatpush1.msra.mxu0 0.0
        %760 = vmatprep.subr.mxu0 0.0
        %761 = vmatpush1.msra.mxu0 0.0
        %762 = vmatprep.subr.mxu0 0.0
        %763 = vmatpush1.msra.mxu0 0.0
        %764 = vmatprep.subr.mxu0 0.0
        %765 = vmatpush1.msra.mxu0 0.0
        %766 = vmatprep.mubr.f32.mxu0 0.0
        %767 = vmatmul.mubr.f32.gmra.mrb[0].mxu0 %v697
        %v768 = vpop.f32.mrb[0].mxu0
        %v769 = vadd.f32 0.0, %v768
        %v770 = vpop.f32.mrb[0].mxu0
        %v771 = vadd.f32 0.0, %v770
        %772 = vmatprep.mubr.f32.mxu0 0.0
        %773 = vmatmul.mubr.f32.gmra.mrb[0].mxu0 %v700
        %v774 = vpop.f32.mrb[0].mxu0
        %v775 = vadd.f32 0.0, %v774
        %v776 = vpop.f32.mrb[0].mxu0
        %v777 = vadd.f32 0.0, %v776
        %778 = vdwg.mxu0
        %v779 = vadd.f32 %v667, %v769
        %v780 = vadd.f32 %v668, %v771
        %v781 = vadd.f32 %v669, %v775
        %v782 = vadd.f32 %v670, %v777
        %s783 = scalar_lea.vmem %s1, 768
        %v784 = vld [vmem:[%s783] sm:$0xff]
        %v785 = vld [vmem:[%s783 + $0x8] sm:$0xff]
        %v786 = vld [vmem:[%s783 + $0x10] sm:$0xff]
        %v787 = vld [vmem:[%s783 + $0x18] sm:$0xff]
        %v788 = vld [vmem:[%s783 + $0x20] sm:$0xff]
        %v789 = vld [vmem:[%s783 + $0x28] sm:$0xff]
        %v790 = vld [vmem:[%s783 + $0x30] sm:$0xff]
        %v791 = vld [vmem:[%s783 + $0x38] sm:$0xff]
        %v792 = vld [vmem:[%s783 + $0x40] sm:$0xff]
        %v793 = vld [vmem:[%s783 + $0x48] sm:$0xff]
        %v794 = vld [vmem:[%s783 + $0x50] sm:$0xff]
        %v795 = vld [vmem:[%s783 + $0x58] sm:$0xff]
        %v796 = vld [vmem:[%s783 + $0x60] sm:$0xff]
        %v797 = vld [vmem:[%s783 + $0x68] sm:$0xff]
        %v798 = vld [vmem:[%s783 + $0x70] sm:$0xff]
        %v799 = vld [vmem:[%s783 + $0x78] sm:$0xff]
        %v800 = vld [vmem:[%s783 + $0x80] sm:$0xff]
        %v801 = vld [vmem:[%s783 + $0x88] sm:$0xff]
        %v802 = vld [vmem:[%s783 + $0x90] sm:$0xff]
        %v803 = vld [vmem:[%s783 + $0x98] sm:$0xff]
        %v804 = vld [vmem:[%s783 + $0xa0] sm:$0xff]
        %v805 = vld [vmem:[%s783 + $0xa8] sm:$0xff]
        %v806 = vld [vmem:[%s783 + $0xb0] sm:$0xff]
        %v807 = vld [vmem:[%s783 + $0xb8] sm:$0xff]
        %v809 = vsel %vm392, %v339, 0
        %v812 = vsel %vm392, %v340, 0
        %814 = vmatprep.subr.mxu0 %v785
        %815 = vmatpush1.msra.mxu0 %v784
        %816 = vmatprep.subr.mxu0 %v787
        %817 = vmatpush1.msra.mxu0 %v786
        %818 = vmatprep.subr.mxu0 %v789
        %819 = vmatpush1.msra.mxu0 %v788
        %820 = vmatprep.subr.mxu0 %v791
        %821 = vmatpush1.msra.mxu0 %v790
        %822 = vmatprep.subr.mxu0 %v793
        %823 = vmatpush1.msra.mxu0 %v792
        %824 = vmatprep.subr.mxu0 %v795
        %825 = vmatpush1.msra.mxu0 %v794
        %826 = vmatprep.subr.mxu0 %v797
        %827 = vmatpush1.msra.mxu0 %v796
        %828 = vmatprep.subr.mxu0 %v799
        %829 = vmatpush1.msra.mxu0 %v798
        %830 = vmatprep.subr.mxu0 %v801
        %831 = vmatpush1.msra.mxu0 %v800
        %832 = vmatprep.subr.mxu0 %v803
        %833 = vmatpush1.msra.mxu0 %v802
        %834 = vmatprep.subr.mxu0 %v805
        %835 = vmatpush1.msra.mxu0 %v804
        %836 = vmatprep.subr.mxu0 %v807
        %837 = vmatpush1.msra.mxu0 %v806
        %838 = vmatprep.subr.mxu0 0.0
        %839 = vmatpush1.msra.mxu0 0.0
        %840 = vmatprep.subr.mxu0 0.0
        %841 = vmatpush1.msra.mxu0 0.0
        %842 = vmatprep.subr.mxu0 0.0
        %843 = vmatpush1.msra.mxu0 0.0
        %844 = vmatprep.subr.mxu0 0.0
        %845 = vmatpush1.msra.mxu0 0.0
        %846 = vmatprep.subr.mxu0 0.0
        %847 = vmatpush1.msra.mxu0 0.0
        %848 = vmatprep.subr.mxu0 0.0
        %849 = vmatpush1.msra.mxu0 0.0
        %850 = vmatprep.subr.mxu0 0.0
        %851 = vmatpush1.msra.mxu0 0.0
        %852 = vmatprep.subr.mxu0 0.0
        %853 = vmatpush1.msra.mxu0 0.0
        %854 = vmatprep.subr.mxu0 0.0
        %855 = vmatpush1.msra.mxu0 0.0
        %856 = vmatprep.subr.mxu0 0.0
        %857 = vmatpush1.msra.mxu0 0.0
        %858 = vmatprep.subr.mxu0 0.0
        %859 = vmatpush1.msra.mxu0 0.0
        %860 = vmatprep.subr.mxu0 0.0
        %861 = vmatpush1.msra.mxu0 0.0
        %862 = vmatprep.subr.mxu0 0.0
        %863 = vmatpush1.msra.mxu0 0.0
        %864 = vmatprep.subr.mxu0 0.0
        %865 = vmatpush1.msra.mxu0 0.0
        %866 = vmatprep.subr.mxu0 0.0
        %867 = vmatpush1.msra.mxu0 0.0
        %868 = vmatprep.subr.mxu0 0.0
        %869 = vmatpush1.msra.mxu0 0.0
        %870 = vmatprep.subr.mxu0 0.0
        %871 = vmatpush1.msra.mxu0 0.0
        %872 = vmatprep.subr.mxu0 0.0
        %873 = vmatpush1.msra.mxu0 0.0
        %874 = vmatprep.subr.mxu0 0.0
        %875 = vmatpush1.msra.mxu0 0.0
        %876 = vmatprep.subr.mxu0 0.0
        %877 = vmatpush1.msra.mxu0 0.0
        %878 = vmatprep.mubr.f32.mxu0 0.0
        %879 = vmatmul.mubr.f32.gmra.mrb[0].mxu0 %v809
        %v880 = vpop.f32.mrb[0].mxu0
        %v881 = vadd.f32 0.0, %v880
        %v882 = vpop.f32.mrb[0].mxu0
        %v883 = vadd.f32 0.0, %v882
        %884 = vmatprep.mubr.f32.mxu0 0.0
        %885 = vmatmul.mubr.f32.gmra.mrb[0].mxu0 %v812
        %v886 = vpop.f32.mrb[0].mxu0
        %v887 = vadd.f32 0.0, %v886
        %v888 = vpop.f32.mrb[0].mxu0
        %v889 = vadd.f32 0.0, %v888
        %890 = vdwg.mxu0
        %v891 = vadd.f32 %v779, %v881
        %v892 = vadd.f32 %v780, %v883
        %v893 = vadd.f32 %v781, %v887
        %v894 = vadd.f32 %v782, %v889
        %s895 = scalar_lea.vmem %s1, 960
        %v896 = vld [vmem:[%s895] sm:$0xff]
        %v897 = vld [vmem:[%s895 + $0x8] sm:$0xff]
        %v898 = vld [vmem:[%s895 + $0x10] sm:$0xff]
        %v899 = vld [vmem:[%s895 + $0x18] sm:$0xff]
        %v900 = vld [vmem:[%s895 + $0x20] sm:$0xff]
        %v901 = vld [vmem:[%s895 + $0x28] sm:$0xff]
        %v902 = vld [vmem:[%s895 + $0x30] sm:$0xff]
        %v903 = vld [vmem:[%s895 + $0x38] sm:$0xff]
        %v904 = vld [vmem:[%s895 + $0x40] sm:$0xff]
        %v905 = vld [vmem:[%s895 + $0x48] sm:$0xff]
        %v906 = vld [vmem:[%s895 + $0x50] sm:$0xff]
        %v907 = vld [vmem:[%s895 + $0x58] sm:$0xff]
        %v908 = vld [vmem:[%s895 + $0x60] sm:$0xff]
        %v909 = vld [vmem:[%s895 + $0x68] sm:$0xff]
        %v910 = vld [vmem:[%s895 + $0x70] sm:$0xff]
        %v911 = vld [vmem:[%s895 + $0x78] sm:$0xff]
        %v912 = vld [vmem:[%s895 + $0x80] sm:$0xff]
        %v913 = vld [vmem:[%s895 + $0x88] sm:$0xff]
        %v914 = vld [vmem:[%s895 + $0x90] sm:$0xff]
        %v915 = vld [vmem:[%s895 + $0x98] sm:$0xff]
        %v916 = vld [vmem:[%s895 + $0xa0] sm:$0xff]
        %v917 = vld [vmem:[%s895 + $0xa8] sm:$0xff]
        %v918 = vld [vmem:[%s895 + $0xb0] sm:$0xff]
        %v919 = vld [vmem:[%s895 + $0xb8] sm:$0xff]
        %s920 = scalar_lea.vmem %s1, 1152
        %v921 = vld [vmem:[%s920] sm:$0xff]
        %v922 = vld [vmem:[%s920 + $0x8] sm:$0xff]
        %v923 = vld [vmem:[%s920 + $0x10] sm:$0xff]
        %v924 = vld [vmem:[%s920 + $0x18] sm:$0xff]
        %v925 = vld [vmem:[%s920 + $0x20] sm:$0xff]
        %v926 = vld [vmem:[%s920 + $0x28] sm:$0xff]
        %v927 = vld [vmem:[%s920 + $0x30] sm:$0xff]
        %v928 = vld [vmem:[%s920 + $0x38] sm:$0xff]
        %v929 = vld [vmem:[%s920 + $0x40] sm:$0xff]
        %v930 = vld [vmem:[%s920 + $0x48] sm:$0xff]
        %v931 = vld [vmem:[%s920 + $0x50] sm:$0xff]
        %v932 = vld [vmem:[%s920 + $0x58] sm:$0xff]
        %v933 = vld [vmem:[%s920 + $0x60] sm:$0xff]
        %v934 = vld [vmem:[%s920 + $0x68] sm:$0xff]
        %v935 = vld [vmem:[%s920 + $0x70] sm:$0xff]
        %v936 = vld [vmem:[%s920 + $0x78] sm:$0xff]
        %v937 = vld [vmem:[%s920 + $0x80] sm:$0xff]
        %v938 = vld [vmem:[%s920 + $0x88] sm:$0xff]
        %v939 = vld [vmem:[%s920 + $0x90] sm:$0xff]
        %v940 = vld [vmem:[%s920 + $0x98] sm:$0xff]
        %v941 = vld [vmem:[%s920 + $0xa0] sm:$0xff]
        %v942 = vld [vmem:[%s920 + $0xa8] sm:$0xff]
        %v943 = vld [vmem:[%s920 + $0xb0] sm:$0xff]
        %v944 = vld [vmem:[%s920 + $0xb8] sm:$0xff]
        %945 = vmatprep.subr.mxu0 %v922
        %946 = vmatpush1.msra.mxu0 %v921
        %947 = vmatprep.subr.mxu0 %v924
        %948 = vmatpush1.msra.mxu0 %v923
        %949 = vmatprep.subr.mxu0 %v926
        %950 = vmatpush1.msra.mxu0 %v925
        %951 = vmatprep.subr.mxu0 %v928
        %952 = vmatpush1.msra.mxu0 %v927
        %953 = vmatprep.subr.mxu0 %v930
        %954 = vmatpush1.msra.mxu0 %v929
        %955 = vmatprep.subr.mxu0 %v932
        %956 = vmatpush1.msra.mxu0 %v931
        %957 = vmatprep.subr.mxu0 %v934
        %958 = vmatpush1.msra.mxu0 %v933
        %959 = vmatprep.subr.mxu0 %v936
        %960 = vmatpush1.msra.mxu0 %v935
        %961 = vmatprep.subr.mxu0 %v938
        %962 = vmatpush1.msra.mxu0 %v937
        %963 = vmatprep.subr.mxu0 %v940
        %964 = vmatpush1.msra.mxu0 %v939
        %965 = vmatprep.subr.mxu0 %v942
        %966 = vmatpush1.msra.mxu0 %v941
        %967 = vmatprep.subr.mxu0 %v944
        %968 = vmatpush1.msra.mxu0 %v943
        %969 = vmatprep.subr.mxu0 0.0
        %970 = vmatpush1.msra.mxu0 0.0
        %971 = vmatprep.subr.mxu0 0.0
        %972 = vmatpush1.msra.mxu0 0.0
        %973 = vmatprep.subr.mxu0 0.0
        %974 = vmatpush1.msra.mxu0 0.0
        %975 = vmatprep.subr.mxu0 0.0
        %976 = vmatpush1.msra.mxu0 0.0
        %977 = vmatprep.subr.mxu0 0.0
        %978 = vmatpush1.msra.mxu0 0.0
        %979 = vmatprep.subr.mxu0 0.0
        %980 = vmatpush1.msra.mxu0 0.0
        %981 = vmatprep.subr.mxu0 0.0
        %982 = vmatpush1.msra.mxu0 0.0
        %983 = vmatprep.subr.mxu0 0.0
        %984 = vmatpush1.msra.mxu0 0.0
        %985 = vmatprep.subr.mxu0 0.0
        %986 = vmatpush1.msra.mxu0 0.0
        %987 = vmatprep.subr.mxu0 0.0
        %988 = vmatpush1.msra.mxu0 0.0
        %989 = vmatprep.subr.mxu0 0.0
        %990 = vmatpush1.msra.mxu0 0.0
        %991 = vmatprep.subr.mxu0 0.0
        %992 = vmatpush1.msra.mxu0 0.0
        %993 = vmatprep.subr.mxu0 0.0
        %994 = vmatpush1.msra.mxu0 0.0
        %995 = vmatprep.subr.mxu0 0.0
        %996 = vmatpush1.msra.mxu0 0.0
        %997 = vmatprep.subr.mxu0 0.0
        %998 = vmatpush1.msra.mxu0 0.0
        %999 = vmatprep.subr.mxu0 0.0
        %1000 = vmatpush1.msra.mxu0 0.0
        %1001 = vmatprep.subr.mxu0 0.0
        %1002 = vmatpush1.msra.mxu0 0.0
        %1003 = vmatprep.subr.mxu0 0.0
        %1004 = vmatpush1.msra.mxu0 0.0
        %1005 = vmatprep.subr.mxu0 0.0
        %1006 = vmatpush1.msra.mxu0 0.0
        %1007 = vmatprep.subr.mxu0 0.0
        %1008 = vmatpush1.msra.mxu0 0.0
        %1009 = vmatprep.mubr.f32.mxu0 0.0
        %1010 = vmatmul.mubr.f32.gmra.mrb[0].mxu0 %v394
        %v1011 = vpop.f32.mrb[0].mxu0
        %v1012 = vadd.f32 0.0, %v1011
        %v1013 = vpop.f32.mrb[0].mxu0
        %v1014 = vadd.f32 0.0, %v1013
        %1015 = vmatprep.mubr.f32.mxu0 0.0
        %1016 = vmatmul.mubr.f32.gmra.mrb[0].mxu0 %v397
        %v1017 = vpop.f32.mrb[0].mxu0
        %v1018 = vadd.f32 0.0, %v1017
        %v1019 = vpop.f32.mrb[0].mxu0
        %v1020 = vadd.f32 0.0, %v1019
        %1021 = vdwg.mxu0
        %1022 = vmatprep.subr.mxu0 %v897
        %1023 = vmatpush1.msra.mxu0 %v896
        %1024 = vmatprep.subr.mxu0 %v899
        %1025 = vmatpush1.msra.mxu0 %v898
        %1026 = vmatprep.subr.mxu0 %v901
        %1027 = vmatpush1.msra.mxu0 %v900
        %1028 = vmatprep.subr.mxu0 %v903
        %1029 = vmatpush1.msra.mxu0 %v902
        %1030 = vmatprep.subr.mxu0 %v905
        %1031 = vmatpush1.msra.mxu0 %v904
        %1032 = vmatprep.subr.mxu0 %v907
        %1033 = vmatpush1.msra.mxu0 %v906
        %1034 = vmatprep.subr.mxu0 %v909
        %1035 = vmatpush1.msra.mxu0 %v908
        %1036 = vmatprep.subr.mxu0 %v911
        %1037 = vmatpush1.msra.mxu0 %v910
        %1038 = vmatprep.subr.mxu0 %v913
        %1039 = vmatpush1.msra.mxu0 %v912
        %1040 = vmatprep.subr.mxu0 %v915
        %1041 = vmatpush1.msra.mxu0 %v914
        %1042 = vmatprep.subr.mxu0 %v917
        %1043 = vmatpush1.msra.mxu0 %v916
        %1044 = vmatprep.subr.mxu0 %v919
        %1045 = vmatpush1.msra.mxu0 %v918
        %1046 = vmatprep.subr.mxu0 0.0
        %1047 = vmatpush1.msra.mxu0 0.0
        %1048 = vmatprep.subr.mxu0 0.0
        %1049 = vmatpush1.msra.mxu0 0.0
        %1050 = vmatprep.subr.mxu0 0.0
        %1051 = vmatpush1.msra.mxu0 0.0
        %1052 = vmatprep.subr.mxu0 0.0
        %1053 = vmatpush1.msra.mxu0 0.0
        %1054 = vmatprep.subr.mxu0 0.0
        %1055 = vmatpush1.msra.mxu0 0.0
        %1056 = vmatprep.subr.mxu0 0.0
        %1057 = vmatpush1.msra.mxu0 0.0
        %1058 = vmatprep.subr.mxu0 0.0
        %1059 = vmatpush1.msra.mxu0 0.0
        %1060 = vmatprep.subr.mxu0 0.0
        %1061 = vmatpush1.msra.mxu0 0.0
        %1062 = vmatprep.subr.mxu0 0.0
        %1063 = vmatpush1.msra.mxu0 0.0
        %1064 = vmatprep.subr.mxu0 0.0
        %1065 = vmatpush1.msra.mxu0 0.0
        %1066 = vmatprep.subr.mxu0 0.0
        %1067 = vmatpush1.msra.mxu0 0.0
        %1068 = vmatprep.subr.mxu0 0.0
        %1069 = vmatpush1.msra.mxu0 0.0
        %1070 = vmatprep.subr.mxu0 0.0
        %1071 = vmatpush1.msra.mxu0 0.0
        %1072 = vmatprep.subr.mxu0 0.0
        %1073 = vmatpush1.msra.mxu0 0.0
        %1074 = vmatprep.subr.mxu0 0.0
        %1075 = vmatpush1.msra.mxu0 0.0
        %1076 = vmatprep.subr.mxu0 0.0
        %1077 = vmatpush1.msra.mxu0 0.0
        %1078 = vmatprep.subr.mxu0 0.0
        %1079 = vmatpush1.msra.mxu0 0.0
        %1080 = vmatprep.subr.mxu0 0.0
        %1081 = vmatpush1.msra.mxu0 0.0
        %1082 = vmatprep.subr.mxu0 0.0
        %1083 = vmatpush1.msra.mxu0 0.0
        %1084 = vmatprep.subr.mxu0 0.0
        %1085 = vmatpush1.msra.mxu0 0.0
        %1086 = vmatprep.mubr.f32.mxu0 0.0
        %1087 = vmatmul.mubr.f32.gmra.mrb[0].mxu0 %v477
        %v1088 = vpop.f32.mrb[0].mxu0
        %v1089 = vadd.f32 %v1012, %v1088
        %v1090 = vpop.f32.mrb[0].mxu0
        %v1091 = vadd.f32 %v1014, %v1090
        %1092 = vmatprep.mubr.f32.mxu0 0.0
        %1093 = vmatmul.mubr.f32.gmra.mrb[0].mxu0 %v480
        %v1094 = vpop.f32.mrb[0].mxu0
        %v1095 = vadd.f32 %v1018, %v1094
        %v1096 = vpop.f32.mrb[0].mxu0
        %v1097 = vadd.f32 %v1020, %v1096
        %1098 = vdwg.mxu0
        %s1099 = scalar_lea.vmem %s1, 1344
        %v1100 = vld [vmem:[%s1099] sm:$0xff]
        %v1101 = vld [vmem:[%s1099 + $0x8] sm:$0xff]
        %v1102 = vld [vmem:[%s1099 + $0x10] sm:$0xff]
        %v1103 = vld [vmem:[%s1099 + $0x18] sm:$0xff]
        %v1104 = vld [vmem:[%s1099 + $0x20] sm:$0xff]
        %v1105 = vld [vmem:[%s1099 + $0x28] sm:$0xff]
        %v1106 = vld [vmem:[%s1099 + $0x30] sm:$0xff]
        %v1107 = vld [vmem:[%s1099 + $0x38] sm:$0xff]
        %v1108 = vld [vmem:[%s1099 + $0x40] sm:$0xff]
        %v1109 = vld [vmem:[%s1099 + $0x48] sm:$0xff]
        %v1110 = vld [vmem:[%s1099 + $0x50] sm:$0xff]
        %v1111 = vld [vmem:[%s1099 + $0x58] sm:$0xff]
        %v1112 = vld [vmem:[%s1099 + $0x60] sm:$0xff]
        %v1113 = vld [vmem:[%s1099 + $0x68] sm:$0xff]
        %v1114 = vld [vmem:[%s1099 + $0x70] sm:$0xff]
        %v1115 = vld [vmem:[%s1099 + $0x78] sm:$0xff]
        %v1116 = vld [vmem:[%s1099 + $0x80] sm:$0xff]
        %v1117 = vld [vmem:[%s1099 + $0x88] sm:$0xff]
        %v1118 = vld [vmem:[%s1099 + $0x90] sm:$0xff]
        %v1119 = vld [vmem:[%s1099 + $0x98] sm:$0xff]
        %v1120 = vld [vmem:[%s1099 + $0xa0] sm:$0xff]
        %v1121 = vld [vmem:[%s1099 + $0xa8] sm:$0xff]
        %v1122 = vld [vmem:[%s1099 + $0xb0] sm:$0xff]
        %v1123 = vld [vmem:[%s1099 + $0xb8] sm:$0xff]
        %1124 = vmatprep.subr.mxu0 %v1101
        %1125 = vmatpush1.msra.mxu0 %v1100
        %1126 = vmatprep.subr.mxu0 %v1103
        %1127 = vmatpush1.msra.mxu0 %v1102
        %1128 = vmatprep.subr.mxu0 %v1105
        %1129 = vmatpush1.msra.mxu0 %v1104
        %1130 = vmatprep.subr.mxu0 %v1107
        %1131 = vmatpush1.msra.mxu0 %v1106
        %1132 = vmatprep.subr.mxu0 %v1109
        %1133 = vmatpush1.msra.mxu0 %v1108
        %1134 = vmatprep.subr.mxu0 %v1111
        %1135 = vmatpush1.msra.mxu0 %v1110
        %1136 = vmatprep.subr.mxu0 %v1113
        %1137 = vmatpush1.msra.mxu0 %v1112
        %1138 = vmatprep.subr.mxu0 %v1115
        %1139 = vmatpush1.msra.mxu0 %v1114
        %1140 = vmatprep.subr.mxu0 %v1117
        %1141 = vmatpush1.msra.mxu0 %v1116
        %1142 = vmatprep.subr.mxu0 %v1119
        %1143 = vmatpush1.msra.mxu0 %v1118
        %1144 = vmatprep.subr.mxu0 %v1121
        %1145 = vmatpush1.msra.mxu0 %v1120
        %1146 = vmatprep.subr.mxu0 %v1123
        %1147 = vmatpush1.msra.mxu0 %v1122
        %1148 = vmatprep.subr.mxu0 0.0
        %1149 = vmatpush1.msra.mxu0 0.0
        %1150 = vmatprep.subr.mxu0 0.0
        %1151 = vmatpush1.msra.mxu0 0.0
        %1152 = vmatprep.subr.mxu0 0.0
        %1153 = vmatpush1.msra.mxu0 0.0
        %1154 = vmatprep.subr.mxu0 0.0
        %1155 = vmatpush1.msra.mxu0 0.0
        %1156 = vmatprep.subr.mxu0 0.0
        %1157 = vmatpush1.msra.mxu0 0.0
        %1158 = vmatprep.subr.mxu0 0.0
        %1159 = vmatpush1.msra.mxu0 0.0
        %1160 = vmatprep.subr.mxu0 0.0
        %1161 = vmatpush1.msra.mxu0 0.0
        %1162 = vmatprep.subr.mxu0 0.0
        %1163 = vmatpush1.msra.mxu0 0.0
        %1164 = vmatprep.subr.mxu0 0.0
        %1165 = vmatpush1.msra.mxu0 0.0
        %1166 = vmatprep.subr.mxu0 0.0
        %1167 = vmatpush1.msra.mxu0 0.0
        %1168 = vmatprep.subr.mxu0 0.0
        %1169 = vmatpush1.msra.mxu0 0.0
        %1170 = vmatprep.subr.mxu0 0.0
        %1171 = vmatpush1.msra.mxu0 0.0
        %1172 = vmatprep.subr.mxu0 0.0
        %1173 = vmatpush1.msra.mxu0 0.0
        %1174 = vmatprep.subr.mxu0 0.0
        %1175 = vmatpush1.msra.mxu0 0.0
        %1176 = vmatprep.subr.mxu0 0.0
        %1177 = vmatpush1.msra.mxu0 0.0
        %1178 = vmatprep.subr.mxu0 0.0
        %1179 = vmatpush1.msra.mxu0 0.0
        %1180 = vmatprep.subr.mxu0 0.0
        %1181 = vmatpush1.msra.mxu0 0.0
        %1182 = vmatprep.subr.mxu0 0.0
        %1183 = vmatpush1.msra.mxu0 0.0
        %1184 = vmatprep.subr.mxu0 0.0
        %1185 = vmatpush1.msra.mxu0 0.0
        %1186 = vmatprep.subr.mxu0 0.0
        %1187 = vmatpush1.msra.mxu0 0.0
        %1188 = vmatprep.mubr.f32.mxu0 0.0
        %1189 = vmatmul.mubr.f32.gmra.mrb[0].mxu0 %v585
        %v1190 = vpop.f32.mrb[0].mxu0
        %v1191 = vadd.f32 0.0, %v1190
        %v1192 = vpop.f32.mrb[0].mxu0
        %v1193 = vadd.f32 0.0, %v1192
        %1194 = vmatprep.mubr.f32.mxu0 0.0
        %1195 = vmatmul.mubr.f32.gmra.mrb[0].mxu0 %v588
        %v1196 = vpop.f32.mrb[0].mxu0
        %v1197 = vadd.f32 0.0, %v1196
        %v1198 = vpop.f32.mrb[0].mxu0
        %v1199 = vadd.f32 0.0, %v1198
        %1200 = vdwg.mxu0
        %v1201 = vadd.f32 %v1089, %v1191
        %v1202 = vadd.f32 %v1091, %v1193
        %v1203 = vadd.f32 %v1095, %v1197
        %v1204 = vadd.f32 %v1097, %v1199
        %s1205 = scalar_lea.vmem %s1, 1536
        %v1206 = vld [vmem:[%s1205] sm:$0xff]
        %v1207 = vld [vmem:[%s1205 + $0x8] sm:$0xff]
        %v1208 = vld [vmem:[%s1205 + $0x10] sm:$0xff]
        %v1209 = vld [vmem:[%s1205 + $0x18] sm:$0xff]
        %v1210 = vld [vmem:[%s1205 + $0x20] sm:$0xff]
        %v1211 = vld [vmem:[%s1205 + $0x28] sm:$0xff]
        %v1212 = vld [vmem:[%s1205 + $0x30] sm:$0xff]
        %v1213 = vld [vmem:[%s1205 + $0x38] sm:$0xff]
        %v1214 = vld [vmem:[%s1205 + $0x40] sm:$0xff]
        %v1215 = vld [vmem:[%s1205 + $0x48] sm:$0xff]
        %v1216 = vld [vmem:[%s1205 + $0x50] sm:$0xff]
        %v1217 = vld [vmem:[%s1205 + $0x58] sm:$0xff]
        %v1218 = vld [vmem:[%s1205 + $0x60] sm:$0xff]
        %v1219 = vld [vmem:[%s1205 + $0x68] sm:$0xff]
        %v1220 = vld [vmem:[%s1205 + $0x70] sm:$0xff]
        %v1221 = vld [vmem:[%s1205 + $0x78] sm:$0xff]
        %v1222 = vld [vmem:[%s1205 + $0x80] sm:$0xff]
        %v1223 = vld [vmem:[%s1205 + $0x88] sm:$0xff]
        %v1224 = vld [vmem:[%s1205 + $0x90] sm:$0xff]
        %v1225 = vld [vmem:[%s1205 + $0x98] sm:$0xff]
        %v1226 = vld [vmem:[%s1205 + $0xa0] sm:$0xff]
        %v1227 = vld [vmem:[%s1205 + $0xa8] sm:$0xff]
        %v1228 = vld [vmem:[%s1205 + $0xb0] sm:$0xff]
        %v1229 = vld [vmem:[%s1205 + $0xb8] sm:$0xff]
        %1230 = vmatprep.subr.mxu0 %v1207
        %1231 = vmatpush1.msra.mxu0 %v1206
        %1232 = vmatprep.subr.mxu0 %v1209
        %1233 = vmatpush1.msra.mxu0 %v1208
        %1234 = vmatprep.subr.mxu0 %v1211
        %1235 = vmatpush1.msra.mxu0 %v1210
        %1236 = vmatprep.subr.mxu0 %v1213
        %1237 = vmatpush1.msra.mxu0 %v1212
        %1238 = vmatprep.subr.mxu0 %v1215
        %1239 = vmatpush1.msra.mxu0 %v1214
        %1240 = vmatprep.subr.mxu0 %v1217
        %1241 = vmatpush1.msra.mxu0 %v1216
        %1242 = vmatprep.subr.mxu0 %v1219
        %1243 = vmatpush1.msra.mxu0 %v1218
        %1244 = vmatprep.subr.mxu0 %v1221
        %1245 = vmatpush1.msra.mxu0 %v1220
        %1246 = vmatprep.subr.mxu0 %v1223
        %1247 = vmatpush1.msra.mxu0 %v1222
        %1248 = vmatprep.subr.mxu0 %v1225
        %1249 = vmatpush1.msra.mxu0 %v1224
        %1250 = vmatprep.subr.mxu0 %v1227
        %1251 = vmatpush1.msra.mxu0 %v1226
        %1252 = vmatprep.subr.mxu0 %v1229
        %1253 = vmatpush1.msra.mxu0 %v1228
        %1254 = vmatprep.subr.mxu0 0.0
        %1255 = vmatpush1.msra.mxu0 0.0
        %1256 = vmatprep.subr.mxu0 0.0
        %1257 = vmatpush1.msra.mxu0 0.0
        %1258 = vmatprep.subr.mxu0 0.0
        %1259 = vmatpush1.msra.mxu0 0.0
        %1260 = vmatprep.subr.mxu0 0.0
        %1261 = vmatpush1.msra.mxu0 0.0
        %1262 = vmatprep.subr.mxu0 0.0
        %1263 = vmatpush1.msra.mxu0 0.0
        %1264 = vmatprep.subr.mxu0 0.0
        %1265 = vmatpush1.msra.mxu0 0.0
        %1266 = vmatprep.subr.mxu0 0.0
        %1267 = vmatpush1.msra.mxu0 0.0
        %1268 = vmatprep.subr.mxu0 0.0
        %1269 = vmatpush1.msra.mxu0 0.0
        %1270 = vmatprep.subr.mxu0 0.0
        %1271 = vmatpush1.msra.mxu0 0.0
        %1272 = vmatprep.subr.mxu0 0.0
        %1273 = vmatpush1.msra.mxu0 0.0
        %1274 = vmatprep.subr.mxu0 0.0
        %1275 = vmatpush1.msra.mxu0 0.0
        %1276 = vmatprep.subr.mxu0 0.0
        %1277 = vmatpush1.msra.mxu0 0.0
        %1278 = vmatprep.subr.mxu0 0.0
        %1279 = vmatpush1.msra.mxu0 0.0
        %1280 = vmatprep.subr.mxu0 0.0
        %1281 = vmatpush1.msra.mxu0 0.0
        %1282 = vmatprep.subr.mxu0 0.0
        %1283 = vmatpush1.msra.mxu0 0.0
        %1284 = vmatprep.subr.mxu0 0.0
        %1285 = vmatpush1.msra.mxu0 0.0
        %1286 = vmatprep.subr.mxu0 0.0
        %1287 = vmatpush1.msra.mxu0 0.0
        %1288 = vmatprep.subr.mxu0 0.0
        %1289 = vmatpush1.msra.mxu0 0.0
        %1290 = vmatprep.subr.mxu0 0.0
        %1291 = vmatpush1.msra.mxu0 0.0
        %1292 = vmatprep.subr.mxu0 0.0
        %1293 = vmatpush1.msra.mxu0 0.0
        %1294 = vmatprep.mubr.f32.mxu0 0.0
        %1295 = vmatmul.mubr.f32.gmra.mrb[0].mxu0 %v697
        %v1296 = vpop.f32.mrb[0].mxu0
        %v1297 = vadd.f32 0.0, %v1296
        %v1298 = vpop.f32.mrb[0].mxu0
        %v1299 = vadd.f32 0.0, %v1298
        %1300 = vmatprep.mubr.f32.mxu0 0.0
        %1301 = vmatmul.mubr.f32.gmra.mrb[0].mxu0 %v700
        %v1302 = vpop.f32.mrb[0].mxu0
        %v1303 = vadd.f32 0.0, %v1302
        %v1304 = vpop.f32.mrb[0].mxu0
        %v1305 = vadd.f32 0.0, %v1304
        %1306 = vdwg.mxu0
        %v1307 = vadd.f32 %v1201, %v1297
        %v1308 = vadd.f32 %v1202, %v1299
        %v1309 = vadd.f32 %v1203, %v1303
        %v1310 = vadd.f32 %v1204, %v1305
        %s1311 = scalar_lea.vmem %s1, 1728
        %v1312 = vld [vmem:[%s1311] sm:$0xff]
        %v1313 = vld [vmem:[%s1311 + $0x8] sm:$0xff]
        %v1314 = vld [vmem:[%s1311 + $0x10] sm:$0xff]
        %v1315 = vld [vmem:[%s1311 + $0x18] sm:$0xff]
        %v1316 = vld [vmem:[%s1311 + $0x20] sm:$0xff]
        %v1317 = vld [vmem:[%s1311 + $0x28] sm:$0xff]
        %v1318 = vld [vmem:[%s1311 + $0x30] sm:$0xff]
        %v1319 = vld [vmem:[%s1311 + $0x38] sm:$0xff]
        %v1320 = vld [vmem:[%s1311 + $0x40] sm:$0xff]
        %v1321 = vld [vmem:[%s1311 + $0x48] sm:$0xff]
        %v1322 = vld [vmem:[%s1311 + $0x50] sm:$0xff]
        %v1323 = vld [vmem:[%s1311 + $0x58] sm:$0xff]
        %v1324 = vld [vmem:[%s1311 + $0x60] sm:$0xff]
        %v1325 = vld [vmem:[%s1311 + $0x68] sm:$0xff]
        %v1326 = vld [vmem:[%s1311 + $0x70] sm:$0xff]
        %v1327 = vld [vmem:[%s1311 + $0x78] sm:$0xff]
        %v1328 = vld [vmem:[%s1311 + $0x80] sm:$0xff]
        %v1329 = vld [vmem:[%s1311 + $0x88] sm:$0xff]
        %v1330 = vld [vmem:[%s1311 + $0x90] sm:$0xff]
        %v1331 = vld [vmem:[%s1311 + $0x98] sm:$0xff]
        %v1332 = vld [vmem:[%s1311 + $0xa0] sm:$0xff]
        %v1333 = vld [vmem:[%s1311 + $0xa8] sm:$0xff]
        %v1334 = vld [vmem:[%s1311 + $0xb0] sm:$0xff]
        %v1335 = vld [vmem:[%s1311 + $0xb8] sm:$0xff]
        %1336 = vmatprep.subr.mxu0 %v1313
        %1337 = vmatpush1.msra.mxu0 %v1312
        %1338 = vmatprep.subr.mxu0 %v1315
        %1339 = vmatpush1.msra.mxu0 %v1314
        %1340 = vmatprep.subr.mxu0 %v1317
        %1341 = vmatpush1.msra.mxu0 %v1316
        %1342 = vmatprep.subr.mxu0 %v1319
        %1343 = vmatpush1.msra.mxu0 %v1318
        %1344 = vmatprep.subr.mxu0 %v1321
        %1345 = vmatpush1.msra.mxu0 %v1320
        %1346 = vmatprep.subr.mxu0 %v1323
        %1347 = vmatpush1.msra.mxu0 %v1322
        %1348 = vmatprep.subr.mxu0 %v1325
        %1349 = vmatpush1.msra.mxu0 %v1324
        %1350 = vmatprep.subr.mxu0 %v1327
        %1351 = vmatpush1.msra.mxu0 %v1326
        %1352 = vmatprep.subr.mxu0 %v1329
        %1353 = vmatpush1.msra.mxu0 %v1328
        %1354 = vmatprep.subr.mxu0 %v1331
        %1355 = vmatpush1.msra.mxu0 %v1330
        %1356 = vmatprep.subr.mxu0 %v1333
        %1357 = vmatpush1.msra.mxu0 %v1332
        %1358 = vmatprep.subr.mxu0 %v1335
        %1359 = vmatpush1.msra.mxu0 %v1334
        %1360 = vmatprep.subr.mxu0 0.0
        %1361 = vmatpush1.msra.mxu0 0.0
        %1362 = vmatprep.subr.mxu0 0.0
        %1363 = vmatpush1.msra.mxu0 0.0
        %1364 = vmatprep.subr.mxu0 0.0
        %1365 = vmatpush1.msra.mxu0 0.0
        %1366 = vmatprep.subr.mxu0 0.0
        %1367 = vmatpush1.msra.mxu0 0.0
        %1368 = vmatprep.subr.mxu0 0.0
        %1369 = vmatpush1.msra.mxu0 0.0
        %1370 = vmatprep.subr.mxu0 0.0
        %1371 = vmatpush1.msra.mxu0 0.0
        %1372 = vmatprep.subr.mxu0 0.0
        %1373 = vmatpush1.msra.mxu0 0.0
        %1374 = vmatprep.subr.mxu0 0.0
        %1375 = vmatpush1.msra.mxu0 0.0
        %1376 = vmatprep.subr.mxu0 0.0
        %1377 = vmatpush1.msra.mxu0 0.0
        %1378 = vmatprep.subr.mxu0 0.0
        %1379 = vmatpush1.msra.mxu0 0.0
        %1380 = vmatprep.subr.mxu0 0.0
        %1381 = vmatpush1.msra.mxu0 0.0
        %1382 = vmatprep.subr.mxu0 0.0
        %1383 = vmatpush1.msra.mxu0 0.0
        %1384 = vmatprep.subr.mxu0 0.0
        %1385 = vmatpush1.msra.mxu0 0.0
        %1386 = vmatprep.subr.mxu0 0.0
        %1387 = vmatpush1.msra.mxu0 0.0
        %1388 = vmatprep.subr.mxu0 0.0
        %1389 = vmatpush1.msra.mxu0 0.0
        %1390 = vmatprep.subr.mxu0 0.0
        %1391 = vmatpush1.msra.mxu0 0.0
        %1392 = vmatprep.subr.mxu0 0.0
        %1393 = vmatpush1.msra.mxu0 0.0
        %1394 = vmatprep.subr.mxu0 0.0
        %1395 = vmatpush1.msra.mxu0 0.0
        %1396 = vmatprep.subr.mxu0 0.0
        %1397 = vmatpush1.msra.mxu0 0.0
        %1398 = vmatprep.subr.mxu0 0.0
        %1399 = vmatpush1.msra.mxu0 0.0
        %1400 = vmatprep.mubr.f32.mxu0 0.0
        %1401 = vmatmul.mubr.f32.gmra.mrb[0].mxu0 %v809
        %v1402 = vpop.f32.mrb[0].mxu0
        %v1403 = vadd.f32 0.0, %v1402
        %v1404 = vpop.f32.mrb[0].mxu0
        %v1405 = vadd.f32 0.0, %v1404
        %1406 = vmatprep.mubr.f32.mxu0 0.0
        %1407 = vmatmul.mubr.f32.gmra.mrb[0].mxu0 %v812
        %v1408 = vpop.f32.mrb[0].mxu0
        %v1409 = vadd.f32 0.0, %v1408
        %v1410 = vpop.f32.mrb[0].mxu0
        %v1411 = vadd.f32 0.0, %v1410
        %1412 = vdwg.mxu0
        %v1413 = vadd.f32 %v1307, %v1403
        %v1414 = vadd.f32 %v1308, %v1405
        %v1415 = vadd.f32 %v1309, %v1409
        %v1416 = vadd.f32 %v1310, %v1411
        %v1417 = vmax.f32 %v891, %v1413
        %v1418 = vmax.f32 %v892, %v1414
        %v1419 = vmax.f32 %v893, %v1415
        %v1420 = vmax.f32 %v894, %v1416
        %1421 = vmatprep.subr.mxu0 %v369
        %1422 = vmatpush1.msra.mxu0 %v368
        %1423 = vmatprep.subr.mxu0 %v371
        %1424 = vmatpush1.msra.mxu0 %v370
        %1425 = vmatprep.subr.mxu0 %v373
        %1426 = vmatpush1.msra.mxu0 %v372
        %1427 = vmatprep.subr.mxu0 %v375
        %1428 = vmatpush1.msra.mxu0 %v374
        %1429 = vmatprep.subr.mxu0 %v377
        %1430 = vmatpush1.msra.mxu0 %v376
        %1431 = vmatprep.subr.mxu0 %v379
        %1432 = vmatpush1.msra.mxu0 %v378
        %1433 = vmatprep.subr.mxu0 %v381
        %1434 = vmatpush1.msra.mxu0 %v380
        %1435 = vmatprep.subr.mxu0 %v383
        %1436 = vmatpush1.msra.mxu0 %v382
        %1437 = vmatprep.subr.mxu0 %v385
        %1438 = vmatpush1.msra.mxu0 %v384
        %1439 = vmatprep.subr.mxu0 %v387
        %1440 = vmatpush1.msra.mxu0 %v386
        %1441 = vmatprep.subr.mxu0 %v389
        %1442 = vmatpush1.msra.mxu0 %v388
        %1443 = vmatprep.subr.mxu0 %v391
        %1444 = vmatpush1.msra.mxu0 %v390
        %1445 = vmatprep.subr.mxu0 0.0
        %1446 = vmatpush1.msra.mxu0 0.0
        %1447 = vmatprep.subr.mxu0 0.0
        %1448 = vmatpush1.msra.mxu0 0.0
        %1449 = vmatprep.subr.mxu0 0.0
        %1450 = vmatpush1.msra.mxu0 0.0
        %1451 = vmatprep.subr.mxu0 0.0
        %1452 = vmatpush1.msra.mxu0 0.0
        %1453 = vmatprep.subr.mxu0 0.0
        %1454 = vmatpush1.msra.mxu0 0.0
        %1455 = vmatprep.subr.mxu0 0.0
        %1456 = vmatpush1.msra.mxu0 0.0
        %1457 = vmatprep.subr.mxu0 0.0
        %1458 = vmatpush1.msra.mxu0 0.0
        %1459 = vmatprep.subr.mxu0 0.0
        %1460 = vmatpush1.msra.mxu0 0.0
        %1461 = vmatprep.subr.mxu0 0.0
        %1462 = vmatpush1.msra.mxu0 0.0
        %1463 = vmatprep.subr.mxu0 0.0
        %1464 = vmatpush1.msra.mxu0 0.0
        %1465 = vmatprep.subr.mxu0 0.0
        %1466 = vmatpush1.msra.mxu0 0.0
        %1467 = vmatprep.subr.mxu0 0.0
        %1468 = vmatpush1.msra.mxu0 0.0
        %1469 = vmatprep.subr.mxu0 0.0
        %1470 = vmatpush1.msra.mxu0 0.0
        %1471 = vmatprep.subr.mxu0 0.0
        %1472 = vmatpush1.msra.mxu0 0.0
        %1473 = vmatprep.subr.mxu0 0.0
        %1474 = vmatpush1.msra.mxu0 0.0
        %1475 = vmatprep.subr.mxu0 0.0
        %1476 = vmatpush1.msra.mxu0 0.0
        %1477 = vmatprep.subr.mxu0 0.0
        %1478 = vmatpush1.msra.mxu0 0.0
        %1479 = vmatprep.subr.mxu0 0.0
        %1480 = vmatpush1.msra.mxu0 0.0
        %1481 = vmatprep.subr.mxu0 0.0
        %1482 = vmatpush1.msra.mxu0 0.0
        %1483 = vmatprep.subr.mxu0 0.0
        %1484 = vmatpush1.msra.mxu0 0.0
        %1485 = vmatprep.mubr.f32.mxu0 0.0
        %1486 = vmatmul.mubr.f32.gmra.mrb[0].mxu0 %v585
        %v1487 = vpop.f32.mrb[0].mxu0
        %v1488 = vadd.f32 0.0, %v1487
        %v1489 = vpop.f32.mrb[0].mxu0
        %v1490 = vadd.f32 0.0, %v1489
        %1491 = vmatprep.mubr.f32.mxu0 0.0
        %1492 = vmatmul.mubr.f32.gmra.mrb[0].mxu0 %v588
        %v1493 = vpop.f32.mrb[0].mxu0
        %v1494 = vadd.f32 0.0, %v1493
        %v1495 = vpop.f32.mrb[0].mxu0
        %v1496 = vadd.f32 0.0, %v1495
        %1497 = vdwg.mxu0
        %1498 = vmatprep.subr.mxu0 %v344
        %1499 = vmatpush1.msra.mxu0 %v343
        %1500 = vmatprep.subr.mxu0 %v346
        %1501 = vmatpush1.msra.mxu0 %v345
        %1502 = vmatprep.subr.mxu0 %v348
        %1503 = vmatpush1.msra.mxu0 %v347
        %1504 = vmatprep.subr.mxu0 %v350
        %1505 = vmatpush1.msra.mxu0 %v349
        %1506 = vmatprep.subr.mxu0 %v352
        %1507 = vmatpush1.msra.mxu0 %v351
        %1508 = vmatprep.subr.mxu0 %v354
        %1509 = vmatpush1.msra.mxu0 %v353
        %1510 = vmatprep.subr.mxu0 %v356
        %1511 = vmatpush1.msra.mxu0 %v355
        %1512 = vmatprep.subr.mxu0 %v358
        %1513 = vmatpush1.msra.mxu0 %v357
        %1514 = vmatprep.subr.mxu0 %v360
        %1515 = vmatpush1.msra.mxu0 %v359
        %1516 = vmatprep.subr.mxu0 %v362
        %1517 = vmatpush1.msra.mxu0 %v361
        %1518 = vmatprep.subr.mxu0 %v364
        %1519 = vmatpush1.msra.mxu0 %v363
        %1520 = vmatprep.subr.mxu0 %v366
        %1521 = vmatpush1.msra.mxu0 %v365
        %1522 = vmatprep.subr.mxu0 0.0
        %1523 = vmatpush1.msra.mxu0 0.0
        %1524 = vmatprep.subr.mxu0 0.0
        %1525 = vmatpush1.msra.mxu0 0.0
        %1526 = vmatprep.subr.mxu0 0.0
        %1527 = vmatpush1.msra.mxu0 0.0
        %1528 = vmatprep.subr.mxu0 0.0
        %1529 = vmatpush1.msra.mxu0 0.0
        %1530 = vmatprep.subr.mxu0 0.0
        %1531 = vmatpush1.msra.mxu0 0.0
        %1532 = vmatprep.subr.mxu0 0.0
        %1533 = vmatpush1.msra.mxu0 0.0
        %1534 = vmatprep.subr.mxu0 0.0
        %1535 = vmatpush1.msra.mxu0 0.0
        %1536 = vmatprep.subr.mxu0 0.0
        %1537 = vmatpush1.msra.mxu0 0.0
        %1538 = vmatprep.subr.mxu0 0.0
        %1539 = vmatpush1.msra.mxu0 0.0
        %1540 = vmatprep.subr.mxu0 0.0
        %1541 = vmatpush1.msra.mxu0 0.0
        %1542 = vmatprep.subr.mxu0 0.0
        %1543 = vmatpush1.msra.mxu0 0.0
        %1544 = vmatprep.subr.mxu0 0.0
        %1545 = vmatpush1.msra.mxu0 0.0
        %1546 = vmatprep.subr.mxu0 0.0
        %1547 = vmatpush1.msra.mxu0 0.0
        %1548 = vmatprep.subr.mxu0 0.0
        %1549 = vmatpush1.msra.mxu0 0.0
        %1550 = vmatprep.subr.mxu0 0.0
        %1551 = vmatpush1.msra.mxu0 0.0
        %1552 = vmatprep.subr.mxu0 0.0
        %1553 = vmatpush1.msra.mxu0 0.0
        %1554 = vmatprep.subr.mxu0 0.0
        %1555 = vmatpush1.msra.mxu0 0.0
        %1556 = vmatprep.subr.mxu0 0.0
        %1557 = vmatpush1.msra.mxu0 0.0
        %1558 = vmatprep.subr.mxu0 0.0
        %1559 = vmatpush1.msra.mxu0 0.0
        %1560 = vmatprep.subr.mxu0 0.0
        %1561 = vmatpush1.msra.mxu0 0.0
        %1562 = vmatprep.mubr.f32.mxu0 0.0
        %1563 = vmatmul.mubr.f32.gmra.mrb[0].mxu0 %v394
        %v1564 = vpop.f32.mrb[0].mxu0
        %v1565 = vadd.f32 %v1488, %v1564
        %v1566 = vpop.f32.mrb[0].mxu0
        %v1567 = vadd.f32 %v1490, %v1566
        %1568 = vmatprep.mubr.f32.mxu0 0.0
        %1569 = vmatmul.mubr.f32.gmra.mrb[0].mxu0 %v397
        %v1570 = vpop.f32.mrb[0].mxu0
        %v1571 = vadd.f32 %v1494, %v1570
        %v1572 = vpop.f32.mrb[0].mxu0
        %v1573 = vadd.f32 %v1496, %v1572
        %1574 = vdwg.mxu0
        %1575 = vmatprep.subr.mxu0 %v561
        %1576 = vmatpush1.msra.mxu0 %v560
        %1577 = vmatprep.subr.mxu0 %v563
        %1578 = vmatpush1.msra.mxu0 %v562
        %1579 = vmatprep.subr.mxu0 %v565
        %1580 = vmatpush1.msra.mxu0 %v564
        %1581 = vmatprep.subr.mxu0 %v567
        %1582 = vmatpush1.msra.mxu0 %v566
        %1583 = vmatprep.subr.mxu0 %v569
        %1584 = vmatpush1.msra.mxu0 %v568
        %1585 = vmatprep.subr.mxu0 %v571
        %1586 = vmatpush1.msra.mxu0 %v570
        %1587 = vmatprep.subr.mxu0 %v573
        %1588 = vmatpush1.msra.mxu0 %v572
        %1589 = vmatprep.subr.mxu0 %v575
        %1590 = vmatpush1.msra.mxu0 %v574
        %1591 = vmatprep.subr.mxu0 %v577
        %1592 = vmatpush1.msra.mxu0 %v576
        %1593 = vmatprep.subr.mxu0 %v579
        %1594 = vmatpush1.msra.mxu0 %v578
        %1595 = vmatprep.subr.mxu0 %v581
        %1596 = vmatpush1.msra.mxu0 %v580
        %1597 = vmatprep.subr.mxu0 %v583
        %1598 = vmatpush1.msra.mxu0 %v582
        %1599 = vmatprep.subr.mxu0 0.0
        %1600 = vmatpush1.msra.mxu0 0.0
        %1601 = vmatprep.subr.mxu0 0.0
        %1602 = vmatpush1.msra.mxu0 0.0
        %1603 = vmatprep.subr.mxu0 0.0
        %1604 = vmatpush1.msra.mxu0 0.0
        %1605 = vmatprep.subr.mxu0 0.0
        %1606 = vmatpush1.msra.mxu0 0.0
        %1607 = vmatprep.subr.mxu0 0.0
        %1608 = vmatpush1.msra.mxu0 0.0
        %1609 = vmatprep.subr.mxu0 0.0
        %1610 = vmatpush1.msra.mxu0 0.0
        %1611 = vmatprep.subr.mxu0 0.0
        %1612 = vmatpush1.msra.mxu0 0.0
        %1613 = vmatprep.subr.mxu0 0.0
        %1614 = vmatpush1.msra.mxu0 0.0
        %1615 = vmatprep.subr.mxu0 0.0
        %1616 = vmatpush1.msra.mxu0 0.0
        %1617 = vmatprep.subr.mxu0 0.0
        %1618 = vmatpush1.msra.mxu0 0.0
        %1619 = vmatprep.subr.mxu0 0.0
        %1620 = vmatpush1.msra.mxu0 0.0
        %1621 = vmatprep.subr.mxu0 0.0
        %1622 = vmatpush1.msra.mxu0 0.0
        %1623 = vmatprep.subr.mxu0 0.0
        %1624 = vmatpush1.msra.mxu0 0.0
        %1625 = vmatprep.subr.mxu0 0.0
        %1626 = vmatpush1.msra.mxu0 0.0
        %1627 = vmatprep.subr.mxu0 0.0
        %1628 = vmatpush1.msra.mxu0 0.0
        %1629 = vmatprep.subr.mxu0 0.0
        %1630 = vmatpush1.msra.mxu0 0.0
        %1631 = vmatprep.subr.mxu0 0.0
        %1632 = vmatpush1.msra.mxu0 0.0
        %1633 = vmatprep.subr.mxu0 0.0
        %1634 = vmatpush1.msra.mxu0 0.0
        %1635 = vmatprep.subr.mxu0 0.0
        %1636 = vmatpush1.msra.mxu0 0.0
        %1637 = vmatprep.subr.mxu0 0.0
        %1638 = vmatpush1.msra.mxu0 0.0
        %1639 = vmatprep.mubr.f32.mxu0 0.0
        %1640 = vmatmul.mubr.f32.gmra.mrb[0].mxu0 %v697
        %v1641 = vpop.f32.mrb[0].mxu0
        %v1642 = vadd.f32 0.0, %v1641
        %v1643 = vpop.f32.mrb[0].mxu0
        %v1644 = vadd.f32 0.0, %v1643
        %1645 = vmatprep.mubr.f32.mxu0 0.0
        %1646 = vmatmul.mubr.f32.gmra.mrb[0].mxu0 %v700
        %v1647 = vpop.f32.mrb[0].mxu0
        %v1648 = vadd.f32 0.0, %v1647
        %v1649 = vpop.f32.mrb[0].mxu0
        %v1650 = vadd.f32 0.0, %v1649
        %1651 = vdwg.mxu0
        %v1652 = vadd.f32 %v1565, %v1642
        %v1653 = vadd.f32 %v1567, %v1644
        %v1654 = vadd.f32 %v1571, %v1648
        %v1655 = vadd.f32 %v1573, %v1650
        %1656 = vmatprep.subr.mxu0 %v673
        %1657 = vmatpush1.msra.mxu0 %v672
        %1658 = vmatprep.subr.mxu0 %v675
        %1659 = vmatpush1.msra.mxu0 %v674
        %1660 = vmatprep.subr.mxu0 %v677
        %1661 = vmatpush1.msra.mxu0 %v676
        %1662 = vmatprep.subr.mxu0 %v679
        %1663 = vmatpush1.msra.mxu0 %v678
        %1664 = vmatprep.subr.mxu0 %v681
        %1665 = vmatpush1.msra.mxu0 %v680
        %1666 = vmatprep.subr.mxu0 %v683
        %1667 = vmatpush1.msra.mxu0 %v682
        %1668 = vmatprep.subr.mxu0 %v685
        %1669 = vmatpush1.msra.mxu0 %v684
        %1670 = vmatprep.subr.mxu0 %v687
        %1671 = vmatpush1.msra.mxu0 %v686
        %1672 = vmatprep.subr.mxu0 %v689
        %1673 = vmatpush1.msra.mxu0 %v688
        %1674 = vmatprep.subr.mxu0 %v691
        %1675 = vmatpush1.msra.mxu0 %v690
        %1676 = vmatprep.subr.mxu0 %v693
        %1677 = vmatpush1.msra.mxu0 %v692
        %1678 = vmatprep.subr.mxu0 %v695
        %1679 = vmatpush1.msra.mxu0 %v694
        %1680 = vmatprep.subr.mxu0 0.0
        %1681 = vmatpush1.msra.mxu0 0.0
        %1682 = vmatprep.subr.mxu0 0.0
        %1683 = vmatpush1.msra.mxu0 0.0
        %1684 = vmatprep.subr.mxu0 0.0
        %1685 = vmatpush1.msra.mxu0 0.0
        %1686 = vmatprep.subr.mxu0 0.0
        %1687 = vmatpush1.msra.mxu0 0.0
        %1688 = vmatprep.subr.mxu0 0.0
        %1689 = vmatpush1.msra.mxu0 0.0
        %1690 = vmatprep.subr.mxu0 0.0
        %1691 = vmatpush1.msra.mxu0 0.0
        %1692 = vmatprep.subr.mxu0 0.0
        %1693 = vmatpush1.msra.mxu0 0.0
        %1694 = vmatprep.subr.mxu0 0.0
        %1695 = vmatpush1.msra.mxu0 0.0
        %1696 = vmatprep.subr.mxu0 0.0
        %1697 = vmatpush1.msra.mxu0 0.0
        %1698 = vmatprep.subr.mxu0 0.0
        %1699 = vmatpush1.msra.mxu0 0.0
        %1700 = vmatprep.subr.mxu0 0.0
        %1701 = vmatpush1.msra.mxu0 0.0
        %1702 = vmatprep.subr.mxu0 0.0
        %1703 = vmatpush1.msra.mxu0 0.0
        %1704 = vmatprep.subr.mxu0 0.0
        %1705 = vmatpush1.msra.mxu0 0.0
        %1706 = vmatprep.subr.mxu0 0.0
        %1707 = vmatpush1.msra.mxu0 0.0
        %1708 = vmatprep.subr.mxu0 0.0
        %1709 = vmatpush1.msra.mxu0 0.0
        %1710 = vmatprep.subr.mxu0 0.0
        %1711 = vmatpush1.msra.mxu0 0.0
        %1712 = vmatprep.subr.mxu0 0.0
        %1713 = vmatpush1.msra.mxu0 0.0
        %1714 = vmatprep.subr.mxu0 0.0
        %1715 = vmatpush1.msra.mxu0 0.0
        %1716 = vmatprep.subr.mxu0 0.0
        %1717 = vmatpush1.msra.mxu0 0.0
        %1718 = vmatprep.subr.mxu0 0.0
        %1719 = vmatpush1.msra.mxu0 0.0
        %1720 = vmatprep.mubr.f32.mxu0 0.0
        %1721 = vmatmul.mubr.f32.gmra.mrb[0].mxu0 %v809
        %v1722 = vpop.f32.mrb[0].mxu0
        %v1723 = vadd.f32 0.0, %v1722
        %v1724 = vpop.f32.mrb[0].mxu0
        %v1725 = vadd.f32 0.0, %v1724
        %1726 = vmatprep.mubr.f32.mxu0 0.0
        %1727 = vmatmul.mubr.f32.gmra.mrb[0].mxu0 %v812
        %v1728 = vpop.f32.mrb[0].mxu0
        %v1729 = vadd.f32 0.0, %v1728
        %v1730 = vpop.f32.mrb[0].mxu0
        %v1731 = vadd.f32 0.0, %v1730
        %1732 = vdwg.mxu0
        %v1733 = vadd.f32 %v1652, %v1723
        %v1734 = vadd.f32 %v1653, %v1725
        %v1735 = vadd.f32 %v1654, %v1729
        %v1736 = vadd.f32 %v1655, %v1731
        %v1738 = vsel %vm392, %v341, 0
        %v1741 = vsel %vm392, %v342, 0
        %1743 = vmatprep.subr.mxu0 %v785
        %1744 = vmatpush1.msra.mxu0 %v784
        %1745 = vmatprep.subr.mxu0 %v787
        %1746 = vmatpush1.msra.mxu0 %v786
        %1747 = vmatprep.subr.mxu0 %v789
        %1748 = vmatpush1.msra.mxu0 %v788
        %1749 = vmatprep.subr.mxu0 %v791
        %1750 = vmatpush1.msra.mxu0 %v790
        %1751 = vmatprep.subr.mxu0 %v793
        %1752 = vmatpush1.msra.mxu0 %v792
        %1753 = vmatprep.subr.mxu0 %v795
        %1754 = vmatpush1.msra.mxu0 %v794
        %1755 = vmatprep.subr.mxu0 %v797
        %1756 = vmatpush1.msra.mxu0 %v796
        %1757 = vmatprep.subr.mxu0 %v799
        %1758 = vmatpush1.msra.mxu0 %v798
        %1759 = vmatprep.subr.mxu0 %v801
        %1760 = vmatpush1.msra.mxu0 %v800
        %1761 = vmatprep.subr.mxu0 %v803
        %1762 = vmatpush1.msra.mxu0 %v802
        %1763 = vmatprep.subr.mxu0 %v805
        %1764 = vmatpush1.msra.mxu0 %v804
        %1765 = vmatprep.subr.mxu0 %v807
        %1766 = vmatpush1.msra.mxu0 %v806
        %1767 = vmatprep.subr.mxu0 0.0
        %1768 = vmatpush1.msra.mxu0 0.0
        %1769 = vmatprep.subr.mxu0 0.0
        %1770 = vmatpush1.msra.mxu0 0.0
        %1771 = vmatprep.subr.mxu0 0.0
        %1772 = vmatpush1.msra.mxu0 0.0
        %1773 = vmatprep.subr.mxu0 0.0
        %1774 = vmatpush1.msra.mxu0 0.0
        %1775 = vmatprep.subr.mxu0 0.0
        %1776 = vmatpush1.msra.mxu0 0.0
        %1777 = vmatprep.subr.mxu0 0.0
        %1778 = vmatpush1.msra.mxu0 0.0
        %1779 = vmatprep.subr.mxu0 0.0
        %1780 = vmatpush1.msra.mxu0 0.0
        %1781 = vmatprep.subr.mxu0 0.0
        %1782 = vmatpush1.msra.mxu0 0.0
        %1783 = vmatprep.subr.mxu0 0.0
        %1784 = vmatpush1.msra.mxu0 0.0
        %1785 = vmatprep.subr.mxu0 0.0
        %1786 = vmatpush1.msra.mxu0 0.0
        %1787 = vmatprep.subr.mxu0 0.0
        %1788 = vmatpush1.msra.mxu0 0.0
        %1789 = vmatprep.subr.mxu0 0.0
        %1790 = vmatpush1.msra.mxu0 0.0
        %1791 = vmatprep.subr.mxu0 0.0
        %1792 = vmatpush1.msra.mxu0 0.0
        %1793 = vmatprep.subr.mxu0 0.0
        %1794 = vmatpush1.msra.mxu0 0.0
        %1795 = vmatprep.subr.mxu0 0.0
        %1796 = vmatpush1.msra.mxu0 0.0
        %1797 = vmatprep.subr.mxu0 0.0
        %1798 = vmatpush1.msra.mxu0 0.0
        %1799 = vmatprep.subr.mxu0 0.0
        %1800 = vmatpush1.msra.mxu0 0.0
        %1801 = vmatprep.subr.mxu0 0.0
        %1802 = vmatpush1.msra.mxu0 0.0
        %1803 = vmatprep.subr.mxu0 0.0
        %1804 = vmatpush1.msra.mxu0 0.0
        %1805 = vmatprep.subr.mxu0 0.0
        %1806 = vmatpush1.msra.mxu0 0.0
        %1807 = vmatprep.mubr.f32.mxu0 0.0
        %1808 = vmatmul.mubr.f32.gmra.mrb[0].mxu0 %v1738
        %v1809 = vpop.f32.mrb[0].mxu0
        %v1810 = vadd.f32 0.0, %v1809
        %v1811 = vpop.f32.mrb[0].mxu0
        %v1812 = vadd.f32 0.0, %v1811
        %1813 = vmatprep.mubr.f32.mxu0 0.0
        %1814 = vmatmul.mubr.f32.gmra.mrb[0].mxu0 %v1741
        %v1815 = vpop.f32.mrb[0].mxu0
        %v1816 = vadd.f32 0.0, %v1815
        %v1817 = vpop.f32.mrb[0].mxu0
        %v1818 = vadd.f32 0.0, %v1817
        %1819 = vdwg.mxu0
        %v1820 = vadd.f32 %v1733, %v1810
        %v1821 = vadd.f32 %v1734, %v1812
        %v1822 = vadd.f32 %v1735, %v1816
        %v1823 = vadd.f32 %v1736, %v1818
        %v1824 = vmax.f32 %v1417, %v1820
        %v1825 = vmax.f32 %v1418, %v1821
        %v1826 = vmax.f32 %v1419, %v1822
        %v1827 = vmax.f32 %v1420, %v1823
        %1828 = vmatprep.subr.mxu0 %v922
        %1829 = vmatpush1.msra.mxu0 %v921
        %1830 = vmatprep.subr.mxu0 %v924
        %1831 = vmatpush1.msra.mxu0 %v923
        %1832 = vmatprep.subr.mxu0 %v926
        %1833 = vmatpush1.msra.mxu0 %v925
        %1834 = vmatprep.subr.mxu0 %v928
        %1835 = vmatpush1.msra.mxu0 %v927
        %1836 = vmatprep.subr.mxu0 %v930
        %1837 = vmatpush1.msra.mxu0 %v929
        %1838 = vmatprep.subr.mxu0 %v932
        %1839 = vmatpush1.msra.mxu0 %v931
        %1840 = vmatprep.subr.mxu0 %v934
        %1841 = vmatpush1.msra.mxu0 %v933
        %1842 = vmatprep.subr.mxu0 %v936
        %1843 = vmatpush1.msra.mxu0 %v935
        %1844 = vmatprep.subr.mxu0 %v938
        %1845 = vmatpush1.msra.mxu0 %v937
        %1846 = vmatprep.subr.mxu0 %v940
        %1847 = vmatpush1.msra.mxu0 %v939
        %1848 = vmatprep.subr.mxu0 %v942
        %1849 = vmatpush1.msra.mxu0 %v941
        %1850 = vmatprep.subr.mxu0 %v944
        %1851 = vmatpush1.msra.mxu0 %v943
        %1852 = vmatprep.subr.mxu0 0.0
        %1853 = vmatpush1.msra.mxu0 0.0
        %1854 = vmatprep.subr.mxu0 0.0
        %1855 = vmatpush1.msra.mxu0 0.0
        %1856 = vmatprep.subr.mxu0 0.0
        %1857 = vmatpush1.msra.mxu0 0.0
        %1858 = vmatprep.subr.mxu0 0.0
        %1859 = vmatpush1.msra.mxu0 0.0
        %1860 = vmatprep.subr.mxu0 0.0
        %1861 = vmatpush1.msra.mxu0 0.0
        %1862 = vmatprep.subr.mxu0 0.0
        %1863 = vmatpush1.msra.mxu0 0.0
        %1864 = vmatprep.subr.mxu0 0.0
        %1865 = vmatpush1.msra.mxu0 0.0
        %1866 = vmatprep.subr.mxu0 0.0
        %1867 = vmatpush1.msra.mxu0 0.0
        %1868 = vmatprep.subr.mxu0 0.0
        %1869 = vmatpush1.msra.mxu0 0.0
        %1870 = vmatprep.subr.mxu0 0.0
        %1871 = vmatpush1.msra.mxu0 0.0
        %1872 = vmatprep.subr.mxu0 0.0
        %1873 = vmatpush1.msra.mxu0 0.0
        %1874 = vmatprep.subr.mxu0 0.0
        %1875 = vmatpush1.msra.mxu0 0.0
        %1876 = vmatprep.subr.mxu0 0.0
        %1877 = vmatpush1.msra.mxu0 0.0
        %1878 = vmatprep.subr.mxu0 0.0
        %1879 = vmatpush1.msra.mxu0 0.0
        %1880 = vmatprep.subr.mxu0 0.0
        %1881 = vmatpush1.msra.mxu0 0.0
        %1882 = vmatprep.subr.mxu0 0.0
        %1883 = vmatpush1.msra.mxu0 0.0
        %1884 = vmatprep.subr.mxu0 0.0
        %1885 = vmatpush1.msra.mxu0 0.0
        %1886 = vmatprep.subr.mxu0 0.0
        %1887 = vmatpush1.msra.mxu0 0.0
        %1888 = vmatprep.subr.mxu0 0.0
        %1889 = vmatpush1.msra.mxu0 0.0
        %1890 = vmatprep.subr.mxu0 0.0
        %1891 = vmatpush1.msra.mxu0 0.0
        %1892 = vmatprep.mubr.f32.mxu0 0.0
        %1893 = vmatmul.mubr.f32.gmra.mrb[0].mxu0 %v585
        %v1894 = vpop.f32.mrb[0].mxu0
        %v1895 = vadd.f32 0.0, %v1894
        %v1896 = vpop.f32.mrb[0].mxu0
        %v1897 = vadd.f32 0.0, %v1896
        %1898 = vmatprep.mubr.f32.mxu0 0.0
        %1899 = vmatmul.mubr.f32.gmra.mrb[0].mxu0 %v588
        %v1900 = vpop.f32.mrb[0].mxu0
        %v1901 = vadd.f32 0.0, %v1900
        %v1902 = vpop.f32.mrb[0].mxu0
        %v1903 = vadd.f32 0.0, %v1902
        %1904 = vdwg.mxu0
        %1905 = vmatprep.subr.mxu0 %v897
        %1906 = vmatpush1.msra.mxu0 %v896
        %1907 = vmatprep.subr.mxu0 %v899
        %1908 = vmatpush1.msra.mxu0 %v898
        %1909 = vmatprep.subr.mxu0 %v901
        %1910 = vmatpush1.msra.mxu0 %v900
        %1911 = vmatprep.subr.mxu0 %v903
        %1912 = vmatpush1.msra.mxu0 %v902
        %1913 = vmatprep.subr.mxu0 %v905
        %1914 = vmatpush1.msra.mxu0 %v904
        %1915 = vmatprep.subr.mxu0 %v907
        %1916 = vmatpush1.msra.mxu0 %v906
        %1917 = vmatprep.subr.mxu0 %v909
        %1918 = vmatpush1.msra.mxu0 %v908
        %1919 = vmatprep.subr.mxu0 %v911
        %1920 = vmatpush1.msra.mxu0 %v910
        %1921 = vmatprep.subr.mxu0 %v913
        %1922 = vmatpush1.msra.mxu0 %v912
        %1923 = vmatprep.subr.mxu0 %v915
        %1924 = vmatpush1.msra.mxu0 %v914
        %1925 = vmatprep.subr.mxu0 %v917
        %1926 = vmatpush1.msra.mxu0 %v916
        %1927 = vmatprep.subr.mxu0 %v919
        %1928 = vmatpush1.msra.mxu0 %v918
        %1929 = vmatprep.subr.mxu0 0.0
        %1930 = vmatpush1.msra.mxu0 0.0
        %1931 = vmatprep.subr.mxu0 0.0
        %1932 = vmatpush1.msra.mxu0 0.0
        %1933 = vmatprep.subr.mxu0 0.0
        %1934 = vmatpush1.msra.mxu0 0.0
        %1935 = vmatprep.subr.mxu0 0.0
        %1936 = vmatpush1.msra.mxu0 0.0
        %1937 = vmatprep.subr.mxu0 0.0
        %1938 = vmatpush1.msra.mxu0 0.0
        %1939 = vmatprep.subr.mxu0 0.0
        %1940 = vmatpush1.msra.mxu0 0.0
        %1941 = vmatprep.subr.mxu0 0.0
        %1942 = vmatpush1.msra.mxu0 0.0
        %1943 = vmatprep.subr.mxu0 0.0
        %1944 = vmatpush1.msra.mxu0 0.0
        %1945 = vmatprep.subr.mxu0 0.0
        %1946 = vmatpush1.msra.mxu0 0.0
        %1947 = vmatprep.subr.mxu0 0.0
        %1948 = vmatpush1.msra.mxu0 0.0
        %1949 = vmatprep.subr.mxu0 0.0
        %1950 = vmatpush1.msra.mxu0 0.0
        %1951 = vmatprep.subr.mxu0 0.0
        %1952 = vmatpush1.msra.mxu0 0.0
        %1953 = vmatprep.subr.mxu0 0.0
        %1954 = vmatpush1.msra.mxu0 0.0
        %1955 = vmatprep.subr.mxu0 0.0
        %1956 = vmatpush1.msra.mxu0 0.0
        %1957 = vmatprep.subr.mxu0 0.0
        %1958 = vmatpush1.msra.mxu0 0.0
        %1959 = vmatprep.subr.mxu0 0.0
        %1960 = vmatpush1.msra.mxu0 0.0
        %1961 = vmatprep.subr.mxu0 0.0
        %1962 = vmatpush1.msra.mxu0 0.0
        %1963 = vmatprep.subr.mxu0 0.0
        %1964 = vmatpush1.msra.mxu0 0.0
        %1965 = vmatprep.subr.mxu0 0.0
        %1966 = vmatpush1.msra.mxu0 0.0
        %1967 = vmatprep.subr.mxu0 0.0
        %1968 = vmatpush1.msra.mxu0 0.0
        %1969 = vmatprep.mubr.f32.mxu0 0.0
        %1970 = vmatmul.mubr.f32.gmra.mrb[0].mxu0 %v394
        %v1971 = vpop.f32.mrb[0].mxu0
        %v1972 = vadd.f32 %v1895, %v1971
        %v1973 = vpop.f32.mrb[0].mxu0
        %v1974 = vadd.f32 %v1897, %v1973
        %1975 = vmatprep.mubr.f32.mxu0 0.0
        %1976 = vmatmul.mubr.f32.gmra.mrb[0].mxu0 %v397
        %v1977 = vpop.f32.mrb[0].mxu0
        %v1978 = vadd.f32 %v1901, %v1977
        %v1979 = vpop.f32.mrb[0].mxu0
        %v1980 = vadd.f32 %v1903, %v1979
        %1981 = vdwg.mxu0
        %1982 = vmatprep.subr.mxu0 %v1101
        %1983 = vmatpush1.msra.mxu0 %v1100
        %1984 = vmatprep.subr.mxu0 %v1103
        %1985 = vmatpush1.msra.mxu0 %v1102
        %1986 = vmatprep.subr.mxu0 %v1105
        %1987 = vmatpush1.msra.mxu0 %v1104
        %1988 = vmatprep.subr.mxu0 %v1107
        %1989 = vmatpush1.msra.mxu0 %v1106
        %1990 = vmatprep.subr.mxu0 %v1109
        %1991 = vmatpush1.msra.mxu0 %v1108
        %1992 = vmatprep.subr.mxu0 %v1111
        %1993 = vmatpush1.msra.mxu0 %v1110
        %1994 = vmatprep.subr.mxu0 %v1113
        %1995 = vmatpush1.msra.mxu0 %v1112
        %1996 = vmatprep.subr.mxu0 %v1115
        %1997 = vmatpush1.msra.mxu0 %v1114
        %1998 = vmatprep.subr.mxu0 %v1117
        %1999 = vmatpush1.msra.mxu0 %v1116
        %2000 = vmatprep.subr.mxu0 %v1119
        %2001 = vmatpush1.msra.mxu0 %v1118
        %2002 = vmatprep.subr.mxu0 %v1121
        %2003 = vmatpush1.msra.mxu0 %v1120
        %2004 = vmatprep.subr.mxu0 %v1123
        %2005 = vmatpush1.msra.mxu0 %v1122
        %2006 = vmatprep.subr.mxu0 0.0
        %2007 = vmatpush1.msra.mxu0 0.0
        %2008 = vmatprep.subr.mxu0 0.0
        %2009 = vmatpush1.msra.mxu0 0.0
        %2010 = vmatprep.subr.mxu0 0.0
        %2011 = vmatpush1.msra.mxu0 0.0
        %2012 = vmatprep.subr.mxu0 0.0
        %2013 = vmatpush1.msra.mxu0 0.0
        %2014 = vmatprep.subr.mxu0 0.0
        %2015 = vmatpush1.msra.mxu0 0.0
        %2016 = vmatprep.subr.mxu0 0.0
        %2017 = vmatpush1.msra.mxu0 0.0
        %2018 = vmatprep.subr.mxu0 0.0
        %2019 = vmatpush1.msra.mxu0 0.0
        %2020 = vmatprep.subr.mxu0 0.0
        %2021 = vmatpush1.msra.mxu0 0.0
        %2022 = vmatprep.subr.mxu0 0.0
        %2023 = vmatpush1.msra.mxu0 0.0
        %2024 = vmatprep.subr.mxu0 0.0
        %2025 = vmatpush1.msra.mxu0 0.0
        %2026 = vmatprep.subr.mxu0 0.0
        %2027 = vmatpush1.msra.mxu0 0.0
        %2028 = vmatprep.subr.mxu0 0.0
        %2029 = vmatpush1.msra.mxu0 0.0
        %2030 = vmatprep.subr.mxu0 0.0
        %2031 = vmatpush1.msra.mxu0 0.0
        %2032 = vmatprep.subr.mxu0 0.0
        %2033 = vmatpush1.msra.mxu0 0.0
        %2034 = vmatprep.subr.mxu0 0.0
        %2035 = vmatpush1.msra.mxu0 0.0
        %2036 = vmatprep.subr.mxu0 0.0
        %2037 = vmatpush1.msra.mxu0 0.0
        %2038 = vmatprep.subr.mxu0 0.0
        %2039 = vmatpush1.msra.mxu0 0.0
        %2040 = vmatprep.subr.mxu0 0.0
        %2041 = vmatpush1.msra.mxu0 0.0
        %2042 = vmatprep.subr.mxu0 0.0
        %2043 = vmatpush1.msra.mxu0 0.0
        %2044 = vmatprep.subr.mxu0 0.0
        %2045 = vmatpush1.msra.mxu0 0.0
        %2046 = vmatprep.mubr.f32.mxu0 0.0
        %2047 = vmatmul.mubr.f32.gmra.mrb[0].mxu0 %v697
        %v2048 = vpop.f32.mrb[0].mxu0
        %v2049 = vadd.f32 0.0, %v2048
        %v2050 = vpop.f32.mrb[0].mxu0
        %v2051 = vadd.f32 0.0, %v2050
        %2052 = vmatprep.mubr.f32.mxu0 0.0
        %2053 = vmatmul.mubr.f32.gmra.mrb[0].mxu0 %v700
        %v2054 = vpop.f32.mrb[0].mxu0
        %v2055 = vadd.f32 0.0, %v2054
        %v2056 = vpop.f32.mrb[0].mxu0
        %v2057 = vadd.f32 0.0, %v2056
        %2058 = vdwg.mxu0
        %v2059 = vadd.f32 %v1972, %v2049
        %v2060 = vadd.f32 %v1974, %v2051
        %v2061 = vadd.f32 %v1978, %v2055
        %v2062 = vadd.f32 %v1980, %v2057
        %2063 = vmatprep.subr.mxu0 %v1207
        %2064 = vmatpush1.msra.mxu0 %v1206
        %2065 = vmatprep.subr.mxu0 %v1209
        %2066 = vmatpush1.msra.mxu0 %v1208
        %2067 = vmatprep.subr.mxu0 %v1211
        %2068 = vmatpush1.msra.mxu0 %v1210
        %2069 = vmatprep.subr.mxu0 %v1213
        %2070 = vmatpush1.msra.mxu0 %v1212
        %2071 = vmatprep.subr.mxu0 %v1215
        %2072 = vmatpush1.msra.mxu0 %v1214
        %2073 = vmatprep.subr.mxu0 %v1217
        %2074 = vmatpush1.msra.mxu0 %v1216
        %2075 = vmatprep.subr.mxu0 %v1219
        %2076 = vmatpush1.msra.mxu0 %v1218
        %2077 = vmatprep.subr.mxu0 %v1221
        %2078 = vmatpush1.msra.mxu0 %v1220
        %2079 = vmatprep.subr.mxu0 %v1223
        %2080 = vmatpush1.msra.mxu0 %v1222
        %2081 = vmatprep.subr.mxu0 %v1225
        %2082 = vmatpush1.msra.mxu0 %v1224
        %2083 = vmatprep.subr.mxu0 %v1227
        %2084 = vmatpush1.msra.mxu0 %v1226
        %2085 = vmatprep.subr.mxu0 %v1229
        %2086 = vmatpush1.msra.mxu0 %v1228
        %2087 = vmatprep.subr.mxu0 0.0
        %2088 = vmatpush1.msra.mxu0 0.0
        %2089 = vmatprep.subr.mxu0 0.0
        %2090 = vmatpush1.msra.mxu0 0.0
        %2091 = vmatprep.subr.mxu0 0.0
        %2092 = vmatpush1.msra.mxu0 0.0
        %2093 = vmatprep.subr.mxu0 0.0
        %2094 = vmatpush1.msra.mxu0 0.0
        %2095 = vmatprep.subr.mxu0 0.0
        %2096 = vmatpush1.msra.mxu0 0.0
        %2097 = vmatprep.subr.mxu0 0.0
        %2098 = vmatpush1.msra.mxu0 0.0
        %2099 = vmatprep.subr.mxu0 0.0
        %2100 = vmatpush1.msra.mxu0 0.0
        %2101 = vmatprep.subr.mxu0 0.0
        %2102 = vmatpush1.msra.mxu0 0.0
        %2103 = vmatprep.subr.mxu0 0.0
        %2104 = vmatpush1.msra.mxu0 0.0
        %2105 = vmatprep.subr.mxu0 0.0
        %2106 = vmatpush1.msra.mxu0 0.0
        %2107 = vmatprep.subr.mxu0 0.0
        %2108 = vmatpush1.msra.mxu0 0.0
        %2109 = vmatprep.subr.mxu0 0.0
        %2110 = vmatpush1.msra.mxu0 0.0
        %2111 = vmatprep.subr.mxu0 0.0
        %2112 = vmatpush1.msra.mxu0 0.0
        %2113 = vmatprep.subr.mxu0 0.0
        %2114 = vmatpush1.msra.mxu0 0.0
        %2115 = vmatprep.subr.mxu0 0.0
        %2116 = vmatpush1.msra.mxu0 0.0
        %2117 = vmatprep.subr.mxu0 0.0
        %2118 = vmatpush1.msra.mxu0 0.0
        %2119 = vmatprep.subr.mxu0 0.0
        %2120 = vmatpush1.msra.mxu0 0.0
        %2121 = vmatprep.subr.mxu0 0.0
        %2122 = vmatpush1.msra.mxu0 0.0
        %2123 = vmatprep.subr.mxu0 0.0
        %2124 = vmatpush1.msra.mxu0 0.0
        %2125 = vmatprep.subr.mxu0 0.0
        %2126 = vmatpush1.msra.mxu0 0.0
        %2127 = vmatprep.mubr.f32.mxu0 0.0
        %2128 = vmatmul.mubr.f32.gmra.mrb[0].mxu0 %v809
        %v2129 = vpop.f32.mrb[0].mxu0
        %v2130 = vadd.f32 0.0, %v2129
        %v2131 = vpop.f32.mrb[0].mxu0
        %v2132 = vadd.f32 0.0, %v2131
        %2133 = vmatprep.mubr.f32.mxu0 0.0
        %2134 = vmatmul.mubr.f32.gmra.mrb[0].mxu0 %v812
        %v2135 = vpop.f32.mrb[0].mxu0
        %v2136 = vadd.f32 0.0, %v2135
        %v2137 = vpop.f32.mrb[0].mxu0
        %v2138 = vadd.f32 0.0, %v2137
        %2139 = vdwg.mxu0
        %v2140 = vadd.f32 %v2059, %v2130
        %v2141 = vadd.f32 %v2060, %v2132
        %v2142 = vadd.f32 %v2061, %v2136
        %v2143 = vadd.f32 %v2062, %v2138
        %2144 = vmatprep.subr.mxu0 %v1313
        %2145 = vmatpush1.msra.mxu0 %v1312
        %2146 = vmatprep.subr.mxu0 %v1315
        %2147 = vmatpush1.msra.mxu0 %v1314
        %2148 = vmatprep.subr.mxu0 %v1317
        %2149 = vmatpush1.msra.mxu0 %v1316
        %2150 = vmatprep.subr.mxu0 %v1319
        %2151 = vmatpush1.msra.mxu0 %v1318
        %2152 = vmatprep.subr.mxu0 %v1321
        %2153 = vmatpush1.msra.mxu0 %v1320
        %2154 = vmatprep.subr.mxu0 %v1323
        %2155 = vmatpush1.msra.mxu0 %v1322
        %2156 = vmatprep.subr.mxu0 %v1325
        %2157 = vmatpush1.msra.mxu0 %v1324
        %2158 = vmatprep.subr.mxu0 %v1327
        %2159 = vmatpush1.msra.mxu0 %v1326
        %2160 = vmatprep.subr.mxu0 %v1329
        %2161 = vmatpush1.msra.mxu0 %v1328
        %2162 = vmatprep.subr.mxu0 %v1331
        %2163 = vmatpush1.msra.mxu0 %v1330
        %2164 = vmatprep.subr.mxu0 %v1333
        %2165 = vmatpush1.msra.mxu0 %v1332
        %2166 = vmatprep.subr.mxu0 %v1335
        %2167 = vmatpush1.msra.mxu0 %v1334
        %2168 = vmatprep.subr.mxu0 0.0
        %2169 = vmatpush1.msra.mxu0 0.0
        %2170 = vmatprep.subr.mxu0 0.0
        %2171 = vmatpush1.msra.mxu0 0.0
        %2172 = vmatprep.subr.mxu0 0.0
        %2173 = vmatpush1.msra.mxu0 0.0
        %2174 = vmatprep.subr.mxu0 0.0
        %2175 = vmatpush1.msra.mxu0 0.0
        %2176 = vmatprep.subr.mxu0 0.0
        %2177 = vmatpush1.msra.mxu0 0.0
        %2178 = vmatprep.subr.mxu0 0.0
        %2179 = vmatpush1.msra.mxu0 0.0
        %2180 = vmatprep.subr.mxu0 0.0
        %2181 = vmatpush1.msra.mxu0 0.0
        %2182 = vmatprep.subr.mxu0 0.0
        %2183 = vmatpush1.msra.mxu0 0.0
        %2184 = vmatprep.subr.mxu0 0.0
        %2185 = vmatpush1.msra.mxu0 0.0
        %2186 = vmatprep.subr.mxu0 0.0
        %2187 = vmatpush1.msra.mxu0 0.0
        %2188 = vmatprep.subr.mxu0 0.0
        %2189 = vmatpush1.msra.mxu0 0.0
        %2190 = vmatprep.subr.mxu0 0.0
        %2191 = vmatpush1.msra.mxu0 0.0
        %2192 = vmatprep.subr.mxu0 0.0
        %2193 = vmatpush1.msra.mxu0 0.0
        %2194 = vmatprep.subr.mxu0 0.0
        %2195 = vmatpush1.msra.mxu0 0.0
        %2196 = vmatprep.subr.mxu0 0.0
        %2197 = vmatpush1.msra.mxu0 0.0
        %2198 = vmatprep.subr.mxu0 0.0
        %2199 = vmatpush1.msra.mxu0 0.0
        %2200 = vmatprep.subr.mxu0 0.0
        %2201 = vmatpush1.msra.mxu0 0.0
        %2202 = vmatprep.subr.mxu0 0.0
        %2203 = vmatpush1.msra.mxu0 0.0
        %2204 = vmatprep.subr.mxu0 0.0
        %2205 = vmatpush1.msra.mxu0 0.0
        %2206 = vmatprep.subr.mxu0 0.0
        %2207 = vmatpush1.msra.mxu0 0.0
        %2208 = vmatprep.mubr.f32.mxu0 0.0
        %2209 = vmatmul.mubr.f32.gmra.mrb[0].mxu0 %v1738
        %v2210 = vpop.f32.mrb[0].mxu0
        %v2211 = vadd.f32 0.0, %v2210
        %v2212 = vpop.f32.mrb[0].mxu0
        %v2213 = vadd.f32 0.0, %v2212
        %2214 = vmatprep.mubr.f32.mxu0 0.0
        %2215 = vmatmul.mubr.f32.gmra.mrb[0].mxu0 %v1741
        %v2216 = vpop.f32.mrb[0].mxu0
        %v2217 = vadd.f32 0.0, %v2216
        %v2218 = vpop.f32.mrb[0].mxu0
        %v2219 = vadd.f32 0.0, %v2218
        %2220 = vdwg.mxu0
        %v2221 = vadd.f32 %v2140, %v2211
        %v2222 = vadd.f32 %v2141, %v2213
        %v2223 = vadd.f32 %v2142, %v2217
        %v2224 = vadd.f32 %v2143, %v2219
        %v2225 = vmax.f32 %v1824, %v2221
        %v2226 = vmax.f32 %v1825, %v2222
        %v2227 = vmax.f32 %v1826, %v2223
        %v2228 = vmax.f32 %v1827, %v2224
        %v2229 = vld [vmem:[%s2] sm:$0x3]
        %v2231 = vlaneseq
        %v2232 = vshrl.u32 %v2231, 7
        %v2233 = vsub.s32 0, %v2232
        %v2234 = vrot.slane %v2229, %v2233
        %v2235 = vlaneseq
        %v2236 = vshrl.u32 %v2235, 7
        %v2237 = vsub.s32 1, %v2236
        %v2238 = vrot.slane %v2229, %v2237
        %v2241 = vadd.f32 %v2225, %v2234
        %v2242 = vadd.f32 %v2226, %v2238
        %v2243 = vadd.f32 %v2227, %v2234
        %v2244 = vadd.f32 %v2228, %v2238
        %v2245 = vmax.f32 %v2241, 0.0
        %v2246 = vmax.f32 %v2242, 0.0
        %v2247 = vmax.f32 %v2243, 0.0
        %v2248 = vmax.f32 %v2244, 0.0
        %v2249 = vld [vmem:[%s3] sm:$0xff]
        %v2250 = vld [vmem:[%s3 + $0x8] sm:$0xff]
        %v2251 = vld [vmem:[%s3 + $0x10] sm:$0xff]
        %v2252 = vld [vmem:[%s3 + $0x18] sm:$0xff]
        %v2253 = vld [vmem:[%s3 + $0x20] sm:$0xff]
        %v2254 = vld [vmem:[%s3 + $0x28] sm:$0xff]
        %v2255 = vld [vmem:[%s3 + $0x30] sm:$0xff]
        %v2256 = vld [vmem:[%s3 + $0x38] sm:$0xff]
        %v2257 = vld [vmem:[%s3 + $0x40] sm:$0xff]
        %v2258 = vld [vmem:[%s3 + $0x48] sm:$0xff]
        %v2259 = vld [vmem:[%s3 + $0x50] sm:$0xff]
        %v2260 = vld [vmem:[%s3 + $0x58] sm:$0xff]
        %v2261 = vld [vmem:[%s3 + $0x60] sm:$0xff]
        %v2262 = vld [vmem:[%s3 + $0x68] sm:$0xff]
        %v2263 = vld [vmem:[%s3 + $0x70] sm:$0xff]
        %v2264 = vld [vmem:[%s3 + $0x78] sm:$0xff]
        %v2265 = vld [vmem:[%s3 + $0x80] sm:$0xff]
        %v2266 = vld [vmem:[%s3 + $0x88] sm:$0xff]
        %v2267 = vld [vmem:[%s3 + $0x90] sm:$0xff]
        %v2268 = vld [vmem:[%s3 + $0x98] sm:$0xff]
        %v2269 = vld [vmem:[%s3 + $0xa0] sm:$0xff]
        %v2270 = vld [vmem:[%s3 + $0xa8] sm:$0xff]
        %v2271 = vld [vmem:[%s3 + $0xb0] sm:$0xff]
        %v2272 = vld [vmem:[%s3 + $0xb8] sm:$0xff]
        %v2273 = vld [vmem:[%s3 + $0xc0] sm:$0xff]
        %v2274 = vld [vmem:[%s3 + $0xc8] sm:$0xff]
        %v2275 = vld [vmem:[%s3 + $0xd0] sm:$0xff]
        %v2276 = vld [vmem:[%s3 + $0xd8] sm:$0xff]
        %v2277 = vld [vmem:[%s3 + $0xe0] sm:$0xff]
        %v2278 = vld [vmem:[%s3 + $0xe8] sm:$0xff]
        %v2279 = vld [vmem:[%s3 + $0xf0] sm:$0xff]
        %v2280 = vld [vmem:[%s3 + $0xf8] sm:$0xff]
        %v2281 = vld [vmem:[%s3 + $0x100] sm:$0xff]
        %v2282 = vld [vmem:[%s3 + $0x108] sm:$0xff]
        %v2283 = vld [vmem:[%s3 + $0x110] sm:$0xff]
        %v2284 = vld [vmem:[%s3 + $0x118] sm:$0xff]
        %v2285 = vld [vmem:[%s3 + $0x120] sm:$0xff]
        %v2286 = vld [vmem:[%s3 + $0x128] sm:$0xff]
        %v2287 = vld [vmem:[%s3 + $0x130] sm:$0xff]
        %v2288 = vld [vmem:[%s3 + $0x138] sm:$0xff]
        %v2289 = vld [vmem:[%s3 + $0x140] sm:$0xff]
        %v2290 = vld [vmem:[%s3 + $0x148] sm:$0xff]
        %v2291 = vld [vmem:[%s3 + $0x150] sm:$0xff]
        %v2292 = vld [vmem:[%s3 + $0x158] sm:$0xff]
        %v2293 = vld [vmem:[%s3 + $0x160] sm:$0xff]
        %v2294 = vld [vmem:[%s3 + $0x168] sm:$0xff]
        %v2295 = vld [vmem:[%s3 + $0x170] sm:$0xff]
        %v2296 = vld [vmem:[%s3 + $0x178] sm:$0xff]
        %v2297 = vld [vmem:[%s3 + $0x180] sm:$0xff]
        %v2298 = vld [vmem:[%s3 + $0x188] sm:$0xff]
        %v2299 = vld [vmem:[%s3 + $0x190] sm:$0xff]
        %v2300 = vld [vmem:[%s3 + $0x198] sm:$0xff]
        %v2301 = vld [vmem:[%s3 + $0x1a0] sm:$0xff]
        %v2302 = vld [vmem:[%s3 + $0x1a8] sm:$0xff]
        %v2303 = vld [vmem:[%s3 + $0x1b0] sm:$0xff]
        %v2304 = vld [vmem:[%s3 + $0x1b8] sm:$0xff]
        %s2305 = scalar_lea.vmem %s3, 448
        %v2306 = vld [vmem:[%s2305] sm:$0xff]
        %v2307 = vld [vmem:[%s2305 + $0x8] sm:$0xff]
        %v2308 = vld [vmem:[%s2305 + $0x10] sm:$0xff]
        %v2309 = vld [vmem:[%s2305 + $0x18] sm:$0xff]
        %v2310 = vld [vmem:[%s2305 + $0x20] sm:$0xff]
        %v2311 = vld [vmem:[%s2305 + $0x28] sm:$0xff]
        %v2312 = vld [vmem:[%s2305 + $0x30] sm:$0xff]
        %v2313 = vld [vmem:[%s2305 + $0x38] sm:$0xff]
        %v2314 = vld [vmem:[%s2305 + $0x40] sm:$0xff]
        %v2315 = vld [vmem:[%s2305 + $0x48] sm:$0xff]
        %v2316 = vld [vmem:[%s2305 + $0x50] sm:$0xff]
        %v2317 = vld [vmem:[%s2305 + $0x58] sm:$0xff]
        %v2318 = vld [vmem:[%s2305 + $0x60] sm:$0xff]
        %v2319 = vld [vmem:[%s2305 + $0x68] sm:$0xff]
        %v2320 = vld [vmem:[%s2305 + $0x70] sm:$0xff]
        %v2321 = vld [vmem:[%s2305 + $0x78] sm:$0xff]
        %v2322 = vld [vmem:[%s2305 + $0x80] sm:$0xff]
        %v2323 = vld [vmem:[%s2305 + $0x88] sm:$0xff]
        %v2324 = vld [vmem:[%s2305 + $0x90] sm:$0xff]
        %v2325 = vld [vmem:[%s2305 + $0x98] sm:$0xff]
        %v2326 = vld [vmem:[%s2305 + $0xa0] sm:$0xff]
        %v2327 = vld [vmem:[%s2305 + $0xa8] sm:$0xff]
        %v2328 = vld [vmem:[%s2305 + $0xb0] sm:$0xff]
        %v2329 = vld [vmem:[%s2305 + $0xb8] sm:$0xff]
        %v2330 = vld [vmem:[%s2305 + $0xc0] sm:$0xff]
        %v2331 = vld [vmem:[%s2305 + $0xc8] sm:$0xff]
        %v2332 = vld [vmem:[%s2305 + $0xd0] sm:$0xff]
        %v2333 = vld [vmem:[%s2305 + $0xd8] sm:$0xff]
        %v2334 = vld [vmem:[%s2305 + $0xe0] sm:$0xff]
        %v2335 = vld [vmem:[%s2305 + $0xe8] sm:$0xff]
        %v2336 = vld [vmem:[%s2305 + $0xf0] sm:$0xff]
        %v2337 = vld [vmem:[%s2305 + $0xf8] sm:$0xff]
        %v2338 = vld [vmem:[%s2305 + $0x100] sm:$0xff]
        %v2339 = vld [vmem:[%s2305 + $0x108] sm:$0xff]
        %v2340 = vld [vmem:[%s2305 + $0x110] sm:$0xff]
        %v2341 = vld [vmem:[%s2305 + $0x118] sm:$0xff]
        %v2342 = vld [vmem:[%s2305 + $0x120] sm:$0xff]
        %v2343 = vld [vmem:[%s2305 + $0x128] sm:$0xff]
        %v2344 = vld [vmem:[%s2305 + $0x130] sm:$0xff]
        %v2345 = vld [vmem:[%s2305 + $0x138] sm:$0xff]
        %v2346 = vld [vmem:[%s2305 + $0x140] sm:$0xff]
        %v2347 = vld [vmem:[%s2305 + $0x148] sm:$0xff]
        %v2348 = vld [vmem:[%s2305 + $0x150] sm:$0xff]
        %v2349 = vld [vmem:[%s2305 + $0x158] sm:$0xff]
        %v2350 = vld [vmem:[%s2305 + $0x160] sm:$0xff]
        %v2351 = vld [vmem:[%s2305 + $0x168] sm:$0xff]
        %v2352 = vld [vmem:[%s2305 + $0x170] sm:$0xff]
        %v2353 = vld [vmem:[%s2305 + $0x178] sm:$0xff]
        %v2354 = vld [vmem:[%s2305 + $0x180] sm:$0xff]
        %v2355 = vld [vmem:[%s2305 + $0x188] sm:$0xff]
        %v2356 = vld [vmem:[%s2305 + $0x190] sm:$0xff]
        %v2357 = vld [vmem:[%s2305 + $0x198] sm:$0xff]
        %v2358 = vld [vmem:[%s2305 + $0x1a0] sm:$0xff]
        %v2359 = vld [vmem:[%s2305 + $0x1a8] sm:$0xff]
        %v2360 = vld [vmem:[%s2305 + $0x1b0] sm:$0xff]
        %v2361 = vld [vmem:[%s2305 + $0x1b8] sm:$0xff]
        %vm2366 = vcmask 1046528
        %v2367 = vrot.slane %v2245, 1
        %v2368 = vrot.slane %v2247, 1
        %v2369 = vsel %vm2366, %v2367, %v2368
        %v2370 = vrot.slane %v2246, 1
        %v2371 = vrot.slane %v2248, 1
        %v2372 = vsel %vm2366, %v2370, %v2371
        %v2375 = vsel %vm392, %v2372, 0
        %v2377 = vsel %vm392, %v2371, 0
        %2379 = vmatprep.subr.mxu0 %v2307
        %2380 = vmatpush1.msra.mxu0 %v2306
        %2381 = vmatprep.subr.mxu0 %v2309
        %2382 = vmatpush1.msra.mxu0 %v2308
        %2383 = vmatprep.subr.mxu0 %v2311
        %2384 = vmatpush1.msra.mxu0 %v2310
        %2385 = vmatprep.subr.mxu0 %v2313
        %2386 = vmatpush1.msra.mxu0 %v2312
        %2387 = vmatprep.subr.mxu0 %v2315
        %2388 = vmatpush1.msra.mxu0 %v2314
        %2389 = vmatprep.subr.mxu0 %v2317
        %2390 = vmatpush1.msra.mxu0 %v2316
        %2391 = vmatprep.subr.mxu0 %v2319
        %2392 = vmatpush1.msra.mxu0 %v2318
        %2393 = vmatprep.subr.mxu0 %v2321
        %2394 = vmatpush1.msra.mxu0 %v2320
        %2395 = vmatprep.subr.mxu0 %v2323
        %2396 = vmatpush1.msra.mxu0 %v2322
        %2397 = vmatprep.subr.mxu0 %v2325
        %2398 = vmatpush1.msra.mxu0 %v2324
        %2399 = vmatprep.subr.mxu0 %v2327
        %2400 = vmatpush1.msra.mxu0 %v2326
        %2401 = vmatprep.subr.mxu0 %v2329
        %2402 = vmatpush1.msra.mxu0 %v2328
        %2403 = vmatprep.subr.mxu0 %v2331
        %2404 = vmatpush1.msra.mxu0 %v2330
        %2405 = vmatprep.subr.mxu0 %v2333
        %2406 = vmatpush1.msra.mxu0 %v2332
        %2407 = vmatprep.subr.mxu0 %v2335
        %2408 = vmatpush1.msra.mxu0 %v2334
        %2409 = vmatprep.subr.mxu0 %v2337
        %2410 = vmatpush1.msra.mxu0 %v2336
        %2411 = vmatprep.subr.mxu0 %v2339
        %2412 = vmatpush1.msra.mxu0 %v2338
        %2413 = vmatprep.subr.mxu0 %v2341
        %2414 = vmatpush1.msra.mxu0 %v2340
        %2415 = vmatprep.subr.mxu0 %v2343
        %2416 = vmatpush1.msra.mxu0 %v2342
        %2417 = vmatprep.subr.mxu0 %v2345
        %2418 = vmatpush1.msra.mxu0 %v2344
        %2419 = vmatprep.subr.mxu0 %v2347
        %2420 = vmatpush1.msra.mxu0 %v2346
        %2421 = vmatprep.subr.mxu0 %v2349
        %2422 = vmatpush1.msra.mxu0 %v2348
        %2423 = vmatprep.subr.mxu0 %v2351
        %2424 = vmatpush1.msra.mxu0 %v2350
        %2425 = vmatprep.subr.mxu0 %v2353
        %2426 = vmatpush1.msra.mxu0 %v2352
        %2427 = vmatprep.subr.mxu0 %v2355
        %2428 = vmatpush1.msra.mxu0 %v2354
        %2429 = vmatprep.subr.mxu0 %v2357
        %2430 = vmatpush1.msra.mxu0 %v2356
        %2431 = vmatprep.subr.mxu0 %v2359
        %2432 = vmatpush1.msra.mxu0 %v2358
        %2433 = vmatprep.subr.mxu0 %v2361
        %2434 = vmatpush1.msra.mxu0 %v2360
        %2435 = vmatprep.subr.mxu0 0.0
        %2436 = vmatpush1.msra.mxu0 0.0
        %2437 = vmatprep.subr.mxu0 0.0
        %2438 = vmatpush1.msra.mxu0 0.0
        %2439 = vmatprep.subr.mxu0 0.0
        %2440 = vmatpush1.msra.mxu0 0.0
        %2441 = vmatprep.subr.mxu0 0.0
        %2442 = vmatpush1.msra.mxu0 0.0
        %2443 = vmatprep.mubr.f32.mxu0 %v2375
        %2444 = vmatmul.mubr.f32.gmra.mrb[0].mxu0 %v2369
        %v2445 = vpop.f32.mrb[0].mxu0
        %v2446 = vadd.f32 0.0, %v2445
        %v2447 = vpop.f32.mrb[0].mxu0
        %v2448 = vadd.f32 0.0, %v2447
        %2449 = vmatprep.mubr.f32.mxu0 %v2377
        %2450 = vmatmul.mubr.f32.gmra.mrb[0].mxu0 %v2368
        %v2451 = vpop.f32.mrb[0].mxu0
        %v2452 = vadd.f32 0.0, %v2451
        %v2453 = vpop.f32.mrb[0].mxu0
        %v2454 = vadd.f32 0.0, %v2453
        %2455 = vdwg.mxu0
        %v2456 = vsel %vm392, %v2246, 0
        %v2458 = vsel %vm392, %v2248, 0
        %2460 = vmatprep.subr.mxu0 %v2250
        %2461 = vmatpush1.msra.mxu0 %v2249
        %2462 = vmatprep.subr.mxu0 %v2252
        %2463 = vmatpush1.msra.mxu0 %v2251
        %2464 = vmatprep.subr.mxu0 %v2254
        %2465 = vmatpush1.msra.mxu0 %v2253
        %2466 = vmatprep.subr.mxu0 %v2256
        %2467 = vmatpush1.msra.mxu0 %v2255
        %2468 = vmatprep.subr.mxu0 %v2258
        %2469 = vmatpush1.msra.mxu0 %v2257
        %2470 = vmatprep.subr.mxu0 %v2260
        %2471 = vmatpush1.msra.mxu0 %v2259
        %2472 = vmatprep.subr.mxu0 %v2262
        %2473 = vmatpush1.msra.mxu0 %v2261
        %2474 = vmatprep.subr.mxu0 %v2264
        %2475 = vmatpush1.msra.mxu0 %v2263
        %2476 = vmatprep.subr.mxu0 %v2266
        %2477 = vmatpush1.msra.mxu0 %v2265
        %2478 = vmatprep.subr.mxu0 %v2268
        %2479 = vmatpush1.msra.mxu0 %v2267
        %2480 = vmatprep.subr.mxu0 %v2270
        %2481 = vmatpush1.msra.mxu0 %v2269
        %2482 = vmatprep.subr.mxu0 %v2272
        %2483 = vmatpush1.msra.mxu0 %v2271
        %2484 = vmatprep.subr.mxu0 %v2274
        %2485 = vmatpush1.msra.mxu0 %v2273
        %2486 = vmatprep.subr.mxu0 %v2276
        %2487 = vmatpush1.msra.mxu0 %v2275
        %2488 = vmatprep.subr.mxu0 %v2278
        %2489 = vmatpush1.msra.mxu0 %v2277
        %2490 = vmatprep.subr.mxu0 %v2280
        %2491 = vmatpush1.msra.mxu0 %v2279
        %2492 = vmatprep.subr.mxu0 %v2282
        %2493 = vmatpush1.msra.mxu0 %v2281
        %2494 = vmatprep.subr.mxu0 %v2284
        %2495 = vmatpush1.msra.mxu0 %v2283
        %2496 = vmatprep.subr.mxu0 %v2286
        %2497 = vmatpush1.msra.mxu0 %v2285
        %2498 = vmatprep.subr.mxu0 %v2288
        %2499 = vmatpush1.msra.mxu0 %v2287
        %2500 = vmatprep.subr.mxu0 %v2290
        %2501 = vmatpush1.msra.mxu0 %v2289
        %2502 = vmatprep.subr.mxu0 %v2292
        %2503 = vmatpush1.msra.mxu0 %v2291
        %2504 = vmatprep.subr.mxu0 %v2294
        %2505 = vmatpush1.msra.mxu0 %v2293
        %2506 = vmatprep.subr.mxu0 %v2296
        %2507 = vmatpush1.msra.mxu0 %v2295
        %2508 = vmatprep.subr.mxu0 %v2298
        %2509 = vmatpush1.msra.mxu0 %v2297
        %2510 = vmatprep.subr.mxu0 %v2300
        %2511 = vmatpush1.msra.mxu0 %v2299
        %2512 = vmatprep.subr.mxu0 %v2302
        %2513 = vmatpush1.msra.mxu0 %v2301
        %2514 = vmatprep.subr.mxu0 %v2304
        %2515 = vmatpush1.msra.mxu0 %v2303
        %2516 = vmatprep.subr.mxu0 0.0
        %2517 = vmatpush1.msra.mxu0 0.0
        %2518 = vmatprep.subr.mxu0 0.0
        %2519 = vmatpush1.msra.mxu0 0.0
        %2520 = vmatprep.subr.mxu0 0.0
        %2521 = vmatpush1.msra.mxu0 0.0
        %2522 = vmatprep.subr.mxu0 0.0
        %2523 = vmatpush1.msra.mxu0 0.0
        %2524 = vmatprep.mubr.f32.mxu0 %v2456
        %2525 = vmatmul.mubr.f32.gmra.mrb[0].mxu0 %v2245
        %v2526 = vpop.f32.mrb[0].mxu0
        %v2527 = vadd.f32 %v2446, %v2526
        %v2528 = vpop.f32.mrb[0].mxu0
        %v2529 = vadd.f32 %v2448, %v2528
        %2530 = vmatprep.mubr.f32.mxu0 %v2458
        %2531 = vmatmul.mubr.f32.gmra.mrb[0].mxu0 %v2247
        %v2532 = vpop.f32.mrb[0].mxu0
        %v2533 = vadd.f32 %v2452, %v2532
        %v2534 = vpop.f32.mrb[0].mxu0
        %v2535 = vadd.f32 %v2454, %v2534
        %2536 = vdwg.mxu0
        %s2537 = scalar_lea.vmem %s3, 896
        %v2538 = vld [vmem:[%s2537] sm:$0xff]
        %v2539 = vld [vmem:[%s2537 + $0x8] sm:$0xff]
        %v2540 = vld [vmem:[%s2537 + $0x10] sm:$0xff]
        %v2541 = vld [vmem:[%s2537 + $0x18] sm:$0xff]
        %v2542 = vld [vmem:[%s2537 + $0x20] sm:$0xff]
        %v2543 = vld [vmem:[%s2537 + $0x28] sm:$0xff]
        %v2544 = vld [vmem:[%s2537 + $0x30] sm:$0xff]
        %v2545 = vld [vmem:[%s2537 + $0x38] sm:$0xff]
        %v2546 = vld [vmem:[%s2537 + $0x40] sm:$0xff]
        %v2547 = vld [vmem:[%s2537 + $0x48] sm:$0xff]
        %v2548 = vld [vmem:[%s2537 + $0x50] sm:$0xff]
        %v2549 = vld [vmem:[%s2537 + $0x58] sm:$0xff]
        %v2550 = vld [vmem:[%s2537 + $0x60] sm:$0xff]
        %v2551 = vld [vmem:[%s2537 + $0x68] sm:$0xff]
        %v2552 = vld [vmem:[%s2537 + $0x70] sm:$0xff]
        %v2553 = vld [vmem:[%s2537 + $0x78] sm:$0xff]
        %v2554 = vld [vmem:[%s2537 + $0x80] sm:$0xff]
        %v2555 = vld [vmem:[%s2537 + $0x88] sm:$0xff]
        %v2556 = vld [vmem:[%s2537 + $0x90] sm:$0xff]
        %v2557 = vld [vmem:[%s2537 + $0x98] sm:$0xff]
        %v2558 = vld [vmem:[%s2537 + $0xa0] sm:$0xff]
        %v2559 = vld [vmem:[%s2537 + $0xa8] sm:$0xff]
        %v2560 = vld [vmem:[%s2537 + $0xb0] sm:$0xff]
        %v2561 = vld [vmem:[%s2537 + $0xb8] sm:$0xff]
        %v2562 = vld [vmem:[%s2537 + $0xc0] sm:$0xff]
        %v2563 = vld [vmem:[%s2537 + $0xc8] sm:$0xff]
        %v2564 = vld [vmem:[%s2537 + $0xd0] sm:$0xff]
        %v2565 = vld [vmem:[%s2537 + $0xd8] sm:$0xff]
        %v2566 = vld [vmem:[%s2537 + $0xe0] sm:$0xff]
        %v2567 = vld [vmem:[%s2537 + $0xe8] sm:$0xff]
        %v2568 = vld [vmem:[%s2537 + $0xf0] sm:$0xff]
        %v2569 = vld [vmem:[%s2537 + $0xf8] sm:$0xff]
        %v2570 = vld [vmem:[%s2537 + $0x100] sm:$0xff]
        %v2571 = vld [vmem:[%s2537 + $0x108] sm:$0xff]
        %v2572 = vld [vmem:[%s2537 + $0x110] sm:$0xff]
        %v2573 = vld [vmem:[%s2537 + $0x118] sm:$0xff]
        %v2574 = vld [vmem:[%s2537 + $0x120] sm:$0xff]
        %v2575 = vld [vmem:[%s2537 + $0x128] sm:$0xff]
        %v2576 = vld [vmem:[%s2537 + $0x130] sm:$0xff]
        %v2577 = vld [vmem:[%s2537 + $0x138] sm:$0xff]
        %v2578 = vld [vmem:[%s2537 + $0x140] sm:$0xff]
        %v2579 = vld [vmem:[%s2537 + $0x148] sm:$0xff]
        %v2580 = vld [vmem:[%s2537 + $0x150] sm:$0xff]
        %v2581 = vld [vmem:[%s2537 + $0x158] sm:$0xff]
        %v2582 = vld [vmem:[%s2537 + $0x160] sm:$0xff]
        %v2583 = vld [vmem:[%s2537 + $0x168] sm:$0xff]
        %v2584 = vld [vmem:[%s2537 + $0x170] sm:$0xff]
        %v2585 = vld [vmem:[%s2537 + $0x178] sm:$0xff]
        %v2586 = vld [vmem:[%s2537 + $0x180] sm:$0xff]
        %v2587 = vld [vmem:[%s2537 + $0x188] sm:$0xff]
        %v2588 = vld [vmem:[%s2537 + $0x190] sm:$0xff]
        %v2589 = vld [vmem:[%s2537 + $0x198] sm:$0xff]
        %v2590 = vld [vmem:[%s2537 + $0x1a0] sm:$0xff]
        %v2591 = vld [vmem:[%s2537 + $0x1a8] sm:$0xff]
        %v2592 = vld [vmem:[%s2537 + $0x1b0] sm:$0xff]
        %v2593 = vld [vmem:[%s2537 + $0x1b8] sm:$0xff]
        %vm2594 = vcmask 1045504
        %v2595 = vrot.slane %v2245, 2
        %v2596 = vrot.slane %v2247, 2
        %v2597 = vsel %vm2594, %v2595, %v2596
        %v2598 = vrot.slane %v2246, 2
        %v2599 = vrot.slane %v2248, 2
        %v2600 = vsel %vm2594, %v2598, %v2599
        %v2603 = vsel %vm392, %v2600, 0
        %v2605 = vsel %vm392, %v2599, 0
        %2607 = vmatprep.subr.mxu0 %v2539
        %2608 = vmatpush1.msra.mxu0 %v2538
        %2609 = vmatprep.subr.mxu0 %v2541
        %2610 = vmatpush1.msra.mxu0 %v2540
        %2611 = vmatprep.subr.mxu0 %v2543
        %2612 = vmatpush1.msra.mxu0 %v2542
        %2613 = vmatprep.subr.mxu0 %v2545
        %2614 = vmatpush1.msra.mxu0 %v2544
        %2615 = vmatprep.subr.mxu0 %v2547
        %2616 = vmatpush1.msra.mxu0 %v2546
        %2617 = vmatprep.subr.mxu0 %v2549
        %2618 = vmatpush1.msra.mxu0 %v2548
        %2619 = vmatprep.subr.mxu0 %v2551
        %2620 = vmatpush1.msra.mxu0 %v2550
        %2621 = vmatprep.subr.mxu0 %v2553
        %2622 = vmatpush1.msra.mxu0 %v2552
        %2623 = vmatprep.subr.mxu0 %v2555
        %2624 = vmatpush1.msra.mxu0 %v2554
        %2625 = vmatprep.subr.mxu0 %v2557
        %2626 = vmatpush1.msra.mxu0 %v2556
        %2627 = vmatprep.subr.mxu0 %v2559
        %2628 = vmatpush1.msra.mxu0 %v2558
        %2629 = vmatprep.subr.mxu0 %v2561
        %2630 = vmatpush1.msra.mxu0 %v2560
        %2631 = vmatprep.subr.mxu0 %v2563
        %2632 = vmatpush1.msra.mxu0 %v2562
        %2633 = vmatprep.subr.mxu0 %v2565
        %2634 = vmatpush1.msra.mxu0 %v2564
        %2635 = vmatprep.subr.mxu0 %v2567
        %2636 = vmatpush1.msra.mxu0 %v2566
        %2637 = vmatprep.subr.mxu0 %v2569
        %2638 = vmatpush1.msra.mxu0 %v2568
        %2639 = vmatprep.subr.mxu0 %v2571
        %2640 = vmatpush1.msra.mxu0 %v2570
        %2641 = vmatprep.subr.mxu0 %v2573
        %2642 = vmatpush1.msra.mxu0 %v2572
        %2643 = vmatprep.subr.mxu0 %v2575
        %2644 = vmatpush1.msra.mxu0 %v2574
        %2645 = vmatprep.subr.mxu0 %v2577
        %2646 = vmatpush1.msra.mxu0 %v2576
        %2647 = vmatprep.subr.mxu0 %v2579
        %2648 = vmatpush1.msra.mxu0 %v2578
        %2649 = vmatprep.subr.mxu0 %v2581
        %2650 = vmatpush1.msra.mxu0 %v2580
        %2651 = vmatprep.subr.mxu0 %v2583
        %2652 = vmatpush1.msra.mxu0 %v2582
        %2653 = vmatprep.subr.mxu0 %v2585
        %2654 = vmatpush1.msra.mxu0 %v2584
        %2655 = vmatprep.subr.mxu0 %v2587
        %2656 = vmatpush1.msra.mxu0 %v2586
        %2657 = vmatprep.subr.mxu0 %v2589
        %2658 = vmatpush1.msra.mxu0 %v2588
        %2659 = vmatprep.subr.mxu0 %v2591
        %2660 = vmatpush1.msra.mxu0 %v2590
        %2661 = vmatprep.subr.mxu0 %v2593
        %2662 = vmatpush1.msra.mxu0 %v2592
        %2663 = vmatprep.subr.mxu0 0.0
        %2664 = vmatpush1.msra.mxu0 0.0
        %2665 = vmatprep.subr.mxu0 0.0
        %2666 = vmatpush1.msra.mxu0 0.0
        %2667 = vmatprep.subr.mxu0 0.0
        %2668 = vmatpush1.msra.mxu0 0.0
        %2669 = vmatprep.subr.mxu0 0.0
        %2670 = vmatpush1.msra.mxu0 0.0
        %2671 = vmatprep.mubr.f32.mxu0 %v2603
        %2672 = vmatmul.mubr.f32.gmra.mrb[0].mxu0 %v2597
        %v2673 = vpop.f32.mrb[0].mxu0
        %v2674 = vadd.f32 0.0, %v2673
        %v2675 = vpop.f32.mrb[0].mxu0
        %v2676 = vadd.f32 0.0, %v2675
        %2677 = vmatprep.mubr.f32.mxu0 %v2605
        %2678 = vmatmul.mubr.f32.gmra.mrb[0].mxu0 %v2596
        %v2679 = vpop.f32.mrb[0].mxu0
        %v2680 = vadd.f32 0.0, %v2679
        %v2681 = vpop.f32.mrb[0].mxu0
        %v2682 = vadd.f32 0.0, %v2681
        %2683 = vdwg.mxu0
        %v2684 = vadd.f32 %v2527, %v2674
        %v2685 = vadd.f32 %v2529, %v2676
        %v2686 = vadd.f32 %v2533, %v2680
        %v2687 = vadd.f32 %v2535, %v2682
        %s2688 = scalar_lea.vmem %s3, 1344
        %v2689 = vld [vmem:[%s2688] sm:$0xff]
        %v2690 = vld [vmem:[%s2688 + $0x8] sm:$0xff]
        %v2691 = vld [vmem:[%s2688 + $0x10] sm:$0xff]
        %v2692 = vld [vmem:[%s2688 + $0x18] sm:$0xff]
        %v2693 = vld [vmem:[%s2688 + $0x20] sm:$0xff]
        %v2694 = vld [vmem:[%s2688 + $0x28] sm:$0xff]
        %v2695 = vld [vmem:[%s2688 + $0x30] sm:$0xff]
        %v2696 = vld [vmem:[%s2688 + $0x38] sm:$0xff]
        %v2697 = vld [vmem:[%s2688 + $0x40] sm:$0xff]
        %v2698 = vld [vmem:[%s2688 + $0x48] sm:$0xff]
        %v2699 = vld [vmem:[%s2688 + $0x50] sm:$0xff]
        %v2700 = vld [vmem:[%s2688 + $0x58] sm:$0xff]
        %v2701 = vld [vmem:[%s2688 + $0x60] sm:$0xff]
        %v2702 = vld [vmem:[%s2688 + $0x68] sm:$0xff]
        %v2703 = vld [vmem:[%s2688 + $0x70] sm:$0xff]
        %v2704 = vld [vmem:[%s2688 + $0x78] sm:$0xff]
        %v2705 = vld [vmem:[%s2688 + $0x80] sm:$0xff]
        %v2706 = vld [vmem:[%s2688 + $0x88] sm:$0xff]
        %v2707 = vld [vmem:[%s2688 + $0x90] sm:$0xff]
        %v2708 = vld [vmem:[%s2688 + $0x98] sm:$0xff]
        %v2709 = vld [vmem:[%s2688 + $0xa0] sm:$0xff]
        %v2710 = vld [vmem:[%s2688 + $0xa8] sm:$0xff]
        %v2711 = vld [vmem:[%s2688 + $0xb0] sm:$0xff]
        %v2712 = vld [vmem:[%s2688 + $0xb8] sm:$0xff]
        %v2713 = vld [vmem:[%s2688 + $0xc0] sm:$0xff]
        %v2714 = vld [vmem:[%s2688 + $0xc8] sm:$0xff]
        %v2715 = vld [vmem:[%s2688 + $0xd0] sm:$0xff]
        %v2716 = vld [vmem:[%s2688 + $0xd8] sm:$0xff]
        %v2717 = vld [vmem:[%s2688 + $0xe0] sm:$0xff]
        %v2718 = vld [vmem:[%s2688 + $0xe8] sm:$0xff]
        %v2719 = vld [vmem:[%s2688 + $0xf0] sm:$0xff]
        %v2720 = vld [vmem:[%s2688 + $0xf8] sm:$0xff]
        %v2721 = vld [vmem:[%s2688 + $0x100] sm:$0xff]
        %v2722 = vld [vmem:[%s2688 + $0x108] sm:$0xff]
        %v2723 = vld [vmem:[%s2688 + $0x110] sm:$0xff]
        %v2724 = vld [vmem:[%s2688 + $0x118] sm:$0xff]
        %v2725 = vld [vmem:[%s2688 + $0x120] sm:$0xff]
        %v2726 = vld [vmem:[%s2688 + $0x128] sm:$0xff]
        %v2727 = vld [vmem:[%s2688 + $0x130] sm:$0xff]
        %v2728 = vld [vmem:[%s2688 + $0x138] sm:$0xff]
        %v2729 = vld [vmem:[%s2688 + $0x140] sm:$0xff]
        %v2730 = vld [vmem:[%s2688 + $0x148] sm:$0xff]
        %v2731 = vld [vmem:[%s2688 + $0x150] sm:$0xff]
        %v2732 = vld [vmem:[%s2688 + $0x158] sm:$0xff]
        %v2733 = vld [vmem:[%s2688 + $0x160] sm:$0xff]
        %v2734 = vld [vmem:[%s2688 + $0x168] sm:$0xff]
        %v2735 = vld [vmem:[%s2688 + $0x170] sm:$0xff]
        %v2736 = vld [vmem:[%s2688 + $0x178] sm:$0xff]
        %v2737 = vld [vmem:[%s2688 + $0x180] sm:$0xff]
        %v2738 = vld [vmem:[%s2688 + $0x188] sm:$0xff]
        %v2739 = vld [vmem:[%s2688 + $0x190] sm:$0xff]
        %v2740 = vld [vmem:[%s2688 + $0x198] sm:$0xff]
        %v2741 = vld [vmem:[%s2688 + $0x1a0] sm:$0xff]
        %v2742 = vld [vmem:[%s2688 + $0x1a8] sm:$0xff]
        %v2743 = vld [vmem:[%s2688 + $0x1b0] sm:$0xff]
        %v2744 = vld [vmem:[%s2688 + $0x1b8] sm:$0xff]
        %s2745 = scalar_lea.vmem %s3, 1792
        %v2746 = vld [vmem:[%s2745] sm:$0xff]
        %v2747 = vld [vmem:[%s2745 + $0x8] sm:$0xff]
        %v2748 = vld [vmem:[%s2745 + $0x10] sm:$0xff]
        %v2749 = vld [vmem:[%s2745 + $0x18] sm:$0xff]
        %v2750 = vld [vmem:[%s2745 + $0x20] sm:$0xff]
        %v2751 = vld [vmem:[%s2745 + $0x28] sm:$0xff]
        %v2752 = vld [vmem:[%s2745 + $0x30] sm:$0xff]
        %v2753 = vld [vmem:[%s2745 + $0x38] sm:$0xff]
        %v2754 = vld [vmem:[%s2745 + $0x40] sm:$0xff]
        %v2755 = vld [vmem:[%s2745 + $0x48] sm:$0xff]
        %v2756 = vld [vmem:[%s2745 + $0x50] sm:$0xff]
        %v2757 = vld [vmem:[%s2745 + $0x58] sm:$0xff]
        %v2758 = vld [vmem:[%s2745 + $0x60] sm:$0xff]
        %v2759 = vld [vmem:[%s2745 + $0x68] sm:$0xff]
        %v2760 = vld [vmem:[%s2745 + $0x70] sm:$0xff]
        %v2761 = vld [vmem:[%s2745 + $0x78] sm:$0xff]
        %v2762 = vld [vmem:[%s2745 + $0x80] sm:$0xff]
        %v2763 = vld [vmem:[%s2745 + $0x88] sm:$0xff]
        %v2764 = vld [vmem:[%s2745 + $0x90] sm:$0xff]
        %v2765 = vld [vmem:[%s2745 + $0x98] sm:$0xff]
        %v2766 = vld [vmem:[%s2745 + $0xa0] sm:$0xff]
        %v2767 = vld [vmem:[%s2745 + $0xa8] sm:$0xff]
        %v2768 = vld [vmem:[%s2745 + $0xb0] sm:$0xff]
        %v2769 = vld [vmem:[%s2745 + $0xb8] sm:$0xff]
        %v2770 = vld [vmem:[%s2745 + $0xc0] sm:$0xff]
        %v2771 = vld [vmem:[%s2745 + $0xc8] sm:$0xff]
        %v2772 = vld [vmem:[%s2745 + $0xd0] sm:$0xff]
        %v2773 = vld [vmem:[%s2745 + $0xd8] sm:$0xff]
        %v2774 = vld [vmem:[%s2745 + $0xe0] sm:$0xff]
        %v2775 = vld [vmem:[%s2745 + $0xe8] sm:$0xff]
        %v2776 = vld [vmem:[%s2745 + $0xf0] sm:$0xff]
        %v2777 = vld [vmem:[%s2745 + $0xf8] sm:$0xff]
        %v2778 = vld [vmem:[%s2745 + $0x100] sm:$0xff]
        %v2779 = vld [vmem:[%s2745 + $0x108] sm:$0xff]
        %v2780 = vld [vmem:[%s2745 + $0x110] sm:$0xff]
        %v2781 = vld [vmem:[%s2745 + $0x118] sm:$0xff]
        %v2782 = vld [vmem:[%s2745 + $0x120] sm:$0xff]
        %v2783 = vld [vmem:[%s2745 + $0x128] sm:$0xff]
        %v2784 = vld [vmem:[%s2745 + $0x130] sm:$0xff]
        %v2785 = vld [vmem:[%s2745 + $0x138] sm:$0xff]
        %v2786 = vld [vmem:[%s2745 + $0x140] sm:$0xff]
        %v2787 = vld [vmem:[%s2745 + $0x148] sm:$0xff]
        %v2788 = vld [vmem:[%s2745 + $0x150] sm:$0xff]
        %v2789 = vld [vmem:[%s2745 + $0x158] sm:$0xff]
        %v2790 = vld [vmem:[%s2745 + $0x160] sm:$0xff]
        %v2791 = vld [vmem:[%s2745 + $0x168] sm:$0xff]
        %v2792 = vld [vmem:[%s2745 + $0x170] sm:$0xff]
        %v2793 = vld [vmem:[%s2745 + $0x178] sm:$0xff]
        %v2794 = vld [vmem:[%s2745 + $0x180] sm:$0xff]
        %v2795 = vld [vmem:[%s2745 + $0x188] sm:$0xff]
        %v2796 = vld [vmem:[%s2745 + $0x190] sm:$0xff]
        %v2797 = vld [vmem:[%s2745 + $0x198] sm:$0xff]
        %v2798 = vld [vmem:[%s2745 + $0x1a0] sm:$0xff]
        %v2799 = vld [vmem:[%s2745 + $0x1a8] sm:$0xff]
        %v2800 = vld [vmem:[%s2745 + $0x1b0] sm:$0xff]
        %v2801 = vld [vmem:[%s2745 + $0x1b8] sm:$0xff]
        %2802 = vmatprep.subr.mxu0 %v2747
        %2803 = vmatpush1.msra.mxu0 %v2746
        %2804 = vmatprep.subr.mxu0 %v2749
        %2805 = vmatpush1.msra.mxu0 %v2748
        %2806 = vmatprep.subr.mxu0 %v2751
        %2807 = vmatpush1.msra.mxu0 %v2750
        %2808 = vmatprep.subr.mxu0 %v2753
        %2809 = vmatpush1.msra.mxu0 %v2752
        %2810 = vmatprep.subr.mxu0 %v2755
        %2811 = vmatpush1.msra.mxu0 %v2754
        %2812 = vmatprep.subr.mxu0 %v2757
        %2813 = vmatpush1.msra.mxu0 %v2756
        %2814 = vmatprep.subr.mxu0 %v2759
        %2815 = vmatpush1.msra.mxu0 %v2758
        %2816 = vmatprep.subr.mxu0 %v2761
        %2817 = vmatpush1.msra.mxu0 %v2760
        %2818 = vmatprep.subr.mxu0 %v2763
        %2819 = vmatpush1.msra.mxu0 %v2762
        %2820 = vmatprep.subr.mxu0 %v2765
        %2821 = vmatpush1.msra.mxu0 %v2764
        %2822 = vmatprep.subr.mxu0 %v2767
        %2823 = vmatpush1.msra.mxu0 %v2766
        %2824 = vmatprep.subr.mxu0 %v2769
        %2825 = vmatpush1.msra.mxu0 %v2768
        %2826 = vmatprep.subr.mxu0 %v2771
        %2827 = vmatpush1.msra.mxu0 %v2770
        %2828 = vmatprep.subr.mxu0 %v2773
        %2829 = vmatpush1.msra.mxu0 %v2772
        %2830 = vmatprep.subr.mxu0 %v2775
        %2831 = vmatpush1.msra.mxu0 %v2774
        %2832 = vmatprep.subr.mxu0 %v2777
        %2833 = vmatpush1.msra.mxu0 %v2776
        %2834 = vmatprep.subr.mxu0 %v2779
        %2835 = vmatpush1.msra.mxu0 %v2778
        %2836 = vmatprep.subr.mxu0 %v2781
        %2837 = vmatpush1.msra.mxu0 %v2780
        %2838 = vmatprep.subr.mxu0 %v2783
        %2839 = vmatpush1.msra.mxu0 %v2782
        %2840 = vmatprep.subr.mxu0 %v2785
        %2841 = vmatpush1.msra.mxu0 %v2784
        %2842 = vmatprep.subr.mxu0 %v2787
        %2843 = vmatpush1.msra.mxu0 %v2786
        %2844 = vmatprep.subr.mxu0 %v2789
        %2845 = vmatpush1.msra.mxu0 %v2788
        %2846 = vmatprep.subr.mxu0 %v2791
        %2847 = vmatpush1.msra.mxu0 %v2790
        %2848 = vmatprep.subr.mxu0 %v2793
        %2849 = vmatpush1.msra.mxu0 %v2792
        %2850 = vmatprep.subr.mxu0 %v2795
        %2851 = vmatpush1.msra.mxu0 %v2794
        %2852 = vmatprep.subr.mxu0 %v2797
        %2853 = vmatpush1.msra.mxu0 %v2796
        %2854 = vmatprep.subr.mxu0 %v2799
        %2855 = vmatpush1.msra.mxu0 %v2798
        %2856 = vmatprep.subr.mxu0 %v2801
        %2857 = vmatpush1.msra.mxu0 %v2800
        %2858 = vmatprep.subr.mxu0 0.0
        %2859 = vmatpush1.msra.mxu0 0.0
        %2860 = vmatprep.subr.mxu0 0.0
        %2861 = vmatpush1.msra.mxu0 0.0
        %2862 = vmatprep.subr.mxu0 0.0
        %2863 = vmatpush1.msra.mxu0 0.0
        %2864 = vmatprep.subr.mxu0 0.0
        %2865 = vmatpush1.msra.mxu0 0.0
        %2866 = vmatprep.mubr.f32.mxu0 %v2375
        %2867 = vmatmul.mubr.f32.gmra.mrb[0].mxu0 %v2369
        %v2868 = vpop.f32.mrb[0].mxu0
        %v2869 = vadd.f32 0.0, %v2868
        %v2870 = vpop.f32.mrb[0].mxu0
        %v2871 = vadd.f32 0.0, %v2870
        %2872 = vmatprep.mubr.f32.mxu0 %v2377
        %2873 = vmatmul.mubr.f32.gmra.mrb[0].mxu0 %v2368
        %v2874 = vpop.f32.mrb[0].mxu0
        %v2875 = vadd.f32 0.0, %v2874
        %v2876 = vpop.f32.mrb[0].mxu0
        %v2877 = vadd.f32 0.0, %v2876
        %2878 = vdwg.mxu0
        %2879 = vmatprep.subr.mxu0 %v2690
        %2880 = vmatpush1.msra.mxu0 %v2689
        %2881 = vmatprep.subr.mxu0 %v2692
        %2882 = vmatpush1.msra.mxu0 %v2691
        %2883 = vmatprep.subr.mxu0 %v2694
        %2884 = vmatpush1.msra.mxu0 %v2693
        %2885 = vmatprep.subr.mxu0 %v2696
        %2886 = vmatpush1.msra.mxu0 %v2695
        %2887 = vmatprep.subr.mxu0 %v2698
        %2888 = vmatpush1.msra.mxu0 %v2697
        %2889 = vmatprep.subr.mxu0 %v2700
        %2890 = vmatpush1.msra.mxu0 %v2699
        %2891 = vmatprep.subr.mxu0 %v2702
        %2892 = vmatpush1.msra.mxu0 %v2701
        %2893 = vmatprep.subr.mxu0 %v2704
        %2894 = vmatpush1.msra.mxu0 %v2703
        %2895 = vmatprep.subr.mxu0 %v2706
        %2896 = vmatpush1.msra.mxu0 %v2705
        %2897 = vmatprep.subr.mxu0 %v2708
        %2898 = vmatpush1.msra.mxu0 %v2707
        %2899 = vmatprep.subr.mxu0 %v2710
        %2900 = vmatpush1.msra.mxu0 %v2709
        %2901 = vmatprep.subr.mxu0 %v2712
        %2902 = vmatpush1.msra.mxu0 %v2711
        %2903 = vmatprep.subr.mxu0 %v2714
        %2904 = vmatpush1.msra.mxu0 %v2713
        %2905 = vmatprep.subr.mxu0 %v2716
        %2906 = vmatpush1.msra.mxu0 %v2715
        %2907 = vmatprep.subr.mxu0 %v2718
        %2908 = vmatpush1.msra.mxu0 %v2717
        %2909 = vmatprep.subr.mxu0 %v2720
        %2910 = vmatpush1.msra.mxu0 %v2719
        %2911 = vmatprep.subr.mxu0 %v2722
        %2912 = vmatpush1.msra.mxu0 %v2721
        %2913 = vmatprep.subr.mxu0 %v2724
        %2914 = vmatpush1.msra.mxu0 %v2723
        %2915 = vmatprep.subr.mxu0 %v2726
        %2916 = vmatpush1.msra.mxu0 %v2725
        %2917 = vmatprep.subr.mxu0 %v2728
        %2918 = vmatpush1.msra.mxu0 %v2727
        %2919 = vmatprep.subr.mxu0 %v2730
        %2920 = vmatpush1.msra.mxu0 %v2729
        %2921 = vmatprep.subr.mxu0 %v2732
        %2922 = vmatpush1.msra.mxu0 %v2731
        %2923 = vmatprep.subr.mxu0 %v2734
        %2924 = vmatpush1.msra.mxu0 %v2733
        %2925 = vmatprep.subr.mxu0 %v2736
        %2926 = vmatpush1.msra.mxu0 %v2735
        %2927 = vmatprep.subr.mxu0 %v2738
        %2928 = vmatpush1.msra.mxu0 %v2737
        %2929 = vmatprep.subr.mxu0 %v2740
        %2930 = vmatpush1.msra.mxu0 %v2739
        %2931 = vmatprep.subr.mxu0 %v2742
        %2932 = vmatpush1.msra.mxu0 %v2741
        %2933 = vmatprep.subr.mxu0 %v2744
        %2934 = vmatpush1.msra.mxu0 %v2743
        %2935 = vmatprep.subr.mxu0 0.0
        %2936 = vmatpush1.msra.mxu0 0.0
        %2937 = vmatprep.subr.mxu0 0.0
        %2938 = vmatpush1.msra.mxu0 0.0
        %2939 = vmatprep.subr.mxu0 0.0
        %2940 = vmatpush1.msra.mxu0 0.0
        %2941 = vmatprep.subr.mxu0 0.0
        %2942 = vmatpush1.msra.mxu0 0.0
        %2943 = vmatprep.mubr.f32.mxu0 %v2456
        %2944 = vmatmul.mubr.f32.gmra.mrb[0].mxu0 %v2245
        %v2945 = vpop.f32.mrb[0].mxu0
        %v2946 = vadd.f32 %v2869, %v2945
        %v2947 = vpop.f32.mrb[0].mxu0
        %v2948 = vadd.f32 %v2871, %v2947
        %2949 = vmatprep.mubr.f32.mxu0 %v2458
        %2950 = vmatmul.mubr.f32.gmra.mrb[0].mxu0 %v2247
        %v2951 = vpop.f32.mrb[0].mxu0
        %v2952 = vadd.f32 %v2875, %v2951
        %v2953 = vpop.f32.mrb[0].mxu0
        %v2954 = vadd.f32 %v2877, %v2953
        %2955 = vdwg.mxu0
        %s2956 = scalar_lea.vmem %s3, 2240
        %v2957 = vld [vmem:[%s2956] sm:$0xff]
        %v2958 = vld [vmem:[%s2956 + $0x8] sm:$0xff]
        %v2959 = vld [vmem:[%s2956 + $0x10] sm:$0xff]
        %v2960 = vld [vmem:[%s2956 + $0x18] sm:$0xff]
        %v2961 = vld [vmem:[%s2956 + $0x20] sm:$0xff]
        %v2962 = vld [vmem:[%s2956 + $0x28] sm:$0xff]
        %v2963 = vld [vmem:[%s2956 + $0x30] sm:$0xff]
        %v2964 = vld [vmem:[%s2956 + $0x38] sm:$0xff]
        %v2965 = vld [vmem:[%s2956 + $0x40] sm:$0xff]
        %v2966 = vld [vmem:[%s2956 + $0x48] sm:$0xff]
        %v2967 = vld [vmem:[%s2956 + $0x50] sm:$0xff]
        %v2968 = vld [vmem:[%s2956 + $0x58] sm:$0xff]
        %v2969 = vld [vmem:[%s2956 + $0x60] sm:$0xff]
        %v2970 = vld [vmem:[%s2956 + $0x68] sm:$0xff]
        %v2971 = vld [vmem:[%s2956 + $0x70] sm:$0xff]
        %v2972 = vld [vmem:[%s2956 + $0x78] sm:$0xff]
        %v2973 = vld [vmem:[%s2956 + $0x80] sm:$0xff]
        %v2974 = vld [vmem:[%s2956 + $0x88] sm:$0xff]
        %v2975 = vld [vmem:[%s2956 + $0x90] sm:$0xff]
        %v2976 = vld [vmem:[%s2956 + $0x98] sm:$0xff]
        %v2977 = vld [vmem:[%s2956 + $0xa0] sm:$0xff]
        %v2978 = vld [vmem:[%s2956 + $0xa8] sm:$0xff]
        %v2979 = vld [vmem:[%s2956 + $0xb0] sm:$0xff]
        %v2980 = vld [vmem:[%s2956 + $0xb8] sm:$0xff]
        %v2981 = vld [vmem:[%s2956 + $0xc0] sm:$0xff]
        %v2982 = vld [vmem:[%s2956 + $0xc8] sm:$0xff]
        %v2983 = vld [vmem:[%s2956 + $0xd0] sm:$0xff]
        %v2984 = vld [vmem:[%s2956 + $0xd8] sm:$0xff]
        %v2985 = vld [vmem:[%s2956 + $0xe0] sm:$0xff]
        %v2986 = vld [vmem:[%s2956 + $0xe8] sm:$0xff]
        %v2987 = vld [vmem:[%s2956 + $0xf0] sm:$0xff]
        %v2988 = vld [vmem:[%s2956 + $0xf8] sm:$0xff]
        %v2989 = vld [vmem:[%s2956 + $0x100] sm:$0xff]
        %v2990 = vld [vmem:[%s2956 + $0x108] sm:$0xff]
        %v2991 = vld [vmem:[%s2956 + $0x110] sm:$0xff]
        %v2992 = vld [vmem:[%s2956 + $0x118] sm:$0xff]
        %v2993 = vld [vmem:[%s2956 + $0x120] sm:$0xff]
        %v2994 = vld [vmem:[%s2956 + $0x128] sm:$0xff]
        %v2995 = vld [vmem:[%s2956 + $0x130] sm:$0xff]
        %v2996 = vld [vmem:[%s2956 + $0x138] sm:$0xff]
        %v2997 = vld [vmem:[%s2956 + $0x140] sm:$0xff]
        %v2998 = vld [vmem:[%s2956 + $0x148] sm:$0xff]
        %v2999 = vld [vmem:[%s2956 + $0x150] sm:$0xff]
        %v3000 = vld [vmem:[%s2956 + $0x158] sm:$0xff]
        %v3001 = vld [vmem:[%s2956 + $0x160] sm:$0xff]
        %v3002 = vld [vmem:[%s2956 + $0x168] sm:$0xff]
        %v3003 = vld [vmem:[%s2956 + $0x170] sm:$0xff]
        %v3004 = vld [vmem:[%s2956 + $0x178] sm:$0xff]
        %v3005 = vld [vmem:[%s2956 + $0x180] sm:$0xff]
        %v3006 = vld [vmem:[%s2956 + $0x188] sm:$0xff]
        %v3007 = vld [vmem:[%s2956 + $0x190] sm:$0xff]
        %v3008 = vld [vmem:[%s2956 + $0x198] sm:$0xff]
        %v3009 = vld [vmem:[%s2956 + $0x1a0] sm:$0xff]
        %v3010 = vld [vmem:[%s2956 + $0x1a8] sm:$0xff]
        %v3011 = vld [vmem:[%s2956 + $0x1b0] sm:$0xff]
        %v3012 = vld [vmem:[%s2956 + $0x1b8] sm:$0xff]
        %3013 = vmatprep.subr.mxu0 %v2958
        %3014 = vmatpush1.msra.mxu0 %v2957
        %3015 = vmatprep.subr.mxu0 %v2960
        %3016 = vmatpush1.msra.mxu0 %v2959
        %3017 = vmatprep.subr.mxu0 %v2962
        %3018 = vmatpush1.msra.mxu0 %v2961
        %3019 = vmatprep.subr.mxu0 %v2964
        %3020 = vmatpush1.msra.mxu0 %v2963
        %3021 = vmatprep.subr.mxu0 %v2966
        %3022 = vmatpush1.msra.mxu0 %v2965
        %3023 = vmatprep.subr.mxu0 %v2968
        %3024 = vmatpush1.msra.mxu0 %v2967
        %3025 = vmatprep.subr.mxu0 %v2970
        %3026 = vmatpush1.msra.mxu0 %v2969
        %3027 = vmatprep.subr.mxu0 %v2972
        %3028 = vmatpush1.msra.mxu0 %v2971
        %3029 = vmatprep.subr.mxu0 %v2974
        %3030 = vmatpush1.msra.mxu0 %v2973
        %3031 = vmatprep.subr.mxu0 %v2976
        %3032 = vmatpush1.msra.mxu0 %v2975
        %3033 = vmatprep.subr.mxu0 %v2978
        %3034 = vmatpush1.msra.mxu0 %v2977
        %3035 = vmatprep.subr.mxu0 %v2980
        %3036 = vmatpush1.msra.mxu0 %v2979
        %3037 = vmatprep.subr.mxu0 %v2982
        %3038 = vmatpush1.msra.mxu0 %v2981
        %3039 = vmatprep.subr.mxu0 %v2984
        %3040 = vmatpush1.msra.mxu0 %v2983
        %3041 = vmatprep.subr.mxu0 %v2986
        %3042 = vmatpush1.msra.mxu0 %v2985
        %3043 = vmatprep.subr.mxu0 %v2988
        %3044 = vmatpush1.msra.mxu0 %v2987
        %3045 = vmatprep.subr.mxu0 %v2990
        %3046 = vmatpush1.msra.mxu0 %v2989
        %3047 = vmatprep.subr.mxu0 %v2992
        %3048 = vmatpush1.msra.mxu0 %v2991
        %3049 = vmatprep.subr.mxu0 %v2994
        %3050 = vmatpush1.msra.mxu0 %v2993
        %3051 = vmatprep.subr.mxu0 %v2996
        %3052 = vmatpush1.msra.mxu0 %v2995
        %3053 = vmatprep.subr.mxu0 %v2998
        %3054 = vmatpush1.msra.mxu0 %v2997
        %3055 = vmatprep.subr.mxu0 %v3000
        %3056 = vmatpush1.msra.mxu0 %v2999
        %3057 = vmatprep.subr.mxu0 %v3002
        %3058 = vmatpush1.msra.mxu0 %v3001
        %3059 = vmatprep.subr.mxu0 %v3004
        %3060 = vmatpush1.msra.mxu0 %v3003
        %3061 = vmatprep.subr.mxu0 %v3006
        %3062 = vmatpush1.msra.mxu0 %v3005
        %3063 = vmatprep.subr.mxu0 %v3008
        %3064 = vmatpush1.msra.mxu0 %v3007
        %3065 = vmatprep.subr.mxu0 %v3010
        %3066 = vmatpush1.msra.mxu0 %v3009
        %3067 = vmatprep.subr.mxu0 %v3012
        %3068 = vmatpush1.msra.mxu0 %v3011
        %3069 = vmatprep.subr.mxu0 0.0
        %3070 = vmatpush1.msra.mxu0 0.0
        %3071 = vmatprep.subr.mxu0 0.0
        %3072 = vmatpush1.msra.mxu0 0.0
        %3073 = vmatprep.subr.mxu0 0.0
        %3074 = vmatpush1.msra.mxu0 0.0
        %3075 = vmatprep.subr.mxu0 0.0
        %3076 = vmatpush1.msra.mxu0 0.0
        %3077 = vmatprep.mubr.f32.mxu0 %v2603
        %3078 = vmatmul.mubr.f32.gmra.mrb[0].mxu0 %v2597
        %v3079 = vpop.f32.mrb[0].mxu0
        %v3080 = vadd.f32 0.0, %v3079
        %v3081 = vpop.f32.mrb[0].mxu0
        %v3082 = vadd.f32 0.0, %v3081
        %3083 = vmatprep.mubr.f32.mxu0 %v2605
        %3084 = vmatmul.mubr.f32.gmra.mrb[0].mxu0 %v2596
        %v3085 = vpop.f32.mrb[0].mxu0
        %v3086 = vadd.f32 0.0, %v3085
        %v3087 = vpop.f32.mrb[0].mxu0
        %v3088 = vadd.f32 0.0, %v3087
        %3089 = vdwg.mxu0
        %v3090 = vadd.f32 %v2946, %v3080
        %v3091 = vadd.f32 %v2948, %v3082
        %v3092 = vadd.f32 %v2952, %v3086
        %v3093 = vadd.f32 %v2954, %v3088
        %v3094 = vmax.f32 %v2684, %v3090
        %v3095 = vmax.f32 %v2685, %v3091
        %v3096 = vmax.f32 %v2686, %v3092
        %v3097 = vmax.f32 %v2687, %v3093
        %v3098 = vld [vmem:[%s6] sm:$0x1]
        %v3101 = vrot.slane %v3094, 1
        %v3102 = vrot.slane %v3095, 1
        %v3105 = vmax.f32 %v3094, %v3101
        %v3106 = vmax.f32 %v3095, %v3102
        %v3107 = vld [vmem:[%s4] sm:$0x3]
        %v3109 = vlaneseq
        %v3110 = vshrl.u32 %v3109, 7
        %v3111 = vsub.s32 0, %v3110
        %v3112 = vrot.slane %v3107, %v3111
        %v3113 = vlaneseq
        %v3114 = vshrl.u32 %v3113, 7
        %v3115 = vsub.s32 1, %v3114
        %v3116 = vrot.slane %v3107, %v3115
        %v3119 = vadd.f32 %v3105, %v3112
        %v3120 = vadd.f32 %v3106, %v3116
        %v3121 = vmax.f32 %v3119, 0.0
        %v3122 = vmax.f32 %v3120, 0.0
        %v3123 = vld [vmem:[%s5] sm:$0xff]
        %v3124 = vld [vmem:[%s5 + $0x8] sm:$0xff]
        %v3125 = vld [vmem:[%s5 + $0x10] sm:$0xff]
        %v3126 = vld [vmem:[%s5 + $0x18] sm:$0xff]
        %v3127 = vld [vmem:[%s5 + $0x20] sm:$0xff]
        %v3128 = vld [vmem:[%s5 + $0x28] sm:$0xff]
        %v3129 = vld [vmem:[%s5 + $0x30] sm:$0xff]
        %v3130 = vld [vmem:[%s5 + $0x38] sm:$0xff]
        %v3131 = vld [vmem:[%s5 + $0x40] sm:$0xff]
        %v3132 = vld [vmem:[%s5 + $0x48] sm:$0xff]
        %v3133 = vld [vmem:[%s5 + $0x50] sm:$0xff]
        %v3134 = vld [vmem:[%s5 + $0x58] sm:$0xff]
        %v3135 = vld [vmem:[%s5 + $0x60] sm:$0xff]
        %v3136 = vld [vmem:[%s5 + $0x68] sm:$0xff]
        %v3137 = vld [vmem:[%s5 + $0x70] sm:$0xff]
        %v3138 = vld [vmem:[%s5 + $0x78] sm:$0xff]
        %v3139 = vld [vmem:[%s5 + $0x80] sm:$0xff]
        %v3140 = vld [vmem:[%s5 + $0x88] sm:$0xff]
        %v3141 = vld [vmem:[%s5 + $0x90] sm:$0xff]
        %v3142 = vld [vmem:[%s5 + $0x98] sm:$0xff]
        %v3143 = vld [vmem:[%s5 + $0xa0] sm:$0xff]
        %v3144 = vld [vmem:[%s5 + $0xa8] sm:$0xff]
        %v3145 = vld [vmem:[%s5 + $0xb0] sm:$0xff]
        %v3146 = vld [vmem:[%s5 + $0xb8] sm:$0xff]
        %v3147 = vld [vmem:[%s5 + $0xc0] sm:$0xff]
        %v3148 = vld [vmem:[%s5 + $0xc8] sm:$0xff]
        %v3149 = vld [vmem:[%s5 + $0xd0] sm:$0xff]
        %vm3150 = vcmask 719872
        %v3152 = vsel %vm3150, %v3122, 0
        %3154 = vmatprep.subr.mxu0 0.0
        %3155 = vmatpush1.msra.mxu0 %v3123
        %3156 = vmatprep.subr.mxu0 0.0
        %3157 = vmatpush1.msra.mxu0 %v3124
        %3158 = vmatprep.subr.mxu0 0.0
        %3159 = vmatpush1.msra.mxu0 %v3125
        %3160 = vmatprep.subr.mxu0 0.0
        %3161 = vmatpush1.msra.mxu0 %v3126
        %3162 = vmatprep.subr.mxu0 0.0
        %3163 = vmatpush1.msra.mxu0 %v3127
        %3164 = vmatprep.subr.mxu0 0.0
        %3165 = vmatpush1.msra.mxu0 %v3128
        %3166 = vmatprep.subr.mxu0 0.0
        %3167 = vmatpush1.msra.mxu0 %v3129
        %3168 = vmatprep.subr.mxu0 0.0
        %3169 = vmatpush1.msra.mxu0 %v3130
        %3170 = vmatprep.subr.mxu0 0.0
        %3171 = vmatpush1.msra.mxu0 %v3131
        %3172 = vmatprep.subr.mxu0 0.0
        %3173 = vmatpush1.msra.mxu0 %v3132
        %3174 = vmatprep.subr.mxu0 0.0
        %3175 = vmatpush1.msra.mxu0 %v3133
        %3176 = vmatprep.subr.mxu0 0.0
        %3177 = vmatpush1.msra.mxu0 %v3134
        %3178 = vmatprep.subr.mxu0 0.0
        %3179 = vmatpush1.msra.mxu0 %v3135
        %3180 = vmatprep.subr.mxu0 0.0
        %3181 = vmatpush1.msra.mxu0 %v3136
        %3182 = vmatprep.subr.mxu0 0.0
        %3183 = vmatpush1.msra.mxu0 %v3137
        %3184 = vmatprep.subr.mxu0 0.0
        %3185 = vmatpush1.msra.mxu0 %v3138
        %3186 = vmatprep.subr.mxu0 0.0
        %3187 = vmatpush1.msra.mxu0 %v3139
        %3188 = vmatprep.subr.mxu0 0.0
        %3189 = vmatpush1.msra.mxu0 %v3140
        %3190 = vmatprep.subr.mxu0 0.0
        %3191 = vmatpush1.msra.mxu0 %v3141
        %3192 = vmatprep.subr.mxu0 0.0
        %3193 = vmatpush1.msra.mxu0 %v3142
        %3194 = vmatprep.subr.mxu0 0.0
        %3195 = vmatpush1.msra.mxu0 %v3143
        %3196 = vmatprep.subr.mxu0 0.0
        %3197 = vmatpush1.msra.mxu0 %v3144
        %3198 = vmatprep.subr.mxu0 0.0
        %3199 = vmatpush1.msra.mxu0 %v3145
        %3200 = vmatprep.subr.mxu0 0.0
        %3201 = vmatpush1.msra.mxu0 %v3146
        %3202 = vmatprep.subr.mxu0 0.0
        %3203 = vmatpush1.msra.mxu0 %v3147
        %3204 = vmatprep.subr.mxu0 0.0
        %3205 = vmatpush1.msra.mxu0 %v3148
        %3206 = vmatprep.subr.mxu0 0.0
        %3207 = vmatpush1.msra.mxu0 %v3149
        %3208 = vmatprep.subr.mxu0 0.0
        %3209 = vmatpush1.msra.mxu0 0.0
        %3210 = vmatprep.subr.mxu0 0.0
        %3211 = vmatpush1.msra.mxu0 0.0
        %3212 = vmatprep.subr.mxu0 0.0
        %3213 = vmatpush1.msra.mxu0 0.0
        %3214 = vmatprep.subr.mxu0 0.0
        %3215 = vmatpush1.msra.mxu0 0.0
        %3216 = vmatprep.subr.mxu0 0.0
        %3217 = vmatpush1.msra.mxu0 0.0
        %3218 = vmatprep.mubr.f32.mxu0 %v3152
        %3219 = vmatmul.mubr.f32.gmra.mrb[0].mxu0 %v3121
        %v3220 = vpop.f32.mrb[0].mxu0
        %v3221 = vadd.f32 0.0, %v3220
        %v3222 = vpop.f32.mrb[0].mxu0
        %3223 = vdwg.mxu0
        %v3224 = vadd.f32 %v3098, %v3221
        %s3225 = scalar_lea.vmem %s5, 216
        %v3226 = vld [vmem:[%s3225] sm:$0xff]
        %v3227 = vld [vmem:[%s3225 + $0x8] sm:$0xff]
        %v3228 = vld [vmem:[%s3225 + $0x10] sm:$0xff]
        %v3229 = vld [vmem:[%s3225 + $0x18] sm:$0xff]
        %v3230 = vld [vmem:[%s3225 + $0x20] sm:$0xff]
        %v3231 = vld [vmem:[%s3225 + $0x28] sm:$0xff]
        %v3232 = vld [vmem:[%s3225 + $0x30] sm:$0xff]
        %v3233 = vld [vmem:[%s3225 + $0x38] sm:$0xff]
        %v3234 = vld [vmem:[%s3225 + $0x40] sm:$0xff]
        %v3235 = vld [vmem:[%s3225 + $0x48] sm:$0xff]
        %v3236 = vld [vmem:[%s3225 + $0x50] sm:$0xff]
        %v3237 = vld [vmem:[%s3225 + $0x58] sm:$0xff]
        %v3238 = vld [vmem:[%s3225 + $0x60] sm:$0xff]
        %v3239 = vld [vmem:[%s3225 + $0x68] sm:$0xff]
        %v3240 = vld [vmem:[%s3225 + $0x70] sm:$0xff]
        %v3241 = vld [vmem:[%s3225 + $0x78] sm:$0xff]
        %v3242 = vld [vmem:[%s3225 + $0x80] sm:$0xff]
        %v3243 = vld [vmem:[%s3225 + $0x88] sm:$0xff]
        %v3244 = vld [vmem:[%s3225 + $0x90] sm:$0xff]
        %v3245 = vld [vmem:[%s3225 + $0x98] sm:$0xff]
        %v3246 = vld [vmem:[%s3225 + $0xa0] sm:$0xff]
        %v3247 = vld [vmem:[%s3225 + $0xa8] sm:$0xff]
        %v3248 = vld [vmem:[%s3225 + $0xb0] sm:$0xff]
        %v3249 = vld [vmem:[%s3225 + $0xb8] sm:$0xff]
        %v3250 = vld [vmem:[%s3225 + $0xc0] sm:$0xff]
        %v3251 = vld [vmem:[%s3225 + $0xc8] sm:$0xff]
        %v3252 = vld [vmem:[%s3225 + $0xd0] sm:$0xff]
        %v3254 = vrot.slane %v3121, 2
        %v3255 = vrot.slane %v3122, 2
        %v3257 = vsel %vm3150, %v3255, 0
        %3259 = vmatprep.subr.mxu0 0.0
        %3260 = vmatpush1.msra.mxu0 %v3226
        %3261 = vmatprep.subr.mxu0 0.0
        %3262 = vmatpush1.msra.mxu0 %v3227
        %3263 = vmatprep.subr.mxu0 0.0
        %3264 = vmatpush1.msra.mxu0 %v3228
        %3265 = vmatprep.subr.mxu0 0.0
        %3266 = vmatpush1.msra.mxu0 %v3229
        %3267 = vmatprep.subr.mxu0 0.0
        %3268 = vmatpush1.msra.mxu0 %v3230
        %3269 = vmatprep.subr.mxu0 0.0
        %3270 = vmatpush1.msra.mxu0 %v3231
        %3271 = vmatprep.subr.mxu0 0.0
        %3272 = vmatpush1.msra.mxu0 %v3232
        %3273 = vmatprep.subr.mxu0 0.0
        %3274 = vmatpush1.msra.mxu0 %v3233
        %3275 = vmatprep.subr.mxu0 0.0
        %3276 = vmatpush1.msra.mxu0 %v3234
        %3277 = vmatprep.subr.mxu0 0.0
        %3278 = vmatpush1.msra.mxu0 %v3235
        %3279 = vmatprep.subr.mxu0 0.0
        %3280 = vmatpush1.msra.mxu0 %v3236
        %3281 = vmatprep.subr.mxu0 0.0
        %3282 = vmatpush1.msra.mxu0 %v3237
        %3283 = vmatprep.subr.mxu0 0.0
        %3284 = vmatpush1.msra.mxu0 %v3238
        %3285 = vmatprep.subr.mxu0 0.0
        %3286 = vmatpush1.msra.mxu0 %v3239
        %3287 = vmatprep.subr.mxu0 0.0
        %3288 = vmatpush1.msra.mxu0 %v3240
        %3289 = vmatprep.subr.mxu0 0.0
        %3290 = vmatpush1.msra.mxu0 %v3241
        %3291 = vmatprep.subr.mxu0 0.0
        %3292 = vmatpush1.msra.mxu0 %v3242
        %3293 = vmatprep.subr.mxu0 0.0
        %3294 = vmatpush1.msra.mxu0 %v3243
        %3295 = vmatprep.subr.mxu0 0.0
        %3296 = vmatpush1.msra.mxu0 %v3244
        %3297 = vmatprep.subr.mxu0 0.0
        %3298 = vmatpush1.msra.mxu0 %v3245
        %3299 = vmatprep.subr.mxu0 0.0
        %3300 = vmatpush1.msra.mxu0 %v3246
        %3301 = vmatprep.subr.mxu0 0.0
        %3302 = vmatpush1.msra.mxu0 %v3247
        %3303 = vmatprep.subr.mxu0 0.0
        %3304 = vmatpush1.msra.mxu0 %v3248
        %3305 = vmatprep.subr.mxu0 0.0
        %3306 = vmatpush1.msra.mxu0 %v3249
        %3307 = vmatprep.subr.mxu0 0.0
        %3308 = vmatpush1.msra.mxu0 %v3250
        %3309 = vmatprep.subr.mxu0 0.0
        %3310 = vmatpush1.msra.mxu0 %v3251
        %3311 = vmatprep.subr.mxu0 0.0
        %3312 = vmatpush1.msra.mxu0 %v3252
        %3313 = vmatprep.subr.mxu0 0.0
        %3314 = vmatpush1.msra.mxu0 0.0
        %3315 = vmatprep.subr.mxu0 0.0
        %3316 = vmatpush1.msra.mxu0 0.0
        %3317 = vmatprep.subr.mxu0 0.0
        %3318 = vmatpush1.msra.mxu0 0.0
        %3319 = vmatprep.subr.mxu0 0.0
        %3320 = vmatpush1.msra.mxu0 0.0
        %3321 = vmatprep.subr.mxu0 0.0
        %3322 = vmatpush1.msra.mxu0 0.0
        %3323 = vmatprep.mubr.f32.mxu0 %v3257
        %3324 = vmatmul.mubr.f32.gmra.mrb[0].mxu0 %v3254
        %v3325 = vpop.f32.mrb[0].mxu0
        %v3326 = vadd.f32 0.0, %v3325
        %v3327 = vpop.f32.mrb[0].mxu0
        %3328 = vdwg.mxu0
        %v3329 = vadd.f32 %v3224, %v3326
        %s3330 = scalar_lea.vmem %s5, 432
        %v3331 = vld [vmem:[%s3330] sm:$0xff]
        %v3332 = vld [vmem:[%s3330 + $0x8] sm:$0xff]
        %v3333 = vld [vmem:[%s3330 + $0x10] sm:$0xff]
        %v3334 = vld [vmem:[%s3330 + $0x18] sm:$0xff]
        %v3335 = vld [vmem:[%s3330 + $0x20] sm:$0xff]
        %v3336 = vld [vmem:[%s3330 + $0x28] sm:$0xff]
        %v3337 = vld [vmem:[%s3330 + $0x30] sm:$0xff]
        %v3338 = vld [vmem:[%s3330 + $0x38] sm:$0xff]
        %v3339 = vld [vmem:[%s3330 + $0x40] sm:$0xff]
        %v3340 = vld [vmem:[%s3330 + $0x48] sm:$0xff]
        %v3341 = vld [vmem:[%s3330 + $0x50] sm:$0xff]
        %v3342 = vld [vmem:[%s3330 + $0x58] sm:$0xff]
        %v3343 = vld [vmem:[%s3330 + $0x60] sm:$0xff]
        %v3344 = vld [vmem:[%s3330 + $0x68] sm:$0xff]
        %v3345 = vld [vmem:[%s3330 + $0x70] sm:$0xff]
        %v3346 = vld [vmem:[%s3330 + $0x78] sm:$0xff]
        %v3347 = vld [vmem:[%s3330 + $0x80] sm:$0xff]
        %v3348 = vld [vmem:[%s3330 + $0x88] sm:$0xff]
        %v3349 = vld [vmem:[%s3330 + $0x90] sm:$0xff]
        %v3350 = vld [vmem:[%s3330 + $0x98] sm:$0xff]
        %v3351 = vld [vmem:[%s3330 + $0xa0] sm:$0xff]
        %v3352 = vld [vmem:[%s3330 + $0xa8] sm:$0xff]
        %v3353 = vld [vmem:[%s3330 + $0xb0] sm:$0xff]
        %v3354 = vld [vmem:[%s3330 + $0xb8] sm:$0xff]
        %v3355 = vld [vmem:[%s3330 + $0xc0] sm:$0xff]
        %v3356 = vld [vmem:[%s3330 + $0xc8] sm:$0xff]
        %v3357 = vld [vmem:[%s3330 + $0xd0] sm:$0xff]
        %v3358 = vrot.slane %v3121, 4
        %v3359 = vrot.slane %v3122, 4
        %v3361 = vsel %vm3150, %v3359, 0
        %3363 = vmatprep.subr.mxu0 0.0
        %3364 = vmatpush1.msra.mxu0 %v3331
        %3365 = vmatprep.subr.mxu0 0.0
        %3366 = vmatpush1.msra.mxu0 %v3332
        %3367 = vmatprep.subr.mxu0 0.0
        %3368 = vmatpush1.msra.mxu0 %v3333
        %3369 = vmatprep.subr.mxu0 0.0
        %3370 = vmatpush1.msra.mxu0 %v3334
        %3371 = vmatprep.subr.mxu0 0.0
        %3372 = vmatpush1.msra.mxu0 %v3335
        %3373 = vmatprep.subr.mxu0 0.0
        %3374 = vmatpush1.msra.mxu0 %v3336
        %3375 = vmatprep.subr.mxu0 0.0
        %3376 = vmatpush1.msra.mxu0 %v3337
        %3377 = vmatprep.subr.mxu0 0.0
        %3378 = vmatpush1.msra.mxu0 %v3338
        %3379 = vmatprep.subr.mxu0 0.0
        %3380 = vmatpush1.msra.mxu0 %v3339
        %3381 = vmatprep.subr.mxu0 0.0
        %3382 = vmatpush1.msra.mxu0 %v3340
        %3383 = vmatprep.subr.mxu0 0.0
        %3384 = vmatpush1.msra.mxu0 %v3341
        %3385 = vmatprep.subr.mxu0 0.0
        %3386 = vmatpush1.msra.mxu0 %v3342
        %3387 = vmatprep.subr.mxu0 0.0
        %3388 = vmatpush1.msra.mxu0 %v3343
        %3389 = vmatprep.subr.mxu0 0.0
        %3390 = vmatpush1.msra.mxu0 %v3344
        %3391 = vmatprep.subr.mxu0 0.0
        %3392 = vmatpush1.msra.mxu0 %v3345
        %3393 = vmatprep.subr.mxu0 0.0
        %3394 = vmatpush1.msra.mxu0 %v3346
        %3395 = vmatprep.subr.mxu0 0.0
        %3396 = vmatpush1.msra.mxu0 %v3347
        %3397 = vmatprep.subr.mxu0 0.0
        %3398 = vmatpush1.msra.mxu0 %v3348
        %3399 = vmatprep.subr.mxu0 0.0
        %3400 = vmatpush1.msra.mxu0 %v3349
        %3401 = vmatprep.subr.mxu0 0.0
        %3402 = vmatpush1.msra.mxu0 %v3350
        %3403 = vmatprep.subr.mxu0 0.0
        %3404 = vmatpush1.msra.mxu0 %v3351
        %3405 = vmatprep.subr.mxu0 0.0
        %3406 = vmatpush1.msra.mxu0 %v3352
        %3407 = vmatprep.subr.mxu0 0.0
        %3408 = vmatpush1.msra.mxu0 %v3353
        %3409 = vmatprep.subr.mxu0 0.0
        %3410 = vmatpush1.msra.mxu0 %v3354
        %3411 = vmatprep.subr.mxu0 0.0
        %3412 = vmatpush1.msra.mxu0 %v3355
        %3413 = vmatprep.subr.mxu0 0.0
        %3414 = vmatpush1.msra.mxu0 %v3356
        %3415 = vmatprep.subr.mxu0 0.0
        %3416 = vmatpush1.msra.mxu0 %v3357
        %3417 = vmatprep.subr.mxu0 0.0
        %3418 = vmatpush1.msra.mxu0 0.0
        %3419 = vmatprep.subr.mxu0 0.0
        %3420 = vmatpush1.msra.mxu0 0.0
        %3421 = vmatprep.subr.mxu0 0.0
        %3422 = vmatpush1.msra.mxu0 0.0
        %3423 = vmatprep.subr.mxu0 0.0
        %3424 = vmatpush1.msra.mxu0 0.0
        %3425 = vmatprep.subr.mxu0 0.0
        %3426 = vmatpush1.msra.mxu0 0.0
        %3427 = vmatprep.mubr.f32.mxu0 %v3361
        %3428 = vmatmul.mubr.f32.gmra.mrb[0].mxu0 %v3358
        %v3429 = vpop.f32.mrb[0].mxu0
        %v3430 = vadd.f32 0.0, %v3429
        %v3431 = vpop.f32.mrb[0].mxu0
        %3432 = vdwg.mxu0
        %v3433 = vadd.f32 %v3329, %v3430
        %s3434 = scalar_lea.vmem %s5, 648
        %v3435 = vld [vmem:[%s3434] sm:$0xff]
        %v3436 = vld [vmem:[%s3434 + $0x8] sm:$0xff]
        %v3437 = vld [vmem:[%s3434 + $0x10] sm:$0xff]
        %v3438 = vld [vmem:[%s3434 + $0x18] sm:$0xff]
        %v3439 = vld [vmem:[%s3434 + $0x20] sm:$0xff]
        %v3440 = vld [vmem:[%s3434 + $0x28] sm:$0xff]
        %v3441 = vld [vmem:[%s3434 + $0x30] sm:$0xff]
        %v3442 = vld [vmem:[%s3434 + $0x38] sm:$0xff]
        %v3443 = vld [vmem:[%s3434 + $0x40] sm:$0xff]
        %v3444 = vld [vmem:[%s3434 + $0x48] sm:$0xff]
        %v3445 = vld [vmem:[%s3434 + $0x50] sm:$0xff]
        %v3446 = vld [vmem:[%s3434 + $0x58] sm:$0xff]
        %v3447 = vld [vmem:[%s3434 + $0x60] sm:$0xff]
        %v3448 = vld [vmem:[%s3434 + $0x68] sm:$0xff]
        %v3449 = vld [vmem:[%s3434 + $0x70] sm:$0xff]
        %v3450 = vld [vmem:[%s3434 + $0x78] sm:$0xff]
        %v3451 = vld [vmem:[%s3434 + $0x80] sm:$0xff]
        %v3452 = vld [vmem:[%s3434 + $0x88] sm:$0xff]
        %v3453 = vld [vmem:[%s3434 + $0x90] sm:$0xff]
        %v3454 = vld [vmem:[%s3434 + $0x98] sm:$0xff]
        %v3455 = vld [vmem:[%s3434 + $0xa0] sm:$0xff]
        %v3456 = vld [vmem:[%s3434 + $0xa8] sm:$0xff]
        %v3457 = vld [vmem:[%s3434 + $0xb0] sm:$0xff]
        %v3458 = vld [vmem:[%s3434 + $0xb8] sm:$0xff]
        %v3459 = vld [vmem:[%s3434 + $0xc0] sm:$0xff]
        %v3460 = vld [vmem:[%s3434 + $0xc8] sm:$0xff]
        %v3461 = vld [vmem:[%s3434 + $0xd0] sm:$0xff]
        %v3462 = vrot.slane %v3121, 6
        %v3463 = vrot.slane %v3122, 6
        %v3465 = vsel %vm3150, %v3463, 0
        %3467 = vmatprep.subr.mxu0 0.0
        %3468 = vmatpush1.msra.mxu0 %v3435
        %3469 = vmatprep.subr.mxu0 0.0
        %3470 = vmatpush1.msra.mxu0 %v3436
        %3471 = vmatprep.subr.mxu0 0.0
        %3472 = vmatpush1.msra.mxu0 %v3437
        %3473 = vmatprep.subr.mxu0 0.0
        %3474 = vmatpush1.msra.mxu0 %v3438
        %3475 = vmatprep.subr.mxu0 0.0
        %3476 = vmatpush1.msra.mxu0 %v3439
        %3477 = vmatprep.subr.mxu0 0.0
        %3478 = vmatpush1.msra.mxu0 %v3440
        %3479 = vmatprep.subr.mxu0 0.0
        %3480 = vmatpush1.msra.mxu0 %v3441
        %3481 = vmatprep.subr.mxu0 0.0
        %3482 = vmatpush1.msra.mxu0 %v3442
        %3483 = vmatprep.subr.mxu0 0.0
        %3484 = vmatpush1.msra.mxu0 %v3443
        %3485 = vmatprep.subr.mxu0 0.0
        %3486 = vmatpush1.msra.mxu0 %v3444
        %3487 = vmatprep.subr.mxu0 0.0
        %3488 = vmatpush1.msra.mxu0 %v3445
        %3489 = vmatprep.subr.mxu0 0.0
        %3490 = vmatpush1.msra.mxu0 %v3446
        %3491 = vmatprep.subr.mxu0 0.0
        %3492 = vmatpush1.msra.mxu0 %v3447
        %3493 = vmatprep.subr.mxu0 0.0
        %3494 = vmatpush1.msra.mxu0 %v3448
        %3495 = vmatprep.subr.mxu0 0.0
        %3496 = vmatpush1.msra.mxu0 %v3449
        %3497 = vmatprep.subr.mxu0 0.0
        %3498 = vmatpush1.msra.mxu0 %v3450
        %3499 = vmatprep.subr.mxu0 0.0
        %3500 = vmatpush1.msra.mxu0 %v3451
        %3501 = vmatprep.subr.mxu0 0.0
        %3502 = vmatpush1.msra.mxu0 %v3452
        %3503 = vmatprep.subr.mxu0 0.0
        %3504 = vmatpush1.msra.mxu0 %v3453
        %3505 = vmatprep.subr.mxu0 0.0
        %3506 = vmatpush1.msra.mxu0 %v3454
        %3507 = vmatprep.subr.mxu0 0.0
        %3508 = vmatpush1.msra.mxu0 %v3455
        %3509 = vmatprep.subr.mxu0 0.0
        %3510 = vmatpush1.msra.mxu0 %v3456
        %3511 = vmatprep.subr.mxu0 0.0
        %3512 = vmatpush1.msra.mxu0 %v3457
        %3513 = vmatprep.subr.mxu0 0.0
        %3514 = vmatpush1.msra.mxu0 %v3458
        %3515 = vmatprep.subr.mxu0 0.0
        %3516 = vmatpush1.msra.mxu0 %v3459
        %3517 = vmatprep.subr.mxu0 0.0
        %3518 = vmatpush1.msra.mxu0 %v3460
        %3519 = vmatprep.subr.mxu0 0.0
        %3520 = vmatpush1.msra.mxu0 %v3461
        %3521 = vmatprep.subr.mxu0 0.0
        %3522 = vmatpush1.msra.mxu0 0.0
        %3523 = vmatprep.subr.mxu0 0.0
        %3524 = vmatpush1.msra.mxu0 0.0
        %3525 = vmatprep.subr.mxu0 0.0
        %3526 = vmatpush1.msra.mxu0 0.0
        %3527 = vmatprep.subr.mxu0 0.0
        %3528 = vmatpush1.msra.mxu0 0.0
        %3529 = vmatprep.subr.mxu0 0.0
        %3530 = vmatpush1.msra.mxu0 0.0
        %3531 = vmatprep.mubr.f32.mxu0 %v3465
        %3532 = vmatmul.mubr.f32.gmra.mrb[0].mxu0 %v3462
        %v3533 = vpop.f32.mrb[0].mxu0
        %v3534 = vadd.f32 0.0, %v3533
        %v3535 = vpop.f32.mrb[0].mxu0
        %3536 = vdwg.mxu0
        %v3537 = vadd.f32 %v3433, %v3534
        %v3540 = vrot.slane %v3096, 1
        %v3541 = vrot.slane %v3097, 1
        %v3544 = vmax.f32 %v3096, %v3540
        %v3545 = vmax.f32 %v3097, %v3541
        %v3546 = vadd.f32 %v3544, %v3112
        %v3547 = vadd.f32 %v3545, %v3116
        %v3548 = vmax.f32 %v3546, 0.0
        %v3549 = vmax.f32 %v3547, 0.0
        %s3550 = scalar_lea.vmem %s5, 864
        %v3551 = vld [vmem:[%s3550] sm:$0xff]
        %v3552 = vld [vmem:[%s3550 + $0x8] sm:$0xff]
        %v3553 = vld [vmem:[%s3550 + $0x10] sm:$0xff]
        %v3554 = vld [vmem:[%s3550 + $0x18] sm:$0xff]
        %v3555 = vld [vmem:[%s3550 + $0x20] sm:$0xff]
        %v3556 = vld [vmem:[%s3550 + $0x28] sm:$0xff]
        %v3557 = vld [vmem:[%s3550 + $0x30] sm:$0xff]
        %v3558 = vld [vmem:[%s3550 + $0x38] sm:$0xff]
        %v3559 = vld [vmem:[%s3550 + $0x40] sm:$0xff]
        %v3560 = vld [vmem:[%s3550 + $0x48] sm:$0xff]
        %v3561 = vld [vmem:[%s3550 + $0x50] sm:$0xff]
        %v3562 = vld [vmem:[%s3550 + $0x58] sm:$0xff]
        %v3563 = vld [vmem:[%s3550 + $0x60] sm:$0xff]
        %v3564 = vld [vmem:[%s3550 + $0x68] sm:$0xff]
        %v3565 = vld [vmem:[%s3550 + $0x70] sm:$0xff]
        %v3566 = vld [vmem:[%s3550 + $0x78] sm:$0xff]
        %v3567 = vld [vmem:[%s3550 + $0x80] sm:$0xff]
        %v3568 = vld [vmem:[%s3550 + $0x88] sm:$0xff]
        %v3569 = vld [vmem:[%s3550 + $0x90] sm:$0xff]
        %v3570 = vld [vmem:[%s3550 + $0x98] sm:$0xff]
        %v3571 = vld [vmem:[%s3550 + $0xa0] sm:$0xff]
        %v3572 = vld [vmem:[%s3550 + $0xa8] sm:$0xff]
        %v3573 = vld [vmem:[%s3550 + $0xb0] sm:$0xff]
        %v3574 = vld [vmem:[%s3550 + $0xb8] sm:$0xff]
        %v3575 = vld [vmem:[%s3550 + $0xc0] sm:$0xff]
        %v3576 = vld [vmem:[%s3550 + $0xc8] sm:$0xff]
        %v3577 = vld [vmem:[%s3550 + $0xd0] sm:$0xff]
        %v3579 = vsel %vm3150, %v3549, 0
        %3581 = vmatprep.subr.mxu0 0.0
        %3582 = vmatpush1.msra.mxu0 %v3551
        %3583 = vmatprep.subr.mxu0 0.0
        %3584 = vmatpush1.msra.mxu0 %v3552
        %3585 = vmatprep.subr.mxu0 0.0
        %3586 = vmatpush1.msra.mxu0 %v3553
        %3587 = vmatprep.subr.mxu0 0.0
        %3588 = vmatpush1.msra.mxu0 %v3554
        %3589 = vmatprep.subr.mxu0 0.0
        %3590 = vmatpush1.msra.mxu0 %v3555
        %3591 = vmatprep.subr.mxu0 0.0
        %3592 = vmatpush1.msra.mxu0 %v3556
        %3593 = vmatprep.subr.mxu0 0.0
        %3594 = vmatpush1.msra.mxu0 %v3557
        %3595 = vmatprep.subr.mxu0 0.0
        %3596 = vmatpush1.msra.mxu0 %v3558
        %3597 = vmatprep.subr.mxu0 0.0
        %3598 = vmatpush1.msra.mxu0 %v3559
        %3599 = vmatprep.subr.mxu0 0.0
        %3600 = vmatpush1.msra.mxu0 %v3560
        %3601 = vmatprep.subr.mxu0 0.0
        %3602 = vmatpush1.msra.mxu0 %v3561
        %3603 = vmatprep.subr.mxu0 0.0
        %3604 = vmatpush1.msra.mxu0 %v3562
        %3605 = vmatprep.subr.mxu0 0.0
        %3606 = vmatpush1.msra.mxu0 %v3563
        %3607 = vmatprep.subr.mxu0 0.0
        %3608 = vmatpush1.msra.mxu0 %v3564
        %3609 = vmatprep.subr.mxu0 0.0
        %3610 = vmatpush1.msra.mxu0 %v3565
        %3611 = vmatprep.subr.mxu0 0.0
        %3612 = vmatpush1.msra.mxu0 %v3566
        %3613 = vmatprep.subr.mxu0 0.0
        %3614 = vmatpush1.msra.mxu0 %v3567
        %3615 = vmatprep.subr.mxu0 0.0
        %3616 = vmatpush1.msra.mxu0 %v3568
        %3617 = vmatprep.subr.mxu0 0.0
        %3618 = vmatpush1.msra.mxu0 %v3569
        %3619 = vmatprep.subr.mxu0 0.0
        %3620 = vmatpush1.msra.mxu0 %v3570
        %3621 = vmatprep.subr.mxu0 0.0
        %3622 = vmatpush1.msra.mxu0 %v3571
        %3623 = vmatprep.subr.mxu0 0.0
        %3624 = vmatpush1.msra.mxu0 %v3572
        %3625 = vmatprep.subr.mxu0 0.0
        %3626 = vmatpush1.msra.mxu0 %v3573
        %3627 = vmatprep.subr.mxu0 0.0
        %3628 = vmatpush1.msra.mxu0 %v3574
        %3629 = vmatprep.subr.mxu0 0.0
        %3630 = vmatpush1.msra.mxu0 %v3575
        %3631 = vmatprep.subr.mxu0 0.0
        %3632 = vmatpush1.msra.mxu0 %v3576
        %3633 = vmatprep.subr.mxu0 0.0
        %3634 = vmatpush1.msra.mxu0 %v3577
        %3635 = vmatprep.subr.mxu0 0.0
        %3636 = vmatpush1.msra.mxu0 0.0
        %3637 = vmatprep.subr.mxu0 0.0
        %3638 = vmatpush1.msra.mxu0 0.0
        %3639 = vmatprep.subr.mxu0 0.0
        %3640 = vmatpush1.msra.mxu0 0.0
        %3641 = vmatprep.subr.mxu0 0.0
        %3642 = vmatpush1.msra.mxu0 0.0
        %3643 = vmatprep.subr.mxu0 0.0
        %3644 = vmatpush1.msra.mxu0 0.0
        %3645 = vmatprep.mubr.f32.mxu0 %v3579
        %3646 = vmatmul.mubr.f32.gmra.mrb[0].mxu0 %v3548
        %v3647 = vpop.f32.mrb[0].mxu0
        %v3648 = vadd.f32 0.0, %v3647
        %v3649 = vpop.f32.mrb[0].mxu0
        %3650 = vdwg.mxu0
        %v3651 = vadd.f32 %v3537, %v3648
        %s3652 = scalar_lea.vmem %s5, 1080
        %v3653 = vld [vmem:[%s3652] sm:$0xff]
        %v3654 = vld [vmem:[%s3652 + $0x8] sm:$0xff]
        %v3655 = vld [vmem:[%s3652 + $0x10] sm:$0xff]
        %v3656 = vld [vmem:[%s3652 + $0x18] sm:$0xff]
        %v3657 = vld [vmem:[%s3652 + $0x20] sm:$0xff]
        %v3658 = vld [vmem:[%s3652 + $0x28] sm:$0xff]
        %v3659 = vld [vmem:[%s3652 + $0x30] sm:$0xff]
        %v3660 = vld [vmem:[%s3652 + $0x38] sm:$0xff]
        %v3661 = vld [vmem:[%s3652 + $0x40] sm:$0xff]
        %v3662 = vld [vmem:[%s3652 + $0x48] sm:$0xff]
        %v3663 = vld [vmem:[%s3652 + $0x50] sm:$0xff]
        %v3664 = vld [vmem:[%s3652 + $0x58] sm:$0xff]
        %v3665 = vld [vmem:[%s3652 + $0x60] sm:$0xff]
        %v3666 = vld [vmem:[%s3652 + $0x68] sm:$0xff]
        %v3667 = vld [vmem:[%s3652 + $0x70] sm:$0xff]
        %v3668 = vld [vmem:[%s3652 + $0x78] sm:$0xff]
        %v3669 = vld [vmem:[%s3652 + $0x80] sm:$0xff]
        %v3670 = vld [vmem:[%s3652 + $0x88] sm:$0xff]
        %v3671 = vld [vmem:[%s3652 + $0x90] sm:$0xff]
        %v3672 = vld [vmem:[%s3652 + $0x98] sm:$0xff]
        %v3673 = vld [vmem:[%s3652 + $0xa0] sm:$0xff]
        %v3674 = vld [vmem:[%s3652 + $0xa8] sm:$0xff]
        %v3675 = vld [vmem:[%s3652 + $0xb0] sm:$0xff]
        %v3676 = vld [vmem:[%s3652 + $0xb8] sm:$0xff]
        %v3677 = vld [vmem:[%s3652 + $0xc0] sm:$0xff]
        %v3678 = vld [vmem:[%s3652 + $0xc8] sm:$0xff]
        %v3679 = vld [vmem:[%s3652 + $0xd0] sm:$0xff]
        %v3681 = vrot.slane %v3548, 2
        %v3682 = vrot.slane %v3549, 2
        %v3684 = vsel %vm3150, %v3682, 0
        %3686 = vmatprep.subr.mxu0 0.0
        %3687 = vmatpush1.msra.mxu0 %v3653
        %3688 = vmatprep.subr.mxu0 0.0
        %3689 = vmatpush1.msra.mxu0 %v3654
        %3690 = vmatprep.subr.mxu0 0.0
        %3691 = vmatpush1.msra.mxu0 %v3655
        %3692 = vmatprep.subr.mxu0 0.0
        %3693 = vmatpush1.msra.mxu0 %v3656
        %3694 = vmatprep.subr.mxu0 0.0
        %3695 = vmatpush1.msra.mxu0 %v3657
        %3696 = vmatprep.subr.mxu0 0.0
        %3697 = vmatpush1.msra.mxu0 %v3658
        %3698 = vmatprep.subr.mxu0 0.0
        %3699 = vmatpush1.msra.mxu0 %v3659
        %3700 = vmatprep.subr.mxu0 0.0
        %3701 = vmatpush1.msra.mxu0 %v3660
        %3702 = vmatprep.subr.mxu0 0.0
        %3703 = vmatpush1.msra.mxu0 %v3661
        %3704 = vmatprep.subr.mxu0 0.0
        %3705 = vmatpush1.msra.mxu0 %v3662
        %3706 = vmatprep.subr.mxu0 0.0
        %3707 = vmatpush1.msra.mxu0 %v3663
        %3708 = vmatprep.subr.mxu0 0.0
        %3709 = vmatpush1.msra.mxu0 %v3664
        %3710 = vmatprep.subr.mxu0 0.0
        %3711 = vmatpush1.msra.mxu0 %v3665
        %3712 = vmatprep.subr.mxu0 0.0
        %3713 = vmatpush1.msra.mxu0 %v3666
        %3714 = vmatprep.subr.mxu0 0.0
        %3715 = vmatpush1.msra.mxu0 %v3667
        %3716 = vmatprep.subr.mxu0 0.0
        %3717 = vmatpush1.msra.mxu0 %v3668
        %3718 = vmatprep.subr.mxu0 0.0
        %3719 = vmatpush1.msra.mxu0 %v3669
        %3720 = vmatprep.subr.mxu0 0.0
        %3721 = vmatpush1.msra.mxu0 %v3670
        %3722 = vmatprep.subr.mxu0 0.0
        %3723 = vmatpush1.msra.mxu0 %v3671
        %3724 = vmatprep.subr.mxu0 0.0
        %3725 = vmatpush1.msra.mxu0 %v3672
        %3726 = vmatprep.subr.mxu0 0.0
        %3727 = vmatpush1.msra.mxu0 %v3673
        %3728 = vmatprep.subr.mxu0 0.0
        %3729 = vmatpush1.msra.mxu0 %v3674
        %3730 = vmatprep.subr.mxu0 0.0
        %3731 = vmatpush1.msra.mxu0 %v3675
        %3732 = vmatprep.subr.mxu0 0.0
        %3733 = vmatpush1.msra.mxu0 %v3676
        %3734 = vmatprep.subr.mxu0 0.0
        %3735 = vmatpush1.msra.mxu0 %v3677
        %3736 = vmatprep.subr.mxu0 0.0
        %3737 = vmatpush1.msra.mxu0 %v3678
        %3738 = vmatprep.subr.mxu0 0.0
        %3739 = vmatpush1.msra.mxu0 %v3679
        %3740 = vmatprep.subr.mxu0 0.0
        %3741 = vmatpush1.msra.mxu0 0.0
        %3742 = vmatprep.subr.mxu0 0.0
        %3743 = vmatpush1.msra.mxu0 0.0
        %3744 = vmatprep.subr.mxu0 0.0
        %3745 = vmatpush1.msra.mxu0 0.0
        %3746 = vmatprep.subr.mxu0 0.0
        %3747 = vmatpush1.msra.mxu0 0.0
        %3748 = vmatprep.subr.mxu0 0.0
        %3749 = vmatpush1.msra.mxu0 0.0
        %3750 = vmatprep.mubr.f32.mxu0 %v3684
        %3751 = vmatmul.mubr.f32.gmra.mrb[0].mxu0 %v3681
        %v3752 = vpop.f32.mrb[0].mxu0
        %v3753 = vadd.f32 0.0, %v3752
        %v3754 = vpop.f32.mrb[0].mxu0
        %3755 = vdwg.mxu0
        %v3756 = vadd.f32 %v3651, %v3753
        %v3757 = vmax.f32 %v3756, 0.0
        %v3758 = vld [vmem:[%s7] sm:$0xff]
        %v3759 = vld [vmem:[%s7 + $0x8] sm:$0xff]
        %v3760 = vld [vmem:[%s7 + $0x10] sm:$0xff]
        %v3761 = vld [vmem:[%s7 + $0x18] sm:$0xff]
        %v3762 = vld [vmem:[%s7 + $0x20] sm:$0xff]
        %v3763 = vld [vmem:[%s7 + $0x28] sm:$0xff]
        %v3764 = vld [vmem:[%s7 + $0x30] sm:$0xff]
        %v3765 = vld [vmem:[%s7 + $0x38] sm:$0xff]
        %v3766 = vld [vmem:[%s7 + $0x40] sm:$0xff]
        %v3767 = vld [vmem:[%s7 + $0x48] sm:$0xff]
        %v3768 = vld [vmem:[%s7 + $0x50] sm:$0xff]
        %v3769 = vld [vmem:[%s7 + $0x58] sm:$0xff]
        %v3770 = vld [vmem:[%s7 + $0x60] sm:$0xff]
        %v3771 = vld [vmem:[%s7 + $0x68] sm:$0xff]
        %v3772 = vld [vmem:[%s7 + $0x70] sm:$0xff]
        %v3773 = vld [vmem:[%s7 + $0x78] sm:$0xff]
        %v3774 = vld [vmem:[%s8] sm:$0x1]
        %3775 = vmatprep.subr.mxu0 0.0
        %3776 = vmatpush1.msra.mxu0 %v3758
        %3777 = vmatprep.subr.mxu0 0.0
        %3778 = vmatpush1.msra.mxu0 %v3759
        %3779 = vmatprep.subr.mxu0 0.0
        %3780 = vmatpush1.msra.mxu0 %v3760
        %3781 = vmatprep.subr.mxu0 0.0
        %3782 = vmatpush1.msra.mxu0 %v3761
        %3783 = vmatprep.subr.mxu0 0.0
        %3784 = vmatpush1.msra.mxu0 %v3762
        %3785 = vmatprep.subr.mxu0 0.0
        %3786 = vmatpush1.msra.mxu0 %v3763
        %3787 = vmatprep.subr.mxu0 0.0
        %3788 = vmatpush1.msra.mxu0 %v3764
        %3789 = vmatprep.subr.mxu0 0.0
        %3790 = vmatpush1.msra.mxu0 %v3765
        %3791 = vmatprep.subr.mxu0 0.0
        %3792 = vmatpush1.msra.mxu0 %v3766
        %3793 = vmatprep.subr.mxu0 0.0
        %3794 = vmatpush1.msra.mxu0 %v3767
        %3795 = vmatprep.subr.mxu0 0.0
        %3796 = vmatpush1.msra.mxu0 %v3768
        %3797 = vmatprep.subr.mxu0 0.0
        %3798 = vmatpush1.msra.mxu0 %v3769
        %3799 = vmatprep.subr.mxu0 0.0
        %3800 = vmatpush1.msra.mxu0 %v3770
        %3801 = vmatprep.subr.mxu0 0.0
        %3802 = vmatpush1.msra.mxu0 %v3771
        %3803 = vmatprep.subr.mxu0 0.0
        %3804 = vmatpush1.msra.mxu0 %v3772
        %3805 = vmatprep.subr.mxu0 0.0
        %3806 = vmatpush1.msra.mxu0 %v3773
        %3807 = vmatprep.subr.mxu0 0.0
        %3808 = vmatpush1.msra.mxu0 0.0
        %3809 = vmatprep.subr.mxu0 0.0
        %3810 = vmatpush1.msra.mxu0 0.0
        %3811 = vmatprep.subr.mxu0 0.0
        %3812 = vmatpush1.msra.mxu0 0.0
        %3813 = vmatprep.subr.mxu0 0.0
        %3814 = vmatpush1.msra.mxu0 0.0
        %3815 = vmatprep.subr.mxu0 0.0
        %3816 = vmatpush1.msra.mxu0 0.0
        %3817 = vmatprep.subr.mxu0 0.0
        %3818 = vmatpush1.msra.mxu0 0.0
        %3819 = vmatprep.subr.mxu0 0.0
        %3820 = vmatpush1.msra.mxu0 0.0
        %3821 = vmatprep.subr.mxu0 0.0
        %3822 = vmatpush1.msra.mxu0 0.0
        %3823 = vmatprep.subr.mxu0 0.0
        %3824 = vmatpush1.msra.mxu0 0.0
        %3825 = vmatprep.subr.mxu0 0.0
        %3826 = vmatpush1.msra.mxu0 0.0
        %3827 = vmatprep.subr.mxu0 0.0
        %3828 = vmatpush1.msra.mxu0 0.0
        %3829 = vmatprep.subr.mxu0 0.0
        %3830 = vmatpush1.msra.mxu0 0.0
        %3831 = vmatprep.subr.mxu0 0.0
        %3832 = vmatpush1.msra.mxu0 0.0
        %3833 = vmatprep.subr.mxu0 0.0
        %3834 = vmatpush1.msra.mxu0 0.0
        %3835 = vmatprep.subr.mxu0 0.0
        %3836 = vmatpush1.msra.mxu0 0.0
        %3837 = vmatprep.subr.mxu0 0.0
        %3838 = vmatpush1.msra.mxu0 0.0
        %3839 = vmatprep.mubr.f32.mxu0 0.0
        %3840 = vmatmul.mubr.f32.gmra.mrb[0].mxu0 %v3757
        %v3841 = vpop.f32.mrb[0].mxu0
        %v3842 = vadd.f32 %v3774, %v3841
        %v3843 = vpop.f32.mrb[0].mxu0
        %3844 = vdwg.mxu0
        %v3845 = vmax.f32 %v3842, 0.0
        %vm3846 = vcmask 73728
        %3847 = vst.msk [vmem:[%s324] sm:$0x1] %vm3846, %v3845
        %s3848 = sand.u32 %s225, 1
        %s3849 = scalar_lea.sflag [#allocation3], %s3848
        %s3850 = sand.u32 %s225, 1
        %s3851 = scalar_lea.vmem [#allocation2], %s3850
        // Predicated region
        $region57: #{net_forward.1} parent=55 // pred_check
          %p3852 = pneg %p235
        $region58: #{net_forward.1} parent=55 // pred_check_branch
          %3854 = sbr.rel (%p3852) target = $region60
        $region59: #{net_forward.1} parent=55 // pred_region
          %s3856 = ssub.s32 16, 16
          %3857 = vsyncadd %s3849, %s3856
          %s3858 = smul.addr %s23, 16
          %s3859 = scalar_lea.hbm %s9, %s3858
          %s3861 = sshll.u32 %s3851, 4
          %s3862 = int_to_ptr.vmem [resolvable:$true] %s3861
          %3864 = dma.vmem_to_hbm [thread:$0]  %s3862, 16, %s3859, %s3849
        $region60: #{net_forward.1} parent=55 // pred_fallthru
          _
      $region56: #{net_forward.1} parent=5 // pred_fallthru
        _
      %p3865 = scmp.le.s32.totalorder 2, %s18
      // Predicated region
      $region61: #{net_forward.1} parent=5 // pred_check
        %p3866 = pneg %p3865
      $region62: #{net_forward.1} parent=5 // pred_check_branch
        %3868 = sbr.rel (%p3866) target = $region64
      $region63: #{net_forward.1} parent=5 // pred_region
        %s3869 = ssub.s32 %s18, 2
        // Predicated region
        $region65: #{net_forward.1} parent=63 // pred_check
          %p3870 = pneg %p241
        $region66: #{net_forward.1} parent=63 // pred_check_branch
          %3872 = sbr.rel (%p3870) target = $region68
        $region67: #{net_forward.1} parent=63 // pred_region
          %s3873 = sand.u32 %s226, 1
          %s3874 = scalar_lea.sflag [#allocation3], %s3873
          %s3875 = sand.u32 %s226, 1
          %s3876 = scalar_lea.vmem [#allocation2], %s3875
          %3877 = dma.done %s3874, 16
        $region68: #{net_forward.1} parent=63 // pred_fallthru
          _
      $region64: #{net_forward.1} parent=5 // pred_fallthru
        _
    $region6: #{net_forward.1} parent=1 // loop_footer
      %s22 = sadd.s32 1, %s18
    $region7: #{net_forward.1} parent=1 // loop_footer_branch
      %17 = sbr.rel target = $region3
    $region8: #{net_forward.1} parent=1 // loop_exit
      _
    %3878 = vsyncpa [#allocation3], 1
    %s3879 = scalar_lea.sflag [#allocation3], 1
    %3880 = vsyncpa %s3879, 1

</llo_original>
